<compile_context>
chip_gen: v5e
topology: v5e:2x2
jax: 0.10.0
libtpu: 0.0.40
codegen_flags: <defaults>
</compile_context>

<pallas_src>
import functools

import jax
import jax.numpy as jnp
from jax.experimental import pallas as pl
from jax.experimental.pallas import tpu as pltpu

NUM_FILTERS = 100
FILTER_SIZES = (3, 5, 7)
LANES = 128


def _round_up(x, m):
    return (x + m - 1) // m * m


# --------------------------------------------------------------------------
# Single fused kernel:
#   3 x (Conv1d same-pad + ReLU + global max-pool) + concat + flatten + FC
# --------------------------------------------------------------------------
def _textcnn_kernel(x_ref, wconv_ref, bconv_ref, wfc_ref, bfc_ref, o_ref,
                    xpad_ref, *, seq_len, l_pad, ksize):
    batch = x_ref.shape[0]
    n_rows = xpad_ref.shape[0]           # batch * l_pad
    f_tot = bconv_ref.shape[-1]          # 3 * 128 (filters padded to lane multiple)
    half = (ksize - 1) // 2

    # ---- Build the zero-padded, batch-flattened activation in VMEM --------
    # Row layout: [ x[0] (seq) | 0 (l_pad-seq) | x[1] | 0 | ... ].
    # l_pad is a multiple of 8, so all writes are sublane-aligned.  The
    # trailing zeros of segment b-1 (and, via the circular roll, of the last
    # segment) provide the left "same" padding of segment b.
    xpad_ref[...] = jnp.zeros_like(xpad_ref)
    for b in range(batch):
        xpad_ref[pl.ds(b * l_pad, seq_len), :] = x_ref[b].astype(xpad_ref.dtype)
    xpad = xpad_ref[...]                                     # (n_rows, d_model) bf16

    # ---- 7-tap conv for all three branches at once -------------------------
    # One full-height matmul per tap; align taps by rolling the OUTPUT
    # (roll(z, s)[r] == z[r - s], so shift = half - t gives z[r - half + t]).
    acc = None
    for t in range(ksize):
        z = jnp.dot(xpad, wconv_ref[t], preferred_element_type=jnp.float32)
        shift = (half - t) % n_rows
        zr = z if shift == 0 else pltpu.roll(z, shift, 0)
        acc = zr if acc is None else acc + zr
    acc = jnp.maximum(acc + bconv_ref[...], 0.0)             # bias + ReLU (f32)

    # ---- Per-batch global max-pool + fused fully-connected layer ----------
    # torch: cat(pools,1).view(1, batch*d_model) @ fc_w + fc_b.  fc_w was
    # pre-reshaped to (batch, 384, C) with zero rows for padded filter lanes,
    # so the concat/flatten never materializes.
    logits = bfc_ref[...]                                    # (1, C) f32
    for b in range(batch):
        pooled = jnp.max(acc[b * l_pad:b * l_pad + seq_len, :],
                         axis=0, keepdims=True)              # (1, 3*128)
        logits = logits + jnp.dot(pooled, wfc_ref[b],
                                  preferred_element_type=jnp.float32)
    o_ref[...] = logits


# --------------------------------------------------------------------------
# One-time repack of the PyTorch-layout weights into the fused layout
# --------------------------------------------------------------------------
def prepare_params(raw_params, *, batch, num_classes):
    d_model = raw_params["conv3_w"].shape[1]
    n_br = len(FILTER_SIZES)
    k_max = max(FILTER_SIZES)
    f_pad = _round_up(NUM_FILTERS, LANES)                    # 100 -> 128
    f_tot = n_br * f_pad

    # Conv branches: zero-pad each kernel to k_max (centered) and each filter
    # block to 128 lanes, then stack along the output-filter axis.  Padded
    # taps/lanes are exactly zero, so results match the 3 separate convs.
    w_conv = jnp.zeros((k_max, d_model, f_tot), jnp.float32)
    b_conv = jnp.zeros((1, f_tot), jnp.float32)
    for bi, k in enumerate(FILTER_SIZES):
        t0 = (k_max - k) // 2
        c0 = bi * f_pad
        w_conv = w_conv.at[t0:t0 + k, :, c0:c0 + NUM_FILTERS].set(
            raw_params[f"conv{k}_w"])
        b_conv = b_conv.at[0, c0:c0 + NUM_FILTERS].set(raw_params[f"conv{k}_b"])

    # FC: row j = b*3*F + branch*F + f of torch's view(1, batch*d_model)
    # input maps to (b, branch*128 + f); padded rows are zero.
    fc_w = raw_params["fc_w"]
    assert fc_w.shape[0] == batch * n_br * NUM_FILTERS       # torch .view() constraint
    assert d_model == n_br * NUM_FILTERS                     # torch .view() constraint
    fc_w = fc_w.reshape(batch, n_br, NUM_FILTERS, num_classes)
    w_fc = jnp.zeros((batch, n_br, f_pad, num_classes), jnp.float32)
    w_fc = w_fc.at[:, :, :NUM_FILTERS, :].set(fc_w).reshape(
        batch, f_tot, num_classes)

    return {
        "w_conv": w_conv.astype(jnp.bfloat16),               # bf16 MXU inputs
        "b_conv": b_conv,
        "w_fc": w_fc,
        "b_fc": raw_params["fc_b"].reshape(1, -1),
    }


# --------------------------------------------------------------------------
# Forward: a single pallas_call
# --------------------------------------------------------------------------
def textcnnmodel_forward(params, x):
    """x: (batch, seq, d_model) -> (num_classes,) logits."""
    batch, seq_len, d_model = x.shape
    k_max, _, f_tot = params["w_conv"].shape
    num_classes = params["w_fc"].shape[-1]
    half = (k_max - 1) // 2
    l_pad = _round_up(seq_len + half, 8)       # per-batch segment, sublane aligned
    n_rows = batch * l_pad

    kernel = functools.partial(_textcnn_kernel, seq_len=seq_len,
                               l_pad=l_pad, ksize=k_max)
    # TODO(synk): dropout treated as identity (inference/eval semantics).
    logits = pl.pallas_call(
        kernel,
        out_shape=jax.ShapeDtypeStruct((1, num_classes), jnp.float32),
        grid_spec=pltpu.PrefetchScalarGridSpec(
            num_scalar_prefetch=0,
            grid=(1,),                         # single step: workload is launch-bound
            in_specs=[
                pl.BlockSpec((batch, seq_len, d_model), lambda i: (0, 0, 0)),
                pl.BlockSpec((k_max, d_model, f_tot), lambda i: (0, 0, 0)),
                pl.BlockSpec((1, f_tot), lambda i: (0, 0)),
                pl.BlockSpec((batch, f_tot, num_classes), lambda i: (0, 0, 0)),
                pl.BlockSpec((1, num_classes), lambda i: (0, 0)),
            ],
            out_specs=pl.BlockSpec((1, num_classes), lambda i: (0, 0)),
            scratch_shapes=[pltpu.VMEM((n_rows, d_model), jnp.bfloat16)],
        ),
        compiler_params=pltpu.CompilerParams(
            dimension_semantics=("arbitrary",)),
    )(x, params["w_conv"], params["b_conv"], params["w_fc"], params["b_fc"])
    # TODO(synk): original torch forward computes torch.squeeze(x_out) but has
    # no `return` statement; we return the squeezed logits instead of None.
    return jnp.squeeze(logits)


# --------------------------------------------------------------------------
# Pure-JAX reference (matches the PyTorch module), for validation only
# --------------------------------------------------------------------------
def _reference_forward(raw_params, x):
    batch, seq_len, d_model = x.shape
    pools = []
    for k in FILTER_SIZES:
        w = raw_params[f"conv{k}_w"]                          # (k, d_model, F)
        b = raw_params[f"conv{k}_b"]                          # (F,)
        pad = (k - 1) // 2
        xp = jnp.pad(x, ((0, 0), (pad, pad), (0, 0)))
        conv = b[None, None, :] + sum(
            jnp.einsum("bld,df->blf", xp[:, t:t + seq_len, :], w[t])
            for t in range(k))
        pools.append(jnp.max(jax.nn.relu(conv), axis=1))      # (batch, F)
    feat = jnp.concatenate(pools, axis=1).reshape(1, batch * d_model)
    return jnp.squeeze(feat @ raw_params["fc_w"] + raw_params["fc_b"])


if __name__ == "__main__":
    num_classes = 5
    d_model = 300   # must equal len(filter_sizes) * num_filters for torch .view()
    batch = 4       # fc in-features 3*100*4 = 1200 = batch * d_model  => batch = 4
    seq_len = 16

    key = jax.random.PRNGKey(0)
    keys = jax.random.split(key, 9)

    raw = {}
    for i, k in enumerate(FILTER_SIZES):
        raw[f"conv{k}_w"] = 0.02 * jax.random.normal(
            keys[2 * i], (k, d_model, NUM_FILTERS), jnp.float32)
        raw[f"conv{k}_b"] = 0.02 * jax.random.normal(
            keys[2 * i + 1], (NUM_FILTERS,), jnp.float32)
    fc_in = len(FILTER_SIZES) * NUM_FILTERS * batch           # 1200
    raw["fc_w"] = 0.02 * jax.random.normal(keys[6], (fc_in, num_classes), jnp.float32)
    raw["fc_b"] = 0.02 * jax.random.normal(keys[7], (num_classes,), jnp.float32)

    x = jax.random.normal(keys[8], (batch, seq_len, d_model), jnp.float32)

    params = prepare_params(raw, batch=batch, num_classes=num_classes)  # one-time repack
    fwd = jax.jit(textcnnmodel_forward)
    out = fwd(params, x)
    jax.block_until_ready(out)

    assert out.shape == (num_classes,), out.shape
    ref = _reference_forward(raw, x)
    assert jnp.allclose(out, ref, atol=5e-2, rtol=5e-2), (out, ref)
    print("KERNEL_OK")
</pallas_src>

<mosaic_0001>
module attributes {stable_mosaic.version = 11 : i64} {
  func.func @_textcnn_kernel(%arg0: i32, %arg1: memref<4x16x300xf32, #tpu.memory_space<vmem>>, %arg2: memref<7x300x384xbf16, #tpu.memory_space<vmem>>, %arg3: memref<1x384xf32, #tpu.memory_space<vmem>>, %arg4: memref<4x384x5xf32, #tpu.memory_space<vmem>>, %arg5: memref<1x5xf32, #tpu.memory_space<vmem>>, %arg6: memref<1x5xf32, #tpu.memory_space<vmem>>, %arg7: memref<96x300xbf16, #tpu.memory_space<vmem>>) attributes {dimension_semantics = [#tpu.dimension_semantics<arbitrary>], iteration_bounds = array<i64: 1>, scalar_prefetch = 0 : i64, scratch_operands = 1 : i64, tpu.core_type = #tpu.core_type<tc>, window_params = [{pipeline_mode = #tpu.pipeline_mode<synchronous>, transform_indices = @transform_0, window_bounds = array<i64: 4, 16, 300>}, {pipeline_mode = #tpu.pipeline_mode<synchronous>, transform_indices = @transform_1, window_bounds = array<i64: 7, 300, 384>}, {pipeline_mode = #tpu.pipeline_mode<synchronous>, transform_indices = @transform_2, window_bounds = array<i64: 1, 384>}, {pipeline_mode = #tpu.pipeline_mode<synchronous>, transform_indices = @transform_3, window_bounds = array<i64: 4, 384, 5>}, {pipeline_mode = #tpu.pipeline_mode<synchronous>, transform_indices = @transform_4, window_bounds = array<i64: 1, 5>}, {pipeline_mode = #tpu.pipeline_mode<synchronous>, transform_indices = @transform_5, window_bounds = array<i64: 1, 5>}]} {
    %cst = arith.constant 0.000000e+00 : bf16
    %0 = vector.broadcast %cst : bf16 to vector<96x300xbf16>
    %c0 = arith.constant 0 : index
    %c0_0 = arith.constant 0 : index
    %1 = vector.load %arg7[%c0, %c0_0] : memref<96x300xbf16, #tpu.memory_space<vmem>>, vector<96x300xbf16>
    tpu.vector_store %arg7[%c0, %c0_0], %0 {strides = array<i32>} : memref<96x300xbf16, #tpu.memory_space<vmem>>, vector<96x300xbf16>,
    %c0_1 = arith.constant 0 : index
    %c0_2 = arith.constant 0 : index
    %c0_3 = arith.constant 0 : index
    %2 = vector.load %arg1[%c0_1, %c0_2, %c0_3] : memref<4x16x300xf32, #tpu.memory_space<vmem>>, vector<1x16x300xf32>
    %3 = vector.shape_cast %2 : vector<1x16x300xf32> to vector<16x300xf32>
    %4 = arith.truncf %3 : vector<16x300xf32> to vector<16x300xbf16>
    %c0_4 = arith.constant 0 : index
    %c0_5 = arith.constant 0 : index
    %5 = vector.load %arg7[%c0_4, %c0_5] : memref<96x300xbf16, #tpu.memory_space<vmem>>, vector<16x300xbf16>
    tpu.vector_store %arg7[%c0_4, %c0_5], %4 {strides = array<i32>} : memref<96x300xbf16, #tpu.memory_space<vmem>>, vector<16x300xbf16>,
    %c1 = arith.constant 1 : index
    %c0_6 = arith.constant 0 : index
    %c0_7 = arith.constant 0 : index
    %6 = vector.load %arg1[%c1, %c0_6, %c0_7] : memref<4x16x300xf32, #tpu.memory_space<vmem>>, vector<1x16x300xf32>
    %7 = vector.shape_cast %6 : vector<1x16x300xf32> to vector<16x300xf32>
    %8 = arith.truncf %7 : vector<16x300xf32> to vector<16x300xbf16>
    %c24 = arith.constant 24 : index
    %c0_8 = arith.constant 0 : index
    %9 = vector.load %arg7[%c24, %c0_8] : memref<96x300xbf16, #tpu.memory_space<vmem>>, vector<16x300xbf16>
    tpu.vector_store %arg7[%c24, %c0_8], %8 {strides = array<i32>} : memref<96x300xbf16, #tpu.memory_space<vmem>>, vector<16x300xbf16>,
    %c2 = arith.constant 2 : index
    %c0_9 = arith.constant 0 : index
    %c0_10 = arith.constant 0 : index
    %10 = vector.load %arg1[%c2, %c0_9, %c0_10] : memref<4x16x300xf32, #tpu.memory_space<vmem>>, vector<1x16x300xf32>
    %11 = vector.shape_cast %10 : vector<1x16x300xf32> to vector<16x300xf32>
    %12 = arith.truncf %11 : vector<16x300xf32> to vector<16x300xbf16>
    %c48 = arith.constant 48 : index
    %c0_11 = arith.constant 0 : index
    %13 = vector.load %arg7[%c48, %c0_11] : memref<96x300xbf16, #tpu.memory_space<vmem>>, vector<16x300xbf16>
    tpu.vector_store %arg7[%c48, %c0_11], %12 {strides = array<i32>} : memref<96x300xbf16, #tpu.memory_space<vmem>>, vector<16x300xbf16>,
    %c3 = arith.constant 3 : index
    %c0_12 = arith.constant 0 : index
    %c0_13 = arith.constant 0 : index
    %14 = vector.load %arg1[%c3, %c0_12, %c0_13] : memref<4x16x300xf32, #tpu.memory_space<vmem>>, vector<1x16x300xf32>
    %15 = vector.shape_cast %14 : vector<1x16x300xf32> to vector<16x300xf32>
    %16 = arith.truncf %15 : vector<16x300xf32> to vector<16x300xbf16>
    %c72 = arith.constant 72 : index
    %c0_14 = arith.constant 0 : index
    %17 = vector.load %arg7[%c72, %c0_14] : memref<96x300xbf16, #tpu.memory_space<vmem>>, vector<16x300xbf16>
    tpu.vector_store %arg7[%c72, %c0_14], %16 {strides = array<i32>} : memref<96x300xbf16, #tpu.memory_space<vmem>>, vector<16x300xbf16>,
    %c0_15 = arith.constant 0 : index
    %c0_16 = arith.constant 0 : index
    %18 = vector.load %arg7[%c0_15, %c0_16] : memref<96x300xbf16, #tpu.memory_space<vmem>>, vector<96x300xbf16>
    %c0_17 = arith.constant 0 : index
    %c0_18 = arith.constant 0 : index
    %c0_19 = arith.constant 0 : index
    %19 = vector.load %arg2[%c0_17, %c0_18, %c0_19] : memref<7x300x384xbf16, #tpu.memory_space<vmem>>, vector<1x300x384xbf16>
    %20 = vector.shape_cast %19 : vector<1x300x384xbf16> to vector<300x384xbf16>
    %cst_20 = arith.constant dense<0.000000e+00> : vector<96x384xf32>
    %21 = tpu.matmul %18, %20, %cst_20 {dimension_numbers = #tpu.dot_dimension_numbers<[1], [0], [0], [1], [0, 0, 1, 1], [], []>} : vector<96x300xbf16>, vector<300x384xbf16>, vector<96x384xf32> -> vector<96x384xf32>
    %c3_i32 = arith.constant 3 : i32
    %22 = tpu.dynamic_rotate %21 by %c3_i32 dim 0 : vector<96x384xf32>, i32 -> vector<96x384xf32>
    %c1_21 = arith.constant 1 : index
    %c0_22 = arith.constant 0 : index
    %c0_23 = arith.constant 0 : index
    %23 = vector.load %arg2[%c1_21, %c0_22, %c0_23] : memref<7x300x384xbf16, #tpu.memory_space<vmem>>, vector<1x300x384xbf16>
    %24 = vector.shape_cast %23 : vector<1x300x384xbf16> to vector<300x384xbf16>
    %cst_24 = arith.constant dense<0.000000e+00> : vector<96x384xf32>
    %25 = tpu.matmul %18, %24, %cst_24 {dimension_numbers = #tpu.dot_dimension_numbers<[1], [0], [0], [1], [0, 0, 1, 1], [], []>} : vector<96x300xbf16>, vector<300x384xbf16>, vector<96x384xf32> -> vector<96x384xf32>
    %c2_i32 = arith.constant 2 : i32
    %26 = tpu.dynamic_rotate %25 by %c2_i32 dim 0 : vector<96x384xf32>, i32 -> vector<96x384xf32>
    %27 = arith.addf %22, %26 : vector<96x384xf32>
    %c2_25 = arith.constant 2 : index
    %c0_26 = arith.constant 0 : index
    %c0_27 = arith.constant 0 : index
    %28 = vector.load %arg2[%c2_25, %c0_26, %c0_27] : memref<7x300x384xbf16, #tpu.memory_space<vmem>>, vector<1x300x384xbf16>
    %29 = vector.shape_cast %28 : vector<1x300x384xbf16> to vector<300x384xbf16>
    %cst_28 = arith.constant dense<0.000000e+00> : vector<96x384xf32>
    %30 = tpu.matmul %18, %29, %cst_28 {dimension_numbers = #tpu.dot_dimension_numbers<[1], [0], [0], [1], [0, 0, 1, 1], [], []>} : vector<96x300xbf16>, vector<300x384xbf16>, vector<96x384xf32> -> vector<96x384xf32>
    %c1_i32 = arith.constant 1 : i32
    %31 = tpu.dynamic_rotate %30 by %c1_i32 dim 0 : vector<96x384xf32>, i32 -> vector<96x384xf32>
    %32 = arith.addf %27, %31 : vector<96x384xf32>
    %c3_29 = arith.constant 3 : index
    %c0_30 = arith.constant 0 : index
    %c0_31 = arith.constant 0 : index
    %33 = vector.load %arg2[%c3_29, %c0_30, %c0_31] : memref<7x300x384xbf16, #tpu.memory_space<vmem>>, vector<1x300x384xbf16>
    %34 = vector.shape_cast %33 : vector<1x300x384xbf16> to vector<300x384xbf16>
    %cst_32 = arith.constant dense<0.000000e+00> : vector<96x384xf32>
    %35 = tpu.matmul %18, %34, %cst_32 {dimension_numbers = #tpu.dot_dimension_numbers<[1], [0], [0], [1], [0, 0, 1, 1], [], []>} : vector<96x300xbf16>, vector<300x384xbf16>, vector<96x384xf32> -> vector<96x384xf32>
    %36 = arith.addf %32, %35 : vector<96x384xf32>
    %c4 = arith.constant 4 : index
    %c0_33 = arith.constant 0 : index
    %c0_34 = arith.constant 0 : index
    %37 = vector.load %arg2[%c4, %c0_33, %c0_34] : memref<7x300x384xbf16, #tpu.memory_space<vmem>>, vector<1x300x384xbf16>
    %38 = vector.shape_cast %37 : vector<1x300x384xbf16> to vector<300x384xbf16>
    %cst_35 = arith.constant dense<0.000000e+00> : vector<96x384xf32>
    %39 = tpu.matmul %18, %38, %cst_35 {dimension_numbers = #tpu.dot_dimension_numbers<[1], [0], [0], [1], [0, 0, 1, 1], [], []>} : vector<96x300xbf16>, vector<300x384xbf16>, vector<96x384xf32> -> vector<96x384xf32>
    %c95_i32 = arith.constant 95 : i32
    %40 = tpu.dynamic_rotate %39 by %c95_i32 dim 0 : vector<96x384xf32>, i32 -> vector<96x384xf32>
    %41 = arith.addf %36, %40 : vector<96x384xf32>
    %c5 = arith.constant 5 : index
    %c0_36 = arith.constant 0 : index
    %c0_37 = arith.constant 0 : index
    %42 = vector.load %arg2[%c5, %c0_36, %c0_37] : memref<7x300x384xbf16, #tpu.memory_space<vmem>>, vector<1x300x384xbf16>
    %43 = vector.shape_cast %42 : vector<1x300x384xbf16> to vector<300x384xbf16>
    %cst_38 = arith.constant dense<0.000000e+00> : vector<96x384xf32>
    %44 = tpu.matmul %18, %43, %cst_38 {dimension_numbers = #tpu.dot_dimension_numbers<[1], [0], [0], [1], [0, 0, 1, 1], [], []>} : vector<96x300xbf16>, vector<300x384xbf16>, vector<96x384xf32> -> vector<96x384xf32>
    %c94_i32 = arith.constant 94 : i32
    %45 = tpu.dynamic_rotate %44 by %c94_i32 dim 0 : vector<96x384xf32>, i32 -> vector<96x384xf32>
    %46 = arith.addf %41, %45 : vector<96x384xf32>
    %c6 = arith.constant 6 : index
    %c0_39 = arith.constant 0 : index
    %c0_40 = arith.constant 0 : index
    %47 = vector.load %arg2[%c6, %c0_39, %c0_40] : memref<7x300x384xbf16, #tpu.memory_space<vmem>>, vector<1x300x384xbf16>
    %48 = vector.shape_cast %47 : vector<1x300x384xbf16> to vector<300x384xbf16>
    %cst_41 = arith.constant dense<0.000000e+00> : vector<96x384xf32>
    %49 = tpu.matmul %18, %48, %cst_41 {dimension_numbers = #tpu.dot_dimension_numbers<[1], [0], [0], [1], [0, 0, 1, 1], [], []>} : vector<96x300xbf16>, vector<300x384xbf16>, vector<96x384xf32> -> vector<96x384xf32>
    %c93_i32 = arith.constant 93 : i32
    %50 = tpu.dynamic_rotate %49 by %c93_i32 dim 0 : vector<96x384xf32>, i32 -> vector<96x384xf32>
    %51 = arith.addf %46, %50 : vector<96x384xf32>
    %c0_42 = arith.constant 0 : index
    %c0_43 = arith.constant 0 : index
    %52 = vector.load %arg3[%c0_42, %c0_43] : memref<1x384xf32, #tpu.memory_space<vmem>>, vector<1x384xf32>
    %53 = vector.broadcast %52 : vector<1x384xf32> to vector<96x384xf32>
    %54 = arith.addf %51, %53 : vector<96x384xf32>
    %cst_44 = arith.constant 0.000000e+00 : f32
    %55 = vector.broadcast %cst_44 : f32 to vector<96x384xf32>
    %56 = arith.maximumf %54, %55 : vector<96x384xf32>
    %c0_45 = arith.constant 0 : index
    %c0_46 = arith.constant 0 : index
    %57 = vector.load %arg5[%c0_45, %c0_46] : memref<1x5xf32, #tpu.memory_space<vmem>>, vector<1x5xf32>
    %58 = vector.extract_strided_slice %56 {offsets = [0, 0], sizes = [16, 384], strides = [1, 1]} : vector<96x384xf32> to vector<16x384xf32>
    %cst_47 = arith.constant dense<0xFF800000> : vector<384xf32>
    %59 = vector.multi_reduction <maximumf>, %58, %cst_47 [0] : vector<16x384xf32> to vector<384xf32>
    %60 = vector.shape_cast %59 : vector<384xf32> to vector<1x384xf32>
    %c0_48 = arith.constant 0 : index
    %c0_49 = arith.constant 0 : index
    %c0_50 = arith.constant 0 : index
    %61 = vector.load %arg4[%c0_48, %c0_49, %c0_50] : memref<4x384x5xf32, #tpu.memory_space<vmem>>, vector<1x384x5xf32>
    %62 = vector.shape_cast %61 : vector<1x384x5xf32> to vector<384x5xf32>
    %cst_51 = arith.constant dense<0.000000e+00> : vector<1x5xf32>
    %63 = tpu.matmul %60, %62, %cst_51 {dimension_numbers = #tpu.dot_dimension_numbers<[1], [0], [0], [1], [0, 0, 1, 1], [], []>} : vector<1x384xf32>, vector<384x5xf32>, vector<1x5xf32> -> vector<1x5xf32>
    %64 = arith.addf %57, %63 : vector<1x5xf32>
    %65 = vector.extract_strided_slice %56 {offsets = [24, 0], sizes = [16, 384], strides = [1, 1]} : vector<96x384xf32> to vector<16x384xf32>
    %cst_52 = arith.constant dense<0xFF800000> : vector<384xf32>
    %66 = vector.multi_reduction <maximumf>, %65, %cst_52 [0] : vector<16x384xf32> to vector<384xf32>
    %67 = vector.shape_cast %66 : vector<384xf32> to vector<1x384xf32>
    %c1_53 = arith.constant 1 : index
    %c0_54 = arith.constant 0 : index
    %c0_55 = arith.constant 0 : index
    %68 = vector.load %arg4[%c1_53, %c0_54, %c0_55] : memref<4x384x5xf32, #tpu.memory_space<vmem>>, vector<1x384x5xf32>
    %69 = vector.shape_cast %68 : vector<1x384x5xf32> to vector<384x5xf32>
    %cst_56 = arith.constant dense<0.000000e+00> : vector<1x5xf32>
    %70 = tpu.matmul %67, %69, %cst_56 {dimension_numbers = #tpu.dot_dimension_numbers<[1], [0], [0], [1], [0, 0, 1, 1], [], []>} : vector<1x384xf32>, vector<384x5xf32>, vector<1x5xf32> -> vector<1x5xf32>
    %71 = arith.addf %64, %70 : vector<1x5xf32>
    %72 = vector.extract_strided_slice %56 {offsets = [48, 0], sizes = [16, 384], strides = [1, 1]} : vector<96x384xf32> to vector<16x384xf32>
    %cst_57 = arith.constant dense<0xFF800000> : vector<384xf32>
    %73 = vector.multi_reduction <maximumf>, %72, %cst_57 [0] : vector<16x384xf32> to vector<384xf32>
    %74 = vector.shape_cast %73 : vector<384xf32> to vector<1x384xf32>
    %c2_58 = arith.constant 2 : index
    %c0_59 = arith.constant 0 : index
    %c0_60 = arith.constant 0 : index
    %75 = vector.load %arg4[%c2_58, %c0_59, %c0_60] : memref<4x384x5xf32, #tpu.memory_space<vmem>>, vector<1x384x5xf32>
    %76 = vector.shape_cast %75 : vector<1x384x5xf32> to vector<384x5xf32>
    %cst_61 = arith.constant dense<0.000000e+00> : vector<1x5xf32>
    %77 = tpu.matmul %74, %76, %cst_61 {dimension_numbers = #tpu.dot_dimension_numbers<[1], [0], [0], [1], [0, 0, 1, 1], [], []>} : vector<1x384xf32>, vector<384x5xf32>, vector<1x5xf32> -> vector<1x5xf32>
    %78 = arith.addf %71, %77 : vector<1x5xf32>
    %79 = vector.extract_strided_slice %56 {offsets = [72, 0], sizes = [16, 384], strides = [1, 1]} : vector<96x384xf32> to vector<16x384xf32>
    %cst_62 = arith.constant dense<0xFF800000> : vector<384xf32>
    %80 = vector.multi_reduction <maximumf>, %79, %cst_62 [0] : vector<16x384xf32> to vector<384xf32>
    %81 = vector.shape_cast %80 : vector<384xf32> to vector<1x384xf32>
    %c3_63 = arith.constant 3 : index
    %c0_64 = arith.constant 0 : index
    %c0_65 = arith.constant 0 : index
    %82 = vector.load %arg4[%c3_63, %c0_64, %c0_65] : memref<4x384x5xf32, #tpu.memory_space<vmem>>, vector<1x384x5xf32>
    %83 = vector.shape_cast %82 : vector<1x384x5xf32> to vector<384x5xf32>
    %cst_66 = arith.constant dense<0.000000e+00> : vector<1x5xf32>
    %84 = tpu.matmul %81, %83, %cst_66 {dimension_numbers = #tpu.dot_dimension_numbers<[1], [0], [0], [1], [0, 0, 1, 1], [], []>} : vector<1x384xf32>, vector<384x5xf32>, vector<1x5xf32> -> vector<1x5xf32>
    %85 = arith.addf %78, %84 : vector<1x5xf32>
    %c0_67 = arith.constant 0 : index
    %c0_68 = arith.constant 0 : index
    %86 = vector.load %arg6[%c0_67, %c0_68] : memref<1x5xf32, #tpu.memory_space<vmem>>, vector<1x5xf32>
    tpu.vector_store %arg6[%c0_67, %c0_68], %85 {strides = array<i32>} : memref<1x5xf32, #tpu.memory_space<vmem>>, vector<1x5xf32>,
    return
  }
  func.func @transform_0(%arg0: i32) -> (i32, i32, i32) {
    %c0_i32 = arith.constant 0 : i32
    %c0_i32_0 = arith.constant 0 : i32
    %c0_i32_1 = arith.constant 0 : i32
    %c0_i32_2 = arith.constant 0 : i32
    return %c0_i32, %c0_i32_0, %c0_i32_1 : i32, i32, i32
  }
  func.func @transform_1(%arg0: i32) -> (i32, i32, i32) {
    %c0_i32 = arith.constant 0 : i32
    %c0_i32_0 = arith.constant 0 : i32
    %c0_i32_1 = arith.constant 0 : i32
    %c0_i32_2 = arith.constant 0 : i32
    return %c0_i32, %c0_i32_0, %c0_i32_1 : i32, i32, i32
  }
  func.func @transform_2(%arg0: i32) -> (i32, i32) {
    %c0_i32 = arith.constant 0 : i32
    %c0_i32_0 = arith.constant 0 : i32
    %c0_i32_1 = arith.constant 0 : i32
    return %c0_i32, %c0_i32_0 : i32, i32
  }
  func.func @transform_3(%arg0: i32) -> (i32, i32, i32) {
    %c0_i32 = arith.constant 0 : i32
    %c0_i32_0 = arith.constant 0 : i32
    %c0_i32_1 = arith.constant 0 : i32
    %c0_i32_2 = arith.constant 0 : i32
    return %c0_i32, %c0_i32_0, %c0_i32_1 : i32, i32, i32
  }
  func.func @transform_4(%arg0: i32) -> (i32, i32) {
    %c0_i32 = arith.constant 0 : i32
    %c0_i32_0 = arith.constant 0 : i32
    %c0_i32_1 = arith.constant 0 : i32
    return %c0_i32, %c0_i32_0 : i32, i32
  }
  func.func @transform_5(%arg0: i32) -> (i32, i32) {
    %c0_i32 = arith.constant 0 : i32
    %c0_i32_0 = arith.constant 0 : i32
    %c0_i32_1 = arith.constant 0 : i32
    return %c0_i32, %c0_i32_0 : i32, i32
  }
}

</mosaic_0001>

<llo_original>
// kernel: textcnnmodel_forward.1
$region0: #{textcnnmodel_forward.1}
  #allocation0 [shape = 'u32[]', space=smem, size = 0x4, offset = 0x4, fixed_abs, tag = 'smem constant byte address 0x4 - core index']
  #allocation1 [shape = 'u32[72,128]{1,0:T(1,128)}', space=vmem, size = 0x9000, scoped, tag = 'internal scratch']
  #allocation2 [shape = 'bf16[96,300]{1,0:T(8,128)(2,1)}', space=vmem, size = 0x12000, scoped, tag = 'scratch operand']
  %s0 = inlined_call_operand.hbm [shape: f32[4,16,300], index: 0, kind: input, shape index: {}]
  %s1 = inlined_call_operand.hbm [shape: bf16[7,300,384], index: 1, kind: input, shape index: {}]
  %s2 = inlined_call_operand.hbm [shape: f32[1,384], index: 2, kind: input, shape index: {}]
  %s3 = inlined_call_operand.vmem [shape: f32[4,384,5], index: 3, kind: input, shape index: {}]
  %s4 = inlined_call_operand.hbm [shape: f32[1,5], index: 4, kind: input, shape index: {}]
  %s5 = inlined_call_operand.hbm [shape: f32[1,5], index: 5, kind: output, shape index: {}]
  %s6 = sld [smem:[#allocation0]]
  $region46: #{textcnnmodel_forward.1} parent=0
    _
  %s8 = ssub.s32 1, %s6
  %s9 = scalar_select 0, %s8, %s6
  $region1: #{textcnnmodel_forward.1} parent=0
    #allocation3 [shape = 'u8[98304]{0}', space=vmem, size = 0x18000, scoped, tag = 'input window, operand 0, single buffered']
    #allocation4 [shape = 's32[1]{0}', space=sflag, size = 0x4, scoped, tag = 'scoped memory for textcnnmodel_forward.1']
    #allocation5 [shape = 's32[1]{0}', space=sflag, size = 0x4, scoped, tag = 'scoped memory for textcnnmodel_forward.1']
    #allocation6 [shape = 'u8[1634304]{0}', space=vmem, size = 0x18f000, scoped, tag = 'input window, operand 1, single buffered']
    #allocation7 [shape = 's32[1]{0}', space=sflag, size = 0x4, scoped, tag = 'scoped memory for textcnnmodel_forward.1']
    #allocation8 [shape = 'u8[1536]{0}', space=vmem, size = 0x800, scoped, tag = 'input window, operand 2, single buffered']
    #allocation9 [shape = 'u8[512]{0}', space=vmem, size = 0x400, scoped, tag = 'input window, operand 4, single buffered']
    #allocation10 [shape = 's32[1]{0}', space=sflag, size = 0x4, scoped, tag = 'scoped memory for textcnnmodel_forward.1']
    #allocation11 [shape = 'u8[512]{0}', space=vmem, size = 0x400, scoped, tag = 'output window, operand 0, single buffered']
    %10 = vsyncpa [#allocation4], 0
    %11 = vsyncpa [#allocation7], 0
    %12 = vsyncpa [#allocation10], 0
    %13 = vsyncpa [#allocation5], 0
    // Predicated region
    $region2: #{textcnnmodel_forward.1} parent=1 // pred_check
      _
    $region3: #{textcnnmodel_forward.1} parent=1 // pred_check_branch
      %15 = sbr.rel (0) target = $region5
    $region4: #{textcnnmodel_forward.1} parent=1 // pred_region
      %17 = vsyncadd [#allocation4], 0
      %s18 = sshll.u32 %s0, 4
      %s19 = int_to_ptr.hbm [resolvable:$true] %s18
      %s20 = sshll.u32 [#allocation3], 4
      %s21 = int_to_ptr.vmem [resolvable:$true] %s20
      %26 = dma.hbm_to_vmem [thread:$0]  %s19, 3072, %s21, [#allocation4], 384, 384, 24
    $region5: #{textcnnmodel_forward.1} parent=1 // pred_fallthru
      _
    // Predicated region
    $region6: #{textcnnmodel_forward.1} parent=1 // pred_check
      _
    $region7: #{textcnnmodel_forward.1} parent=1 // pred_check_branch
      %28 = sbr.rel (0) target = $region9
    $region8: #{textcnnmodel_forward.1} parent=1 // pred_region
      %30 = vsyncadd [#allocation7], 0
      %s31 = sshll.u32 %s1, 4
      %s32 = int_to_ptr.hbm [resolvable:$true] %s31
      %s33 = sshll.u32 [#allocation6], 4
      %s34 = int_to_ptr.vmem [resolvable:$true] %s33
      %39 = dma.hbm_to_vmem [thread:$0]  %s32, 51072, %s34, [#allocation7], 192, 192, 12
    $region9: #{textcnnmodel_forward.1} parent=1 // pred_fallthru
      _
    // Predicated region
    $region10: #{textcnnmodel_forward.1} parent=1 // pred_check
      _
    $region11: #{textcnnmodel_forward.1} parent=1 // pred_check_branch
      %41 = sbr.rel (0) target = $region13
    $region12: #{textcnnmodel_forward.1} parent=1 // pred_region
      %43 = vsyncadd [#allocation7], 0
      %s45 = sshll.u32 %s2, 4
      %s46 = int_to_ptr.hbm [resolvable:$true] %s45
      %s47 = sshll.u32 [#allocation8], 4
      %s48 = int_to_ptr.vmem [resolvable:$true] %s47
      %50 = dma.hbm_to_vmem [thread:$0]  %s46, 48, %s48, [#allocation7]
    $region13: #{textcnnmodel_forward.1} parent=1 // pred_fallthru
      _
    // Predicated region
    $region14: #{textcnnmodel_forward.1} parent=1 // pred_check
      _
    $region15: #{textcnnmodel_forward.1} parent=1 // pred_check_branch
      %52 = sbr.rel (0) target = $region17
    $region16: #{textcnnmodel_forward.1} parent=1 // pred_region
      _
    $region17: #{textcnnmodel_forward.1} parent=1 // pred_fallthru
      _
    // Predicated region
    $region18: #{textcnnmodel_forward.1} parent=1 // pred_check
      _
    $region19: #{textcnnmodel_forward.1} parent=1 // pred_check_branch
      %54 = sbr.rel (0) target = $region21
    $region20: #{textcnnmodel_forward.1} parent=1 // pred_region
      %56 = vsyncadd [#allocation10], 0
      %s58 = sshll.u32 %s4, 4
      %s59 = int_to_ptr.hbm [resolvable:$true] %s58
      %s60 = sshll.u32 [#allocation9], 4
      %s61 = int_to_ptr.vmem [resolvable:$true] %s60
      %63 = dma.hbm_to_vmem [thread:$0]  %s59, 16, %s61, [#allocation10]
    $region21: #{textcnnmodel_forward.1} parent=1 // pred_fallthru
      _
    // Predicated region
    $region22: #{textcnnmodel_forward.1} parent=1 // pred_check
      _
    $region23: #{textcnnmodel_forward.1} parent=1 // pred_check_branch
      %65 = sbr.rel (0) target = $region25
    $region24: #{textcnnmodel_forward.1} parent=1 // pred_region
      %67 = dma.done [#allocation4], 3072
    $region25: #{textcnnmodel_forward.1} parent=1 // pred_fallthru
      _
    // Predicated region
    $region26: #{textcnnmodel_forward.1} parent=1 // pred_check
      _
    $region27: #{textcnnmodel_forward.1} parent=1 // pred_check_branch
      %69 = sbr.rel (0) target = $region29
    $region28: #{textcnnmodel_forward.1} parent=1 // pred_region
      %71 = dma.done [#allocation7], 51072
    $region29: #{textcnnmodel_forward.1} parent=1 // pred_fallthru
      _
    // Predicated region
    $region30: #{textcnnmodel_forward.1} parent=1 // pred_check
      _
    $region31: #{textcnnmodel_forward.1} parent=1 // pred_check_branch
      %73 = sbr.rel (0) target = $region33
    $region32: #{textcnnmodel_forward.1} parent=1 // pred_region
      %75 = dma.done [#allocation7], 48
    $region33: #{textcnnmodel_forward.1} parent=1 // pred_fallthru
      _
    // Predicated region
    $region34: #{textcnnmodel_forward.1} parent=1 // pred_check
      _
    $region35: #{textcnnmodel_forward.1} parent=1 // pred_check_branch
      %77 = sbr.rel (0) target = $region37
    $region36: #{textcnnmodel_forward.1} parent=1 // pred_region
      %79 = dma.done [#allocation10], 16
    $region37: #{textcnnmodel_forward.1} parent=1 // pred_fallthru
      _
    %81 = vst [vmem:[#allocation2] sm:$0xff] 0
    %vm82 = vcmask 355328
    %83 = vst.msk [vmem:[#allocation2 + $0x8] sm:$0xf] %vm82, 0
    %84 = vst [vmem:[#allocation2 + $0xc] sm:$0xff] 0
    %85 = vst.msk [vmem:[#allocation2 + $0x14] sm:$0xf] %vm82, 0
    %86 = vst [vmem:[#allocation2 + $0x18] sm:$0xff] 0
    %87 = vst.msk [vmem:[#allocation2 + $0x20] sm:$0xf] %vm82, 0
    %88 = vst [vmem:[#allocation2 + $0x24] sm:$0xff] 0
    %89 = vst.msk [vmem:[#allocation2 + $0x2c] sm:$0xf] %vm82, 0
    %90 = vst [vmem:[#allocation2 + $0x30] sm:$0xff] 0
    %91 = vst.msk [vmem:[#allocation2 + $0x38] sm:$0xf] %vm82, 0
    %92 = vst [vmem:[#allocation2 + $0x3c] sm:$0xff] 0
    %93 = vst.msk [vmem:[#allocation2 + $0x44] sm:$0xf] %vm82, 0
    %94 = vst [vmem:[#allocation2 + $0x48] sm:$0xff] 0
    %95 = vst.msk [vmem:[#allocation2 + $0x50] sm:$0xf] %vm82, 0
    %96 = vst [vmem:[#allocation2 + $0x54] sm:$0xff] 0
    %97 = vst.msk [vmem:[#allocation2 + $0x5c] sm:$0xf] %vm82, 0
    %98 = vst [vmem:[#allocation2 + $0x60] sm:$0xff] 0
    %99 = vst.msk [vmem:[#allocation2 + $0x68] sm:$0xf] %vm82, 0
    %100 = vst [vmem:[#allocation2 + $0x6c] sm:$0xff] 0
    %101 = vst.msk [vmem:[#allocation2 + $0x74] sm:$0xf] %vm82, 0
    %102 = vst [vmem:[#allocation2 + $0x78] sm:$0xff] 0
    %103 = vst.msk [vmem:[#allocation2 + $0x80] sm:$0xf] %vm82, 0
    %104 = vst [vmem:[#allocation2 + $0x84] sm:$0xff] 0
    %105 = vst.msk [vmem:[#allocation2 + $0x8c] sm:$0xf] %vm82, 0
    %v106 = vld [vmem:[#allocation3] sm:$0xff]
    %v107 = vld [vmem:[#allocation3 + $0x8] sm:$0xff]
    %v108 = vld [vmem:[#allocation3 + $0x10] sm:$0xff]
    %v109 = vld [vmem:[#allocation3 + $0x18] sm:$0xff]
    %v110 = vld [vmem:[#allocation3 + $0x20] sm:$0xff]
    %v111 = vld [vmem:[#allocation3 + $0x28] sm:$0xff]
    %v112 = vpack.c.bf16 %v107, %v106
    %v113 = vpack.c.bf16 %v108, %v108
    %v114 = vpack.c.bf16 %v110, %v109
    %v115 = vpack.c.bf16 %v111, %v111
    %116 = vst [vmem:[#allocation2] sm:$0xff] %v112
    %117 = vst.msk [vmem:[#allocation2 + $0x8] sm:$0xf] %vm82, %v113
    %118 = vst [vmem:[#allocation2 + $0xc] sm:$0xff] %v114
    %119 = vst.msk [vmem:[#allocation2 + $0x14] sm:$0xf] %vm82, %v115
    %s120 = scalar_lea.vmem [#allocation3], 48
    %v121 = vld [vmem:[%s120] sm:$0xff]
    %v122 = vld [vmem:[%s120 + $0x8] sm:$0xff]
    %v123 = vld [vmem:[%s120 + $0x10] sm:$0xff]
    %v124 = vld [vmem:[%s120 + $0x18] sm:$0xff]
    %v125 = vld [vmem:[%s120 + $0x20] sm:$0xff]
    %v126 = vld [vmem:[%s120 + $0x28] sm:$0xff]
    %v127 = vpack.c.bf16 %v122, %v121
    %v128 = vpack.c.bf16 %v123, %v123
    %v129 = vpack.c.bf16 %v125, %v124
    %v130 = vpack.c.bf16 %v126, %v126
    %131 = vst [vmem:[#allocation2 + $0x24] sm:$0xff] %v127
    %132 = vst.msk [vmem:[#allocation2 + $0x2c] sm:$0xf] %vm82, %v128
    %133 = vst [vmem:[#allocation2 + $0x30] sm:$0xff] %v129
    %134 = vst.msk [vmem:[#allocation2 + $0x38] sm:$0xf] %vm82, %v130
    %s135 = scalar_lea.vmem [#allocation3], 96
    %v136 = vld [vmem:[%s135] sm:$0xff]
    %v137 = vld [vmem:[%s135 + $0x8] sm:$0xff]
    %v138 = vld [vmem:[%s135 + $0x10] sm:$0xff]
    %v139 = vld [vmem:[%s135 + $0x18] sm:$0xff]
    %v140 = vld [vmem:[%s135 + $0x20] sm:$0xff]
    %v141 = vld [vmem:[%s135 + $0x28] sm:$0xff]
    %v142 = vpack.c.bf16 %v137, %v136
    %v143 = vpack.c.bf16 %v138, %v138
    %v144 = vpack.c.bf16 %v140, %v139
    %v145 = vpack.c.bf16 %v141, %v141
    %146 = vst [vmem:[#allocation2 + $0x48] sm:$0xff] %v142
    %147 = vst.msk [vmem:[#allocation2 + $0x50] sm:$0xf] %vm82, %v143
    %148 = vst [vmem:[#allocation2 + $0x54] sm:$0xff] %v144
    %149 = vst.msk [vmem:[#allocation2 + $0x5c] sm:$0xf] %vm82, %v145
    %s150 = scalar_lea.vmem [#allocation3], 144
    %v151 = vld [vmem:[%s150] sm:$0xff]
    %v152 = vld [vmem:[%s150 + $0x8] sm:$0xff]
    %v153 = vld [vmem:[%s150 + $0x10] sm:$0xff]
    %v154 = vld [vmem:[%s150 + $0x18] sm:$0xff]
    %v155 = vld [vmem:[%s150 + $0x20] sm:$0xff]
    %v156 = vld [vmem:[%s150 + $0x28] sm:$0xff]
    %v157 = vpack.c.bf16 %v152, %v151
    %v158 = vpack.c.bf16 %v153, %v153
    %v159 = vpack.c.bf16 %v155, %v154
    %v160 = vpack.c.bf16 %v156, %v156
    %161 = vst [vmem:[#allocation2 + $0x6c] sm:$0xff] %v157
    %162 = vst.msk [vmem:[#allocation2 + $0x74] sm:$0xf] %vm82, %v158
    %163 = vst [vmem:[#allocation2 + $0x78] sm:$0xff] %v159
    %164 = vst.msk [vmem:[#allocation2 + $0x80] sm:$0xf] %vm82, %v160
    %v165 = vld [vmem:[#allocation2] sm:$0xff]
    %v166 = vld [vmem:[#allocation2 + $0x8] sm:$0xf]
    %v167 = vld [vmem:[#allocation2 + $0xc] sm:$0xff]
    %v168 = vld [vmem:[#allocation2 + $0x14] sm:$0xf]
    %v169 = vld [vmem:[#allocation2 + $0x18] sm:$0xff]
    %v170 = vld [vmem:[#allocation2 + $0x20] sm:$0xf]
    %v171 = vld [vmem:[#allocation2 + $0x24] sm:$0xff]
    %v172 = vld [vmem:[#allocation2 + $0x2c] sm:$0xf]
    %v173 = vld [vmem:[#allocation2 + $0x30] sm:$0xff]
    %v174 = vld [vmem:[#allocation2 + $0x38] sm:$0xf]
    %v175 = vld [vmem:[#allocation2 + $0x3c] sm:$0xff]
    %v176 = vld [vmem:[#allocation2 + $0x44] sm:$0xf]
    %v177 = vld [vmem:[#allocation2 + $0x48] sm:$0xff]
    %v178 = vld [vmem:[#allocation2 + $0x50] sm:$0xf]
    %v179 = vld [vmem:[#allocation2 + $0x54] sm:$0xff]
    %v180 = vld [vmem:[#allocation2 + $0x5c] sm:$0xf]
    %v181 = vld [vmem:[#allocation2 + $0x60] sm:$0xff]
    %v182 = vld [vmem:[#allocation2 + $0x68] sm:$0xf]
    %v183 = vld [vmem:[#allocation2 + $0x6c] sm:$0xff]
    %v184 = vld [vmem:[#allocation2 + $0x74] sm:$0xf]
    %v185 = vld [vmem:[#allocation2 + $0x78] sm:$0xff]
    %v186 = vld [vmem:[#allocation2 + $0x80] sm:$0xf]
    %v187 = vld [vmem:[#allocation2 + $0x84] sm:$0xff]
    %v188 = vld [vmem:[#allocation2 + $0x8c] sm:$0xf]
    %v189 = vld [vmem:[#allocation6] sm:$0xff]
    %v190 = vld [vmem:[#allocation6 + $0x8] sm:$0xf]
    %v191 = vld [vmem:[#allocation6 + $0xc] sm:$0xff]
    %v192 = vld [vmem:[#allocation6 + $0x14] sm:$0xf]
    %v193 = vld [vmem:[#allocation6 + $0x18] sm:$0xff]
    %v194 = vld [vmem:[#allocation6 + $0x20] sm:$0xf]
    %v195 = vld [vmem:[#allocation6 + $0x24] sm:$0xff]
    %v196 = vld [vmem:[#allocation6 + $0x2c] sm:$0xf]
    %v197 = vld [vmem:[#allocation6 + $0x30] sm:$0xff]
    %v198 = vld [vmem:[#allocation6 + $0x38] sm:$0xf]
    %v199 = vld [vmem:[#allocation6 + $0x3c] sm:$0xff]
    %v200 = vld [vmem:[#allocation6 + $0x44] sm:$0xf]
    %v201 = vld [vmem:[#allocation6 + $0x48] sm:$0xff]
    %v202 = vld [vmem:[#allocation6 + $0x50] sm:$0xf]
    %v203 = vld [vmem:[#allocation6 + $0x54] sm:$0xff]
    %v204 = vld [vmem:[#allocation6 + $0x5c] sm:$0xf]
    %v205 = vld [vmem:[#allocation6 + $0x60] sm:$0xff]
    %v206 = vld [vmem:[#allocation6 + $0x68] sm:$0xf]
    %v207 = vld [vmem:[#allocation6 + $0x6c] sm:$0xff]
    %v208 = vld [vmem:[#allocation6 + $0x74] sm:$0xf]
    %v209 = vld [vmem:[#allocation6 + $0x78] sm:$0xff]
    %v210 = vld [vmem:[#allocation6 + $0x80] sm:$0xf]
    %v211 = vld [vmem:[#allocation6 + $0x84] sm:$0xff]
    %v212 = vld [vmem:[#allocation6 + $0x8c] sm:$0xf]
    %v213 = vld [vmem:[#allocation6 + $0x90] sm:$0xff]
    %v214 = vld [vmem:[#allocation6 + $0x98] sm:$0xf]
    %v215 = vld [vmem:[#allocation6 + $0x9c] sm:$0xff]
    %v216 = vld [vmem:[#allocation6 + $0xa4] sm:$0xf]
    %v217 = vld [vmem:[#allocation6 + $0xa8] sm:$0xff]
    %v218 = vld [vmem:[#allocation6 + $0xb0] sm:$0xf]
    %v219 = vld [vmem:[#allocation6 + $0xb4] sm:$0xff]
    %v220 = vld [vmem:[#allocation6 + $0xbc] sm:$0xf]
    %v221 = vld [vmem:[#allocation6 + $0xc0] sm:$0xff]
    %v222 = vld [vmem:[#allocation6 + $0xc8] sm:$0xf]
    %v223 = vld [vmem:[#allocation6 + $0xcc] sm:$0xff]
    %v224 = vld [vmem:[#allocation6 + $0xd4] sm:$0xf]
    %v225 = vld [vmem:[#allocation6 + $0xd8] sm:$0xff]
    %v226 = vld [vmem:[#allocation6 + $0xe0] sm:$0xf]
    %v227 = vld [vmem:[#allocation6 + $0xe4] sm:$0xff]
    %v228 = vld [vmem:[#allocation6 + $0xec] sm:$0xf]
    %v229 = vld [vmem:[#allocation6 + $0xf0] sm:$0xff]
    %v230 = vld [vmem:[#allocation6 + $0xf8] sm:$0xf]
    %v231 = vld [vmem:[#allocation6 + $0xfc] sm:$0xff]
    %v232 = vld [vmem:[#allocation6 + $0x104] sm:$0xf]
    %v233 = vld [vmem:[#allocation6 + $0x108] sm:$0xff]
    %v234 = vld [vmem:[#allocation6 + $0x110] sm:$0xf]
    %v235 = vld [vmem:[#allocation6 + $0x114] sm:$0xff]
    %v236 = vld [vmem:[#allocation6 + $0x11c] sm:$0xf]
    %v237 = vld [vmem:[#allocation6 + $0x120] sm:$0xff]
    %v238 = vld [vmem:[#allocation6 + $0x128] sm:$0xf]
    %v239 = vld [vmem:[#allocation6 + $0x12c] sm:$0xff]
    %v240 = vld [vmem:[#allocation6 + $0x134] sm:$0xf]
    %v241 = vld [vmem:[#allocation6 + $0x138] sm:$0xff]
    %v242 = vld [vmem:[#allocation6 + $0x140] sm:$0xf]
    %v243 = vld [vmem:[#allocation6 + $0x144] sm:$0xff]
    %v244 = vld [vmem:[#allocation6 + $0x14c] sm:$0xf]
    %v245 = vld [vmem:[#allocation6 + $0x150] sm:$0xff]
    %v246 = vld [vmem:[#allocation6 + $0x158] sm:$0xf]
    %v247 = vld [vmem:[#allocation6 + $0x15c] sm:$0xff]
    %v248 = vld [vmem:[#allocation6 + $0x164] sm:$0xf]
    %v249 = vld [vmem:[#allocation6 + $0x168] sm:$0xff]
    %v250 = vld [vmem:[#allocation6 + $0x170] sm:$0xf]
    %v251 = vld [vmem:[#allocation6 + $0x174] sm:$0xff]
    %v252 = vld [vmem:[#allocation6 + $0x17c] sm:$0xf]
    %v253 = vld [vmem:[#allocation6 + $0x180] sm:$0xff]
    %v254 = vld [vmem:[#allocation6 + $0x188] sm:$0xf]
    %v255 = vld [vmem:[#allocation6 + $0x18c] sm:$0xff]
    %v256 = vld [vmem:[#allocation6 + $0x194] sm:$0xf]
    %v257 = vld [vmem:[#allocation6 + $0x198] sm:$0xff]
    %v258 = vld [vmem:[#allocation6 + $0x1a0] sm:$0xf]
    %v259 = vld [vmem:[#allocation6 + $0x1a4] sm:$0xff]
    %v260 = vld [vmem:[#allocation6 + $0x1ac] sm:$0xf]
    %v261 = vld [vmem:[#allocation6 + $0x1b0] sm:$0xff]
    %v262 = vld [vmem:[#allocation6 + $0x1b8] sm:$0xf]
    %v263 = vld [vmem:[#allocation6 + $0x1bc] sm:$0x33]
    %v264 = vld [vmem:[#allocation6 + $0x1c4] sm:$0x3]
    %v289 = vunpack.c.l.b16 %v165
    %v290 = vunpack.c.h.b16 %v165
    %v291 = vunpack.c.l.b16 %v166
    %v292 = vunpack.c.l.b16 %v167
    %v293 = vunpack.c.h.b16 %v167
    %v294 = vunpack.c.l.b16 %v168
    %v295 = vunpack.c.l.b16 %v169
    %v296 = vunpack.c.h.b16 %v169
    %v297 = vunpack.c.l.b16 %v170
    %v298 = vunpack.c.l.b16 %v171
    %v299 = vunpack.c.h.b16 %v171
    %v300 = vunpack.c.l.b16 %v172
    %v301 = vunpack.c.l.b16 %v173
    %v302 = vunpack.c.h.b16 %v173
    %v303 = vunpack.c.l.b16 %v174
    %v304 = vunpack.c.l.b16 %v175
    %v305 = vunpack.c.h.b16 %v175
    %v306 = vunpack.c.l.b16 %v176
    %v307 = vunpack.c.l.b16 %v177
    %v308 = vunpack.c.h.b16 %v177
    %v309 = vunpack.c.l.b16 %v178
    %v310 = vunpack.c.l.b16 %v179
    %v311 = vunpack.c.h.b16 %v179
    %v312 = vunpack.c.l.b16 %v180
    %v313 = vunpack.c.l.b16 %v181
    %v314 = vunpack.c.h.b16 %v181
    %v315 = vunpack.c.l.b16 %v182
    %v316 = vunpack.c.l.b16 %v183
    %v317 = vunpack.c.h.b16 %v183
    %v318 = vunpack.c.l.b16 %v184
    %v319 = vunpack.c.l.b16 %v185
    %v320 = vunpack.c.h.b16 %v185
    %v321 = vunpack.c.l.b16 %v186
    %v322 = vunpack.c.l.b16 %v187
    %v323 = vunpack.c.h.b16 %v187
    %v324 = vunpack.c.l.b16 %v188
    %v325 = vpack.c.b16 %v292, %v289
    %v326 = vpack.c.b16 %v293, %v290
    %v327 = vpack.c.b16 %v294, %v291
    %v328 = vpack.c.b16 %v298, %v295
    %v329 = vpack.c.b16 %v299, %v296
    %v330 = vpack.c.b16 %v300, %v297
    %v331 = vpack.c.b16 %v304, %v301
    %v332 = vpack.c.b16 %v305, %v302
    %v333 = vpack.c.b16 %v306, %v303
    %v334 = vpack.c.b16 %v310, %v307
    %v335 = vpack.c.b16 %v311, %v308
    %v336 = vpack.c.b16 %v312, %v309
    %v337 = vpack.c.b16 %v316, %v313
    %v338 = vpack.c.b16 %v317, %v314
    %v339 = vpack.c.b16 %v318, %v315
    %v340 = vpack.c.b16 %v322, %v319
    %v341 = vpack.c.b16 %v323, %v320
    %v342 = vpack.c.b16 %v324, %v321
    %v431 = vunpack.c.l.b16 %v189
    %v432 = vunpack.c.h.b16 %v189
    %v433 = vunpack.c.l.b16 %v190
    %v434 = vunpack.c.l.b16 %v191
    %v435 = vunpack.c.h.b16 %v191
    %v436 = vunpack.c.l.b16 %v192
    %v437 = vunpack.c.l.b16 %v193
    %v438 = vunpack.c.h.b16 %v193
    %v439 = vunpack.c.l.b16 %v194
    %v440 = vunpack.c.l.b16 %v195
    %v441 = vunpack.c.h.b16 %v195
    %v442 = vunpack.c.l.b16 %v196
    %v443 = vunpack.c.l.b16 %v197
    %v444 = vunpack.c.h.b16 %v197
    %v445 = vunpack.c.l.b16 %v198
    %v446 = vunpack.c.l.b16 %v199
    %v447 = vunpack.c.h.b16 %v199
    %v448 = vunpack.c.l.b16 %v200
    %v449 = vunpack.c.l.b16 %v201
    %v450 = vunpack.c.h.b16 %v201
    %v451 = vunpack.c.l.b16 %v202
    %v452 = vunpack.c.l.b16 %v203
    %v453 = vunpack.c.h.b16 %v203
    %v454 = vunpack.c.l.b16 %v204
    %v455 = vunpack.c.l.b16 %v205
    %v456 = vunpack.c.h.b16 %v205
    %v457 = vunpack.c.l.b16 %v206
    %v458 = vunpack.c.l.b16 %v207
    %v459 = vunpack.c.h.b16 %v207
    %v460 = vunpack.c.l.b16 %v208
    %v461 = vunpack.c.l.b16 %v209
    %v462 = vunpack.c.h.b16 %v209
    %v463 = vunpack.c.l.b16 %v210
    %v464 = vunpack.c.l.b16 %v211
    %v465 = vunpack.c.h.b16 %v211
    %v466 = vunpack.c.l.b16 %v212
    %v467 = vunpack.c.l.b16 %v213
    %v468 = vunpack.c.h.b16 %v213
    %v469 = vunpack.c.l.b16 %v214
    %v470 = vunpack.c.l.b16 %v215
    %v471 = vunpack.c.h.b16 %v215
    %v472 = vunpack.c.l.b16 %v216
    %v473 = vunpack.c.l.b16 %v217
    %v474 = vunpack.c.h.b16 %v217
    %v475 = vunpack.c.l.b16 %v218
    %v476 = vunpack.c.l.b16 %v219
    %v477 = vunpack.c.h.b16 %v219
    %v478 = vunpack.c.l.b16 %v220
    %v479 = vunpack.c.l.b16 %v221
    %v480 = vunpack.c.h.b16 %v221
    %v481 = vunpack.c.l.b16 %v222
    %v482 = vunpack.c.l.b16 %v223
    %v483 = vunpack.c.h.b16 %v223
    %v484 = vunpack.c.l.b16 %v224
    %v485 = vunpack.c.l.b16 %v225
    %v486 = vunpack.c.h.b16 %v225
    %v487 = vunpack.c.l.b16 %v226
    %v488 = vunpack.c.l.b16 %v227
    %v489 = vunpack.c.h.b16 %v227
    %v490 = vunpack.c.l.b16 %v228
    %v491 = vunpack.c.l.b16 %v229
    %v492 = vunpack.c.h.b16 %v229
    %v493 = vunpack.c.l.b16 %v230
    %v494 = vunpack.c.l.b16 %v231
    %v495 = vunpack.c.h.b16 %v231
    %v496 = vunpack.c.l.b16 %v232
    %v497 = vunpack.c.l.b16 %v233
    %v498 = vunpack.c.h.b16 %v233
    %v499 = vunpack.c.l.b16 %v234
    %v500 = vunpack.c.l.b16 %v235
    %v501 = vunpack.c.h.b16 %v235
    %v502 = vunpack.c.l.b16 %v236
    %v503 = vunpack.c.l.b16 %v237
    %v504 = vunpack.c.h.b16 %v237
    %v505 = vunpack.c.l.b16 %v238
    %v506 = vunpack.c.l.b16 %v239
    %v507 = vunpack.c.h.b16 %v239
    %v508 = vunpack.c.l.b16 %v240
    %v509 = vunpack.c.l.b16 %v241
    %v510 = vunpack.c.h.b16 %v241
    %v511 = vunpack.c.l.b16 %v242
    %v512 = vunpack.c.l.b16 %v243
    %v513 = vunpack.c.h.b16 %v243
    %v514 = vunpack.c.l.b16 %v244
    %v515 = vunpack.c.l.b16 %v245
    %v516 = vunpack.c.h.b16 %v245
    %v517 = vunpack.c.l.b16 %v246
    %v518 = vunpack.c.l.b16 %v247
    %v519 = vunpack.c.h.b16 %v247
    %v520 = vunpack.c.l.b16 %v248
    %v521 = vunpack.c.l.b16 %v249
    %v522 = vunpack.c.h.b16 %v249
    %v523 = vunpack.c.l.b16 %v250
    %v524 = vunpack.c.l.b16 %v251
    %v525 = vunpack.c.h.b16 %v251
    %v526 = vunpack.c.l.b16 %v252
    %v527 = vunpack.c.l.b16 %v253
    %v528 = vunpack.c.h.b16 %v253
    %v529 = vunpack.c.l.b16 %v254
    %v530 = vunpack.c.l.b16 %v255
    %v531 = vunpack.c.h.b16 %v255
    %v532 = vunpack.c.l.b16 %v256
    %v533 = vunpack.c.l.b16 %v257
    %v534 = vunpack.c.h.b16 %v257
    %v535 = vunpack.c.l.b16 %v258
    %v536 = vunpack.c.l.b16 %v259
    %v537 = vunpack.c.h.b16 %v259
    %v538 = vunpack.c.l.b16 %v260
    %v539 = vunpack.c.l.b16 %v261
    %v540 = vunpack.c.h.b16 %v261
    %v541 = vunpack.c.l.b16 %v262
    %v542 = vunpack.c.l.b16 %v263
    %v543 = vunpack.c.h.b16 %v263
    %v544 = vunpack.c.l.b16 %v264
    %v545 = vpack.c.b16 %v434, %v431
    %v546 = vpack.c.b16 %v435, %v432
    %v547 = vpack.c.b16 %v436, %v433
    %v548 = vpack.c.b16 %v440, %v437
    %v549 = vpack.c.b16 %v441, %v438
    %v550 = vpack.c.b16 %v442, %v439
    %v551 = vpack.c.b16 %v446, %v443
    %v552 = vpack.c.b16 %v447, %v444
    %v553 = vpack.c.b16 %v448, %v445
    %v554 = vpack.c.b16 %v452, %v449
    %v555 = vpack.c.b16 %v453, %v450
    %v556 = vpack.c.b16 %v454, %v451
    %v557 = vpack.c.b16 %v458, %v455
    %v558 = vpack.c.b16 %v459, %v456
    %v559 = vpack.c.b16 %v460, %v457
    %v560 = vpack.c.b16 %v464, %v461
    %v561 = vpack.c.b16 %v465, %v462
    %v562 = vpack.c.b16 %v466, %v463
    %v563 = vpack.c.b16 %v470, %v467
    %v564 = vpack.c.b16 %v471, %v468
    %v565 = vpack.c.b16 %v472, %v469
    %v566 = vpack.c.b16 %v476, %v473
    %v567 = vpack.c.b16 %v477, %v474
    %v568 = vpack.c.b16 %v478, %v475
    %v569 = vpack.c.b16 %v482, %v479
    %v570 = vpack.c.b16 %v483, %v480
    %v571 = vpack.c.b16 %v484, %v481
    %v572 = vpack.c.b16 %v488, %v485
    %v573 = vpack.c.b16 %v489, %v486
    %v574 = vpack.c.b16 %v490, %v487
    %v575 = vpack.c.b16 %v494, %v491
    %v576 = vpack.c.b16 %v495, %v492
    %v577 = vpack.c.b16 %v496, %v493
    %v578 = vpack.c.b16 %v500, %v497
    %v579 = vpack.c.b16 %v501, %v498
    %v580 = vpack.c.b16 %v502, %v499
    %v581 = vpack.c.b16 %v506, %v503
    %v582 = vpack.c.b16 %v507, %v504
    %v583 = vpack.c.b16 %v508, %v505
    %v584 = vpack.c.b16 %v512, %v509
    %v585 = vpack.c.b16 %v513, %v510
    %v586 = vpack.c.b16 %v514, %v511
    %v587 = vpack.c.b16 %v518, %v515
    %v588 = vpack.c.b16 %v519, %v516
    %v589 = vpack.c.b16 %v520, %v517
    %v590 = vpack.c.b16 %v524, %v521
    %v591 = vpack.c.b16 %v525, %v522
    %v592 = vpack.c.b16 %v526, %v523
    %v593 = vpack.c.b16 %v530, %v527
    %v594 = vpack.c.b16 %v531, %v528
    %v595 = vpack.c.b16 %v532, %v529
    %v596 = vpack.c.b16 %v536, %v533
    %v597 = vpack.c.b16 %v537, %v534
    %v598 = vpack.c.b16 %v538, %v535
    %v599 = vpack.c.b16 %v542, %v539
    %v600 = vpack.c.b16 %v543, %v540
    %v601 = vpack.c.b16 %v544, %v541
    %vm656 = vcmask 359424
    %v658 = vsel %vm656, %v327, 0
    %v661 = vsel %vm656, %v330, 0
    %v664 = vsel %vm656, %v333, 0
    %v667 = vsel %vm656, %v336, 0
    %v670 = vsel %vm656, %v339, 0
    %v673 = vsel %vm656, %v342, 0
    %vm675 = vcmask 1045504
    %v677 = vsel %vm675, %v599, 0
    %v680 = vsel %vm675, %v600, 0
    %v683 = vsel %vm675, %v601, 0
    %685 = vmatpush.bf16.msra.mxu0 %v566
    %686 = vmatpush.bf16.msra.mxu0 %v563
    %687 = vmatpush.bf16.msra.mxu0 %v560
    %688 = vmatpush.bf16.msra.mxu0 %v557
    %689 = vmatpush.bf16.msra.mxu0 %v554
    %690 = vmatpush.bf16.msra.mxu0 %v551
    %691 = vmatpush.bf16.msra.mxu0 %v548
    %692 = vmatpush.bf16.msra.mxu0 %v545
    %693 = vmatmul.bf16.gmra.mxu0 %v325
    %v694 = vpop.f32.mrf.mxu0
    %v695 = vadd.f32 0.0, %v694
    %v696 = vpop.f32.mrf.mxu0
    %v697 = vadd.f32 0.0, %v696
    %698 = vmatmul.bf16.gmra.mxu0 %v328
    %v699 = vpop.f32.mrf.mxu0
    %v700 = vadd.f32 0.0, %v699
    %v701 = vpop.f32.mrf.mxu0
    %v702 = vadd.f32 0.0, %v701
    %703 = vmatmul.bf16.gmra.mxu0 %v331
    %v704 = vpop.f32.mrf.mxu0
    %v705 = vadd.f32 0.0, %v704
    %v706 = vpop.f32.mrf.mxu0
    %v707 = vadd.f32 0.0, %v706
    %708 = vmatmul.bf16.gmra.mxu0 %v334
    %v709 = vpop.f32.mrf.mxu0
    %v710 = vadd.f32 0.0, %v709
    %v711 = vpop.f32.mrf.mxu0
    %v712 = vadd.f32 0.0, %v711
    %713 = vmatmul.bf16.gmra.mxu0 %v337
    %v714 = vpop.f32.mrf.mxu0
    %v715 = vadd.f32 0.0, %v714
    %v716 = vpop.f32.mrf.mxu0
    %v717 = vadd.f32 0.0, %v716
    %718 = vmatmul.bf16.gmra.mxu0 %v340
    %v719 = vpop.f32.mrf.mxu0
    %v720 = vadd.f32 0.0, %v719
    %v721 = vpop.f32.mrf.mxu0
    %v722 = vadd.f32 0.0, %v721
    %723 = vdwg.mxu0
    %724 = vmatpush.bf16.msra.mxu0 %v590
    %725 = vmatpush.bf16.msra.mxu0 %v587
    %726 = vmatpush.bf16.msra.mxu0 %v584
    %727 = vmatpush.bf16.msra.mxu0 %v581
    %728 = vmatpush.bf16.msra.mxu0 %v578
    %729 = vmatpush.bf16.msra.mxu0 %v575
    %730 = vmatpush.bf16.msra.mxu0 %v572
    %731 = vmatpush.bf16.msra.mxu0 %v569
    %732 = vmatmul.bf16.gmra.mxu0 %v326
    %v733 = vpop.f32.mrf.mxu0
    %v734 = vadd.f32 %v695, %v733
    %v735 = vpop.f32.mrf.mxu0
    %v736 = vadd.f32 %v697, %v735
    %737 = vmatmul.bf16.gmra.mxu0 %v329
    %v738 = vpop.f32.mrf.mxu0
    %v739 = vadd.f32 %v700, %v738
    %v740 = vpop.f32.mrf.mxu0
    %v741 = vadd.f32 %v702, %v740
    %742 = vmatmul.bf16.gmra.mxu0 %v332
    %v743 = vpop.f32.mrf.mxu0
    %v744 = vadd.f32 %v705, %v743
    %v745 = vpop.f32.mrf.mxu0
    %v746 = vadd.f32 %v707, %v745
    %747 = vmatmul.bf16.gmra.mxu0 %v335
    %v748 = vpop.f32.mrf.mxu0
    %v749 = vadd.f32 %v710, %v748
    %v750 = vpop.f32.mrf.mxu0
    %v751 = vadd.f32 %v712, %v750
    %752 = vmatmul.bf16.gmra.mxu0 %v338
    %v753 = vpop.f32.mrf.mxu0
    %v754 = vadd.f32 %v715, %v753
    %v755 = vpop.f32.mrf.mxu0
    %v756 = vadd.f32 %v717, %v755
    %757 = vmatmul.bf16.gmra.mxu0 %v341
    %v758 = vpop.f32.mrf.mxu0
    %v759 = vadd.f32 %v720, %v758
    %v760 = vpop.f32.mrf.mxu0
    %v761 = vadd.f32 %v722, %v760
    %762 = vdwg.mxu0
    %763 = vmatpush.bf16.msra.mxu0 0
    %764 = vmatpush.bf16.msra.mxu0 0
    %765 = vmatpush.bf16.msra.mxu0 0
    %766 = vmatpush.bf16.msra.mxu0 0
    %767 = vmatpush.bf16.msra.mxu0 0
    %768 = vmatpush.bf16.msra.mxu0 %v677
    %769 = vmatpush.bf16.msra.mxu0 %v596
    %770 = vmatpush.bf16.msra.mxu0 %v593
    %771 = vmatmul.bf16.gmra.mxu0 %v658
    %v772 = vpop.f32.mrf.mxu0
    %v773 = vadd.f32 %v734, %v772
    %v774 = vpop.f32.mrf.mxu0
    %v775 = vadd.f32 %v736, %v774
    %776 = vmatmul.bf16.gmra.mxu0 %v661
    %v777 = vpop.f32.mrf.mxu0
    %v778 = vadd.f32 %v739, %v777
    %v779 = vpop.f32.mrf.mxu0
    %v780 = vadd.f32 %v741, %v779
    %781 = vmatmul.bf16.gmra.mxu0 %v664
    %v782 = vpop.f32.mrf.mxu0
    %v783 = vadd.f32 %v744, %v782
    %v784 = vpop.f32.mrf.mxu0
    %v785 = vadd.f32 %v746, %v784
    %786 = vmatmul.bf16.gmra.mxu0 %v667
    %v787 = vpop.f32.mrf.mxu0
    %v788 = vadd.f32 %v749, %v787
    %v789 = vpop.f32.mrf.mxu0
    %v790 = vadd.f32 %v751, %v789
    %791 = vmatmul.bf16.gmra.mxu0 %v670
    %v792 = vpop.f32.mrf.mxu0
    %v793 = vadd.f32 %v754, %v792
    %v794 = vpop.f32.mrf.mxu0
    %v795 = vadd.f32 %v756, %v794
    %796 = vmatmul.bf16.gmra.mxu0 %v673
    %v797 = vpop.f32.mrf.mxu0
    %v798 = vadd.f32 %v759, %v797
    %v799 = vpop.f32.mrf.mxu0
    %v800 = vadd.f32 %v761, %v799
    %801 = vdwg.mxu0
    %802 = vmatpush.bf16.msra.mxu0 %v567
    %803 = vmatpush.bf16.msra.mxu0 %v564
    %804 = vmatpush.bf16.msra.mxu0 %v561
    %805 = vmatpush.bf16.msra.mxu0 %v558
    %806 = vmatpush.bf16.msra.mxu0 %v555
    %807 = vmatpush.bf16.msra.mxu0 %v552
    %808 = vmatpush.bf16.msra.mxu0 %v549
    %809 = vmatpush.bf16.msra.mxu0 %v546
    %810 = vmatmul.bf16.gmra.mxu0 %v325
    %v811 = vpop.f32.mrf.mxu0
    %v812 = vadd.f32 0.0, %v811
    %v813 = vpop.f32.mrf.mxu0
    %v814 = vadd.f32 0.0, %v813
    %815 = vmatmul.bf16.gmra.mxu0 %v328
    %v816 = vpop.f32.mrf.mxu0
    %v817 = vadd.f32 0.0, %v816
    %v818 = vpop.f32.mrf.mxu0
    %v819 = vadd.f32 0.0, %v818
    %820 = vmatmul.bf16.gmra.mxu0 %v331
    %v821 = vpop.f32.mrf.mxu0
    %v822 = vadd.f32 0.0, %v821
    %v823 = vpop.f32.mrf.mxu0
    %v824 = vadd.f32 0.0, %v823
    %825 = vmatmul.bf16.gmra.mxu0 %v334
    %v826 = vpop.f32.mrf.mxu0
    %v827 = vadd.f32 0.0, %v826
    %v828 = vpop.f32.mrf.mxu0
    %v829 = vadd.f32 0.0, %v828
    %830 = vmatmul.bf16.gmra.mxu0 %v337
    %v831 = vpop.f32.mrf.mxu0
    %v832 = vadd.f32 0.0, %v831
    %v833 = vpop.f32.mrf.mxu0
    %v834 = vadd.f32 0.0, %v833
    %835 = vmatmul.bf16.gmra.mxu0 %v340
    %v836 = vpop.f32.mrf.mxu0
    %v837 = vadd.f32 0.0, %v836
    %v838 = vpop.f32.mrf.mxu0
    %v839 = vadd.f32 0.0, %v838
    %840 = vdwg.mxu0
    %841 = vmatpush.bf16.msra.mxu0 %v591
    %842 = vmatpush.bf16.msra.mxu0 %v588
    %843 = vmatpush.bf16.msra.mxu0 %v585
    %844 = vmatpush.bf16.msra.mxu0 %v582
    %845 = vmatpush.bf16.msra.mxu0 %v579
    %846 = vmatpush.bf16.msra.mxu0 %v576
    %847 = vmatpush.bf16.msra.mxu0 %v573
    %848 = vmatpush.bf16.msra.mxu0 %v570
    %849 = vmatmul.bf16.gmra.mxu0 %v326
    %v850 = vpop.f32.mrf.mxu0
    %v851 = vadd.f32 %v812, %v850
    %v852 = vpop.f32.mrf.mxu0
    %v853 = vadd.f32 %v814, %v852
    %854 = vmatmul.bf16.gmra.mxu0 %v329
    %v855 = vpop.f32.mrf.mxu0
    %v856 = vadd.f32 %v817, %v855
    %v857 = vpop.f32.mrf.mxu0
    %v858 = vadd.f32 %v819, %v857
    %859 = vmatmul.bf16.gmra.mxu0 %v332
    %v860 = vpop.f32.mrf.mxu0
    %v861 = vadd.f32 %v822, %v860
    %v862 = vpop.f32.mrf.mxu0
    %v863 = vadd.f32 %v824, %v862
    %864 = vmatmul.bf16.gmra.mxu0 %v335
    %v865 = vpop.f32.mrf.mxu0
    %v866 = vadd.f32 %v827, %v865
    %v867 = vpop.f32.mrf.mxu0
    %v868 = vadd.f32 %v829, %v867
    %869 = vmatmul.bf16.gmra.mxu0 %v338
    %v870 = vpop.f32.mrf.mxu0
    %v871 = vadd.f32 %v832, %v870
    %v872 = vpop.f32.mrf.mxu0
    %v873 = vadd.f32 %v834, %v872
    %874 = vmatmul.bf16.gmra.mxu0 %v341
    %v875 = vpop.f32.mrf.mxu0
    %v876 = vadd.f32 %v837, %v875
    %v877 = vpop.f32.mrf.mxu0
    %v878 = vadd.f32 %v839, %v877
    %879 = vdwg.mxu0
    %880 = vmatpush.bf16.msra.mxu0 0
    %881 = vmatpush.bf16.msra.mxu0 0
    %882 = vmatpush.bf16.msra.mxu0 0
    %883 = vmatpush.bf16.msra.mxu0 0
    %884 = vmatpush.bf16.msra.mxu0 0
    %885 = vmatpush.bf16.msra.mxu0 %v680
    %886 = vmatpush.bf16.msra.mxu0 %v597
    %887 = vmatpush.bf16.msra.mxu0 %v594
    %888 = vmatmul.bf16.gmra.mxu0 %v658
    %v889 = vpop.f32.mrf.mxu0
    %v890 = vadd.f32 %v851, %v889
    %v891 = vpop.f32.mrf.mxu0
    %v892 = vadd.f32 %v853, %v891
    %893 = vmatmul.bf16.gmra.mxu0 %v661
    %v894 = vpop.f32.mrf.mxu0
    %v895 = vadd.f32 %v856, %v894
    %v896 = vpop.f32.mrf.mxu0
    %v897 = vadd.f32 %v858, %v896
    %898 = vmatmul.bf16.gmra.mxu0 %v664
    %v899 = vpop.f32.mrf.mxu0
    %v900 = vadd.f32 %v861, %v899
    %v901 = vpop.f32.mrf.mxu0
    %v902 = vadd.f32 %v863, %v901
    %903 = vmatmul.bf16.gmra.mxu0 %v667
    %v904 = vpop.f32.mrf.mxu0
    %v905 = vadd.f32 %v866, %v904
    %v906 = vpop.f32.mrf.mxu0
    %v907 = vadd.f32 %v868, %v906
    %908 = vmatmul.bf16.gmra.mxu0 %v670
    %v909 = vpop.f32.mrf.mxu0
    %v910 = vadd.f32 %v871, %v909
    %v911 = vpop.f32.mrf.mxu0
    %v912 = vadd.f32 %v873, %v911
    %913 = vmatmul.bf16.gmra.mxu0 %v673
    %v914 = vpop.f32.mrf.mxu0
    %v915 = vadd.f32 %v876, %v914
    %v916 = vpop.f32.mrf.mxu0
    %v917 = vadd.f32 %v878, %v916
    %918 = vdwg.mxu0
    %919 = vmatpush.bf16.msra.mxu0 %v568
    %920 = vmatpush.bf16.msra.mxu0 %v565
    %921 = vmatpush.bf16.msra.mxu0 %v562
    %922 = vmatpush.bf16.msra.mxu0 %v559
    %923 = vmatpush.bf16.msra.mxu0 %v556
    %924 = vmatpush.bf16.msra.mxu0 %v553
    %925 = vmatpush.bf16.msra.mxu0 %v550
    %926 = vmatpush.bf16.msra.mxu0 %v547
    %927 = vmatmul.bf16.gmra.mxu0 %v325
    %v928 = vpop.f32.mrf.mxu0
    %v929 = vadd.f32 0.0, %v928
    %v930 = vpop.f32.mrf.mxu0
    %v931 = vadd.f32 0.0, %v930
    %932 = vmatmul.bf16.gmra.mxu0 %v328
    %v933 = vpop.f32.mrf.mxu0
    %v934 = vadd.f32 0.0, %v933
    %v935 = vpop.f32.mrf.mxu0
    %v936 = vadd.f32 0.0, %v935
    %937 = vmatmul.bf16.gmra.mxu0 %v331
    %v938 = vpop.f32.mrf.mxu0
    %v939 = vadd.f32 0.0, %v938
    %v940 = vpop.f32.mrf.mxu0
    %v941 = vadd.f32 0.0, %v940
    %942 = vmatmul.bf16.gmra.mxu0 %v334
    %v943 = vpop.f32.mrf.mxu0
    %v944 = vadd.f32 0.0, %v943
    %v945 = vpop.f32.mrf.mxu0
    %v946 = vadd.f32 0.0, %v945
    %947 = vmatmul.bf16.gmra.mxu0 %v337
    %v948 = vpop.f32.mrf.mxu0
    %v949 = vadd.f32 0.0, %v948
    %v950 = vpop.f32.mrf.mxu0
    %v951 = vadd.f32 0.0, %v950
    %952 = vmatmul.bf16.gmra.mxu0 %v340
    %v953 = vpop.f32.mrf.mxu0
    %v954 = vadd.f32 0.0, %v953
    %v955 = vpop.f32.mrf.mxu0
    %v956 = vadd.f32 0.0, %v955
    %957 = vdwg.mxu0
    %958 = vmatpush.bf16.msra.mxu0 %v592
    %959 = vmatpush.bf16.msra.mxu0 %v589
    %960 = vmatpush.bf16.msra.mxu0 %v586
    %961 = vmatpush.bf16.msra.mxu0 %v583
    %962 = vmatpush.bf16.msra.mxu0 %v580
    %963 = vmatpush.bf16.msra.mxu0 %v577
    %964 = vmatpush.bf16.msra.mxu0 %v574
    %965 = vmatpush.bf16.msra.mxu0 %v571
    %966 = vmatmul.bf16.gmra.mxu0 %v326
    %v967 = vpop.f32.mrf.mxu0
    %v968 = vadd.f32 %v929, %v967
    %v969 = vpop.f32.mrf.mxu0
    %v970 = vadd.f32 %v931, %v969
    %971 = vmatmul.bf16.gmra.mxu0 %v329
    %v972 = vpop.f32.mrf.mxu0
    %v973 = vadd.f32 %v934, %v972
    %v974 = vpop.f32.mrf.mxu0
    %v975 = vadd.f32 %v936, %v974
    %976 = vmatmul.bf16.gmra.mxu0 %v332
    %v977 = vpop.f32.mrf.mxu0
    %v978 = vadd.f32 %v939, %v977
    %v979 = vpop.f32.mrf.mxu0
    %v980 = vadd.f32 %v941, %v979
    %981 = vmatmul.bf16.gmra.mxu0 %v335
    %v982 = vpop.f32.mrf.mxu0
    %v983 = vadd.f32 %v944, %v982
    %v984 = vpop.f32.mrf.mxu0
    %v985 = vadd.f32 %v946, %v984
    %986 = vmatmul.bf16.gmra.mxu0 %v338
    %v987 = vpop.f32.mrf.mxu0
    %v988 = vadd.f32 %v949, %v987
    %v989 = vpop.f32.mrf.mxu0
    %v990 = vadd.f32 %v951, %v989
    %991 = vmatmul.bf16.gmra.mxu0 %v341
    %v992 = vpop.f32.mrf.mxu0
    %v993 = vadd.f32 %v954, %v992
    %v994 = vpop.f32.mrf.mxu0
    %v995 = vadd.f32 %v956, %v994
    %996 = vdwg.mxu0
    %997 = vmatpush.bf16.msra.mxu0 0
    %998 = vmatpush.bf16.msra.mxu0 0
    %999 = vmatpush.bf16.msra.mxu0 0
    %1000 = vmatpush.bf16.msra.mxu0 0
    %1001 = vmatpush.bf16.msra.mxu0 0
    %1002 = vmatpush.bf16.msra.mxu0 %v683
    %1003 = vmatpush.bf16.msra.mxu0 %v598
    %1004 = vmatpush.bf16.msra.mxu0 %v595
    %1005 = vmatmul.bf16.gmra.mxu0 %v658
    %v1006 = vpop.f32.mrf.mxu0
    %v1007 = vadd.f32 %v968, %v1006
    %v1008 = vpop.f32.mrf.mxu0
    %v1009 = vadd.f32 %v970, %v1008
    %1010 = vmatmul.bf16.gmra.mxu0 %v661
    %v1011 = vpop.f32.mrf.mxu0
    %v1012 = vadd.f32 %v973, %v1011
    %v1013 = vpop.f32.mrf.mxu0
    %v1014 = vadd.f32 %v975, %v1013
    %1015 = vmatmul.bf16.gmra.mxu0 %v664
    %v1016 = vpop.f32.mrf.mxu0
    %v1017 = vadd.f32 %v978, %v1016
    %v1018 = vpop.f32.mrf.mxu0
    %v1019 = vadd.f32 %v980, %v1018
    %1020 = vmatmul.bf16.gmra.mxu0 %v667
    %v1021 = vpop.f32.mrf.mxu0
    %v1022 = vadd.f32 %v983, %v1021
    %v1023 = vpop.f32.mrf.mxu0
    %v1024 = vadd.f32 %v985, %v1023
    %1025 = vmatmul.bf16.gmra.mxu0 %v670
    %v1026 = vpop.f32.mrf.mxu0
    %v1027 = vadd.f32 %v988, %v1026
    %v1028 = vpop.f32.mrf.mxu0
    %v1029 = vadd.f32 %v990, %v1028
    %1030 = vmatmul.bf16.gmra.mxu0 %v673
    %v1031 = vpop.f32.mrf.mxu0
    %v1032 = vadd.f32 %v993, %v1031
    %v1033 = vpop.f32.mrf.mxu0
    %v1034 = vadd.f32 %v995, %v1033
    %1035 = vdwg.mxu0
    %v1036 = vrot.slane %v773, 5
    %v1037 = vrot.slane %v890, 5
    %v1038 = vrot.slane %v1007, 5
    %v1039 = vrot.slane %v775, 5
    %v1040 = vrot.slane %v892, 5
    %v1041 = vrot.slane %v1009, 5
    %v1042 = vrot.slane %v778, 5
    %v1043 = vrot.slane %v895, 5
    %v1044 = vrot.slane %v1012, 5
    %v1045 = vrot.slane %v780, 5
    %v1046 = vrot.slane %v897, 5
    %v1047 = vrot.slane %v1014, 5
    %v1048 = vrot.slane %v783, 5
    %v1049 = vrot.slane %v900, 5
    %v1050 = vrot.slane %v1017, 5
    %v1051 = vrot.slane %v785, 5
    %v1052 = vrot.slane %v902, 5
    %v1053 = vrot.slane %v1019, 5
    %v1054 = vrot.slane %v788, 5
    %v1055 = vrot.slane %v905, 5
    %v1056 = vrot.slane %v1022, 5
    %v1057 = vrot.slane %v790, 5
    %v1058 = vrot.slane %v907, 5
    %v1059 = vrot.slane %v1024, 5
    %v1060 = vrot.slane %v793, 5
    %v1061 = vrot.slane %v910, 5
    %v1062 = vrot.slane %v1027, 5
    %v1063 = vrot.slane %v795, 5
    %v1064 = vrot.slane %v912, 5
    %v1065 = vrot.slane %v1029, 5
    %v1066 = vrot.slane %v798, 5
    %v1067 = vrot.slane %v915, 5
    %v1068 = vrot.slane %v1032, 5
    %v1069 = vrot.slane %v800, 5
    %v1070 = vrot.slane %v917, 5
    %v1071 = vrot.slane %v1034, 5
    %v1072 = vlaneseq
    %v1073 = vshrl.u32 %v1072, 7
    %vm1074 = vcmp.lt.s32.totalorder %v1073, 3
    %v1075 = vsel %vm1074, %v1063, %v1066
    %v1076 = vsel %vm1074, %v1064, %v1067
    %v1077 = vsel %vm1074, %v1065, %v1068
    %v1078 = vsel %vm1074, %v1060, %v1063
    %v1079 = vsel %vm1074, %v1061, %v1064
    %v1080 = vsel %vm1074, %v1062, %v1065
    %v1081 = vsel %vm1074, %v1054, %v1057
    %v1082 = vsel %vm1074, %v1055, %v1058
    %v1083 = vsel %vm1074, %v1056, %v1059
    %v1084 = vsel %vm1074, %v1051, %v1054
    %v1085 = vsel %vm1074, %v1052, %v1055
    %v1086 = vsel %vm1074, %v1053, %v1056
    %v1087 = vsel %vm1074, %v1045, %v1048
    %v1088 = vsel %vm1074, %v1046, %v1049
    %v1089 = vsel %vm1074, %v1047, %v1050
    %v1090 = vsel %vm1074, %v1042, %v1045
    %v1091 = vsel %vm1074, %v1043, %v1046
    %v1092 = vsel %vm1074, %v1044, %v1047
    %v1093 = vsel %vm1074, %v1036, %v1039
    %v1094 = vsel %vm1074, %v1037, %v1040
    %v1095 = vsel %vm1074, %v1038, %v1041
    %v1096 = vsel %vm1074, %v1069, %v1036
    %v1097 = vsel %vm1074, %v1070, %v1037
    %v1098 = vsel %vm1074, %v1071, %v1038
    %s1099 = scalar_lea.vmem [#allocation6], 456
    %v1100 = vld [vmem:[%s1099] sm:$0xff]
    %v1101 = vld [vmem:[%s1099 + $0x8] sm:$0xf]
    %v1102 = vld [vmem:[%s1099 + $0xc] sm:$0xff]
    %v1103 = vld [vmem:[%s1099 + $0x14] sm:$0xf]
    %v1104 = vld [vmem:[%s1099 + $0x18] sm:$0xff]
    %v1105 = vld [vmem:[%s1099 + $0x20] sm:$0xf]
    %v1106 = vld [vmem:[%s1099 + $0x24] sm:$0xff]
    %v1107 = vld [vmem:[%s1099 + $0x2c] sm:$0xf]
    %v1108 = vld [vmem:[%s1099 + $0x30] sm:$0xff]
    %v1109 = vld [vmem:[%s1099 + $0x38] sm:$0xf]
    %v1110 = vld [vmem:[%s1099 + $0x3c] sm:$0xff]
    %v1111 = vld [vmem:[%s1099 + $0x44] sm:$0xf]
    %v1112 = vld [vmem:[%s1099 + $0x48] sm:$0xff]
    %v1113 = vld [vmem:[%s1099 + $0x50] sm:$0xf]
    %v1114 = vld [vmem:[%s1099 + $0x54] sm:$0xff]
    %v1115 = vld [vmem:[%s1099 + $0x5c] sm:$0xf]
    %v1116 = vld [vmem:[%s1099 + $0x60] sm:$0xff]
    %v1117 = vld [vmem:[%s1099 + $0x68] sm:$0xf]
    %v1118 = vld [vmem:[%s1099 + $0x6c] sm:$0xff]
    %v1119 = vld [vmem:[%s1099 + $0x74] sm:$0xf]
    %v1120 = vld [vmem:[%s1099 + $0x78] sm:$0xff]
    %v1121 = vld [vmem:[%s1099 + $0x80] sm:$0xf]
    %v1122 = vld [vmem:[%s1099 + $0x84] sm:$0xff]
    %v1123 = vld [vmem:[%s1099 + $0x8c] sm:$0xf]
    %v1124 = vld [vmem:[%s1099 + $0x90] sm:$0xff]
    %v1125 = vld [vmem:[%s1099 + $0x98] sm:$0xf]
    %v1126 = vld [vmem:[%s1099 + $0x9c] sm:$0xff]
    %v1127 = vld [vmem:[%s1099 + $0xa4] sm:$0xf]
    %v1128 = vld [vmem:[%s1099 + $0xa8] sm:$0xff]
    %v1129 = vld [vmem:[%s1099 + $0xb0] sm:$0xf]
    %v1130 = vld [vmem:[%s1099 + $0xb4] sm:$0xff]
    %v1131 = vld [vmem:[%s1099 + $0xbc] sm:$0xf]
    %v1132 = vld [vmem:[%s1099 + $0xc0] sm:$0xff]
    %v1133 = vld [vmem:[%s1099 + $0xc8] sm:$0xf]
    %v1134 = vld [vmem:[%s1099 + $0xcc] sm:$0xff]
    %v1135 = vld [vmem:[%s1099 + $0xd4] sm:$0xf]
    %v1136 = vld [vmem:[%s1099 + $0xd8] sm:$0xff]
    %v1137 = vld [vmem:[%s1099 + $0xe0] sm:$0xf]
    %v1138 = vld [vmem:[%s1099 + $0xe4] sm:$0xff]
    %v1139 = vld [vmem:[%s1099 + $0xec] sm:$0xf]
    %v1140 = vld [vmem:[%s1099 + $0xf0] sm:$0xff]
    %v1141 = vld [vmem:[%s1099 + $0xf8] sm:$0xf]
    %v1142 = vld [vmem:[%s1099 + $0xfc] sm:$0xff]
    %v1143 = vld [vmem:[%s1099 + $0x104] sm:$0xf]
    %v1144 = vld [vmem:[%s1099 + $0x108] sm:$0xff]
    %v1145 = vld [vmem:[%s1099 + $0x110] sm:$0xf]
    %v1146 = vld [vmem:[%s1099 + $0x114] sm:$0xff]
    %v1147 = vld [vmem:[%s1099 + $0x11c] sm:$0xf]
    %v1148 = vld [vmem:[%s1099 + $0x120] sm:$0xff]
    %v1149 = vld [vmem:[%s1099 + $0x128] sm:$0xf]
    %v1150 = vld [vmem:[%s1099 + $0x12c] sm:$0xff]
    %v1151 = vld [vmem:[%s1099 + $0x134] sm:$0xf]
    %v1152 = vld [vmem:[%s1099 + $0x138] sm:$0xff]
    %v1153 = vld [vmem:[%s1099 + $0x140] sm:$0xf]
    %v1154 = vld [vmem:[%s1099 + $0x144] sm:$0xff]
    %v1155 = vld [vmem:[%s1099 + $0x14c] sm:$0xf]
    %v1156 = vld [vmem:[%s1099 + $0x150] sm:$0xff]
    %v1157 = vld [vmem:[%s1099 + $0x158] sm:$0xf]
    %v1158 = vld [vmem:[%s1099 + $0x15c] sm:$0xff]
    %v1159 = vld [vmem:[%s1099 + $0x164] sm:$0xf]
    %v1160 = vld [vmem:[%s1099 + $0x168] sm:$0xff]
    %v1161 = vld [vmem:[%s1099 + $0x170] sm:$0xf]
    %v1162 = vld [vmem:[%s1099 + $0x174] sm:$0xff]
    %v1163 = vld [vmem:[%s1099 + $0x17c] sm:$0xf]
    %v1164 = vld [vmem:[%s1099 + $0x180] sm:$0xff]
    %v1165 = vld [vmem:[%s1099 + $0x188] sm:$0xf]
    %v1166 = vld [vmem:[%s1099 + $0x18c] sm:$0xff]
    %v1167 = vld [vmem:[%s1099 + $0x194] sm:$0xf]
    %v1168 = vld [vmem:[%s1099 + $0x198] sm:$0xff]
    %v1169 = vld [vmem:[%s1099 + $0x1a0] sm:$0xf]
    %v1170 = vld [vmem:[%s1099 + $0x1a4] sm:$0xff]
    %v1171 = vld [vmem:[%s1099 + $0x1ac] sm:$0xf]
    %v1172 = vld [vmem:[%s1099 + $0x1b0] sm:$0xff]
    %v1173 = vld [vmem:[%s1099 + $0x1b8] sm:$0xf]
    %v1174 = vld [vmem:[%s1099 + $0x1bc] sm:$0x33]
    %v1175 = vld [vmem:[%s1099 + $0x1c4] sm:$0x3]
    %v1252 = vunpack.c.l.b16 %v1100
    %v1253 = vunpack.c.h.b16 %v1100
    %v1254 = vunpack.c.l.b16 %v1101
    %v1255 = vunpack.c.l.b16 %v1102
    %v1256 = vunpack.c.h.b16 %v1102
    %v1257 = vunpack.c.l.b16 %v1103
    %v1258 = vunpack.c.l.b16 %v1104
    %v1259 = vunpack.c.h.b16 %v1104
    %v1260 = vunpack.c.l.b16 %v1105
    %v1261 = vunpack.c.l.b16 %v1106
    %v1262 = vunpack.c.h.b16 %v1106
    %v1263 = vunpack.c.l.b16 %v1107
    %v1264 = vunpack.c.l.b16 %v1108
    %v1265 = vunpack.c.h.b16 %v1108
    %v1266 = vunpack.c.l.b16 %v1109
    %v1267 = vunpack.c.l.b16 %v1110
    %v1268 = vunpack.c.h.b16 %v1110
    %v1269 = vunpack.c.l.b16 %v1111
    %v1270 = vunpack.c.l.b16 %v1112
    %v1271 = vunpack.c.h.b16 %v1112
    %v1272 = vunpack.c.l.b16 %v1113
    %v1273 = vunpack.c.l.b16 %v1114
    %v1274 = vunpack.c.h.b16 %v1114
    %v1275 = vunpack.c.l.b16 %v1115
    %v1276 = vunpack.c.l.b16 %v1116
    %v1277 = vunpack.c.h.b16 %v1116
    %v1278 = vunpack.c.l.b16 %v1117
    %v1279 = vunpack.c.l.b16 %v1118
    %v1280 = vunpack.c.h.b16 %v1118
    %v1281 = vunpack.c.l.b16 %v1119
    %v1282 = vunpack.c.l.b16 %v1120
    %v1283 = vunpack.c.h.b16 %v1120
    %v1284 = vunpack.c.l.b16 %v1121
    %v1285 = vunpack.c.l.b16 %v1122
    %v1286 = vunpack.c.h.b16 %v1122
    %v1287 = vunpack.c.l.b16 %v1123
    %v1288 = vunpack.c.l.b16 %v1124
    %v1289 = vunpack.c.h.b16 %v1124
    %v1290 = vunpack.c.l.b16 %v1125
    %v1291 = vunpack.c.l.b16 %v1126
    %v1292 = vunpack.c.h.b16 %v1126
    %v1293 = vunpack.c.l.b16 %v1127
    %v1294 = vunpack.c.l.b16 %v1128
    %v1295 = vunpack.c.h.b16 %v1128
    %v1296 = vunpack.c.l.b16 %v1129
    %v1297 = vunpack.c.l.b16 %v1130
    %v1298 = vunpack.c.h.b16 %v1130
    %v1299 = vunpack.c.l.b16 %v1131
    %v1300 = vunpack.c.l.b16 %v1132
    %v1301 = vunpack.c.h.b16 %v1132
    %v1302 = vunpack.c.l.b16 %v1133
    %v1303 = vunpack.c.l.b16 %v1134
    %v1304 = vunpack.c.h.b16 %v1134
    %v1305 = vunpack.c.l.b16 %v1135
    %v1306 = vunpack.c.l.b16 %v1136
    %v1307 = vunpack.c.h.b16 %v1136
    %v1308 = vunpack.c.l.b16 %v1137
    %v1309 = vunpack.c.l.b16 %v1138
    %v1310 = vunpack.c.h.b16 %v1138
    %v1311 = vunpack.c.l.b16 %v1139
    %v1312 = vunpack.c.l.b16 %v1140
    %v1313 = vunpack.c.h.b16 %v1140
    %v1314 = vunpack.c.l.b16 %v1141
    %v1315 = vunpack.c.l.b16 %v1142
    %v1316 = vunpack.c.h.b16 %v1142
    %v1317 = vunpack.c.l.b16 %v1143
    %v1318 = vunpack.c.l.b16 %v1144
    %v1319 = vunpack.c.h.b16 %v1144
    %v1320 = vunpack.c.l.b16 %v1145
    %v1321 = vunpack.c.l.b16 %v1146
    %v1322 = vunpack.c.h.b16 %v1146
    %v1323 = vunpack.c.l.b16 %v1147
    %v1324 = vunpack.c.l.b16 %v1148
    %v1325 = vunpack.c.h.b16 %v1148
    %v1326 = vunpack.c.l.b16 %v1149
    %v1327 = vunpack.c.l.b16 %v1150
    %v1328 = vunpack.c.h.b16 %v1150
    %v1329 = vunpack.c.l.b16 %v1151
    %v1330 = vunpack.c.l.b16 %v1152
    %v1331 = vunpack.c.h.b16 %v1152
    %v1332 = vunpack.c.l.b16 %v1153
    %v1333 = vunpack.c.l.b16 %v1154
    %v1334 = vunpack.c.h.b16 %v1154
    %v1335 = vunpack.c.l.b16 %v1155
    %v1336 = vunpack.c.l.b16 %v1156
    %v1337 = vunpack.c.h.b16 %v1156
    %v1338 = vunpack.c.l.b16 %v1157
    %v1339 = vunpack.c.l.b16 %v1158
    %v1340 = vunpack.c.h.b16 %v1158
    %v1341 = vunpack.c.l.b16 %v1159
    %v1342 = vunpack.c.l.b16 %v1160
    %v1343 = vunpack.c.h.b16 %v1160
    %v1344 = vunpack.c.l.b16 %v1161
    %v1345 = vunpack.c.l.b16 %v1162
    %v1346 = vunpack.c.h.b16 %v1162
    %v1347 = vunpack.c.l.b16 %v1163
    %v1348 = vunpack.c.l.b16 %v1164
    %v1349 = vunpack.c.h.b16 %v1164
    %v1350 = vunpack.c.l.b16 %v1165
    %v1351 = vunpack.c.l.b16 %v1166
    %v1352 = vunpack.c.h.b16 %v1166
    %v1353 = vunpack.c.l.b16 %v1167
    %v1354 = vunpack.c.l.b16 %v1168
    %v1355 = vunpack.c.h.b16 %v1168
    %v1356 = vunpack.c.l.b16 %v1169
    %v1357 = vunpack.c.l.b16 %v1170
    %v1358 = vunpack.c.h.b16 %v1170
    %v1359 = vunpack.c.l.b16 %v1171
    %v1360 = vunpack.c.l.b16 %v1172
    %v1361 = vunpack.c.h.b16 %v1172
    %v1362 = vunpack.c.l.b16 %v1173
    %v1363 = vunpack.c.l.b16 %v1174
    %v1364 = vunpack.c.h.b16 %v1174
    %v1365 = vunpack.c.l.b16 %v1175
    %v1366 = vpack.c.b16 %v1255, %v1252
    %v1367 = vpack.c.b16 %v1256, %v1253
    %v1368 = vpack.c.b16 %v1257, %v1254
    %v1369 = vpack.c.b16 %v1261, %v1258
    %v1370 = vpack.c.b16 %v1262, %v1259
    %v1371 = vpack.c.b16 %v1263, %v1260
    %v1372 = vpack.c.b16 %v1267, %v1264
    %v1373 = vpack.c.b16 %v1268, %v1265
    %v1374 = vpack.c.b16 %v1269, %v1266
    %v1375 = vpack.c.b16 %v1273, %v1270
    %v1376 = vpack.c.b16 %v1274, %v1271
    %v1377 = vpack.c.b16 %v1275, %v1272
    %v1378 = vpack.c.b16 %v1279, %v1276
    %v1379 = vpack.c.b16 %v1280, %v1277
    %v1380 = vpack.c.b16 %v1281, %v1278
    %v1381 = vpack.c.b16 %v1285, %v1282
    %v1382 = vpack.c.b16 %v1286, %v1283
    %v1383 = vpack.c.b16 %v1287, %v1284
    %v1384 = vpack.c.b16 %v1291, %v1288
    %v1385 = vpack.c.b16 %v1292, %v1289
    %v1386 = vpack.c.b16 %v1293, %v1290
    %v1387 = vpack.c.b16 %v1297, %v1294
    %v1388 = vpack.c.b16 %v1298, %v1295
    %v1389 = vpack.c.b16 %v1299, %v1296
    %v1390 = vpack.c.b16 %v1303, %v1300
    %v1391 = vpack.c.b16 %v1304, %v1301
    %v1392 = vpack.c.b16 %v1305, %v1302
    %v1393 = vpack.c.b16 %v1309, %v1306
    %v1394 = vpack.c.b16 %v1310, %v1307
    %v1395 = vpack.c.b16 %v1311, %v1308
    %v1396 = vpack.c.b16 %v1315, %v1312
    %v1397 = vpack.c.b16 %v1316, %v1313
    %v1398 = vpack.c.b16 %v1317, %v1314
    %v1399 = vpack.c.b16 %v1321, %v1318
    %v1400 = vpack.c.b16 %v1322, %v1319
    %v1401 = vpack.c.b16 %v1323, %v1320
    %v1402 = vpack.c.b16 %v1327, %v1324
    %v1403 = vpack.c.b16 %v1328, %v1325
    %v1404 = vpack.c.b16 %v1329, %v1326
    %v1405 = vpack.c.b16 %v1333, %v1330
    %v1406 = vpack.c.b16 %v1334, %v1331
    %v1407 = vpack.c.b16 %v1335, %v1332
    %v1408 = vpack.c.b16 %v1339, %v1336
    %v1409 = vpack.c.b16 %v1340, %v1337
    %v1410 = vpack.c.b16 %v1341, %v1338
    %v1411 = vpack.c.b16 %v1345, %v1342
    %v1412 = vpack.c.b16 %v1346, %v1343
    %v1413 = vpack.c.b16 %v1347, %v1344
    %v1414 = vpack.c.b16 %v1351, %v1348
    %v1415 = vpack.c.b16 %v1352, %v1349
    %v1416 = vpack.c.b16 %v1353, %v1350
    %v1417 = vpack.c.b16 %v1357, %v1354
    %v1418 = vpack.c.b16 %v1358, %v1355
    %v1419 = vpack.c.b16 %v1359, %v1356
    %v1420 = vpack.c.b16 %v1363, %v1360
    %v1421 = vpack.c.b16 %v1364, %v1361
    %v1422 = vpack.c.b16 %v1365, %v1362
    %v1478 = vsel %vm675, %v1420, 0
    %v1481 = vsel %vm675, %v1421, 0
    %v1484 = vsel %vm675, %v1422, 0
    %1486 = vmatpush.bf16.msra.mxu0 %v1387
    %1487 = vmatpush.bf16.msra.mxu0 %v1384
    %1488 = vmatpush.bf16.msra.mxu0 %v1381
    %1489 = vmatpush.bf16.msra.mxu0 %v1378
    %1490 = vmatpush.bf16.msra.mxu0 %v1375
    %1491 = vmatpush.bf16.msra.mxu0 %v1372
    %1492 = vmatpush.bf16.msra.mxu0 %v1369
    %1493 = vmatpush.bf16.msra.mxu0 %v1366
    %1494 = vmatmul.bf16.gmra.mxu0 %v325
    %v1495 = vpop.f32.mrf.mxu0
    %v1496 = vadd.f32 0.0, %v1495
    %v1497 = vpop.f32.mrf.mxu0
    %v1498 = vadd.f32 0.0, %v1497
    %1499 = vmatmul.bf16.gmra.mxu0 %v328
    %v1500 = vpop.f32.mrf.mxu0
    %v1501 = vadd.f32 0.0, %v1500
    %v1502 = vpop.f32.mrf.mxu0
    %v1503 = vadd.f32 0.0, %v1502
    %1504 = vmatmul.bf16.gmra.mxu0 %v331
    %v1505 = vpop.f32.mrf.mxu0
    %v1506 = vadd.f32 0.0, %v1505
    %v1507 = vpop.f32.mrf.mxu0
    %v1508 = vadd.f32 0.0, %v1507
    %1509 = vmatmul.bf16.gmra.mxu0 %v334
    %v1510 = vpop.f32.mrf.mxu0
    %v1511 = vadd.f32 0.0, %v1510
    %v1512 = vpop.f32.mrf.mxu0
    %v1513 = vadd.f32 0.0, %v1512
    %1514 = vmatmul.bf16.gmra.mxu0 %v337
    %v1515 = vpop.f32.mrf.mxu0
    %v1516 = vadd.f32 0.0, %v1515
    %v1517 = vpop.f32.mrf.mxu0
    %v1518 = vadd.f32 0.0, %v1517
    %1519 = vmatmul.bf16.gmra.mxu0 %v340
    %v1520 = vpop.f32.mrf.mxu0
    %v1521 = vadd.f32 0.0, %v1520
    %v1522 = vpop.f32.mrf.mxu0
    %v1523 = vadd.f32 0.0, %v1522
    %1524 = vdwg.mxu0
    %1525 = vmatpush.bf16.msra.mxu0 %v1411
    %1526 = vmatpush.bf16.msra.mxu0 %v1408
    %1527 = vmatpush.bf16.msra.mxu0 %v1405
    %1528 = vmatpush.bf16.msra.mxu0 %v1402
    %1529 = vmatpush.bf16.msra.mxu0 %v1399
    %1530 = vmatpush.bf16.msra.mxu0 %v1396
    %1531 = vmatpush.bf16.msra.mxu0 %v1393
    %1532 = vmatpush.bf16.msra.mxu0 %v1390
    %1533 = vmatmul.bf16.gmra.mxu0 %v326
    %v1534 = vpop.f32.mrf.mxu0
    %v1535 = vadd.f32 %v1496, %v1534
    %v1536 = vpop.f32.mrf.mxu0
    %v1537 = vadd.f32 %v1498, %v1536
    %1538 = vmatmul.bf16.gmra.mxu0 %v329
    %v1539 = vpop.f32.mrf.mxu0
    %v1540 = vadd.f32 %v1501, %v1539
    %v1541 = vpop.f32.mrf.mxu0
    %v1542 = vadd.f32 %v1503, %v1541
    %1543 = vmatmul.bf16.gmra.mxu0 %v332
    %v1544 = vpop.f32.mrf.mxu0
    %v1545 = vadd.f32 %v1506, %v1544
    %v1546 = vpop.f32.mrf.mxu0
    %v1547 = vadd.f32 %v1508, %v1546
    %1548 = vmatmul.bf16.gmra.mxu0 %v335
    %v1549 = vpop.f32.mrf.mxu0
    %v1550 = vadd.f32 %v1511, %v1549
    %v1551 = vpop.f32.mrf.mxu0
    %v1552 = vadd.f32 %v1513, %v1551
    %1553 = vmatmul.bf16.gmra.mxu0 %v338
    %v1554 = vpop.f32.mrf.mxu0
    %v1555 = vadd.f32 %v1516, %v1554
    %v1556 = vpop.f32.mrf.mxu0
    %v1557 = vadd.f32 %v1518, %v1556
    %1558 = vmatmul.bf16.gmra.mxu0 %v341
    %v1559 = vpop.f32.mrf.mxu0
    %v1560 = vadd.f32 %v1521, %v1559
    %v1561 = vpop.f32.mrf.mxu0
    %v1562 = vadd.f32 %v1523, %v1561
    %1563 = vdwg.mxu0
    %1564 = vmatpush.bf16.msra.mxu0 0
    %1565 = vmatpush.bf16.msra.mxu0 0
    %1566 = vmatpush.bf16.msra.mxu0 0
    %1567 = vmatpush.bf16.msra.mxu0 0
    %1568 = vmatpush.bf16.msra.mxu0 0
    %1569 = vmatpush.bf16.msra.mxu0 %v1478
    %1570 = vmatpush.bf16.msra.mxu0 %v1417
    %1571 = vmatpush.bf16.msra.mxu0 %v1414
    %1572 = vmatmul.bf16.gmra.mxu0 %v658
    %v1573 = vpop.f32.mrf.mxu0
    %v1574 = vadd.f32 %v1535, %v1573
    %v1575 = vpop.f32.mrf.mxu0
    %v1576 = vadd.f32 %v1537, %v1575
    %1577 = vmatmul.bf16.gmra.mxu0 %v661
    %v1578 = vpop.f32.mrf.mxu0
    %v1579 = vadd.f32 %v1540, %v1578
    %v1580 = vpop.f32.mrf.mxu0
    %v1581 = vadd.f32 %v1542, %v1580
    %1582 = vmatmul.bf16.gmra.mxu0 %v664
    %v1583 = vpop.f32.mrf.mxu0
    %v1584 = vadd.f32 %v1545, %v1583
    %v1585 = vpop.f32.mrf.mxu0
    %v1586 = vadd.f32 %v1547, %v1585
    %1587 = vmatmul.bf16.gmra.mxu0 %v667
    %v1588 = vpop.f32.mrf.mxu0
    %v1589 = vadd.f32 %v1550, %v1588
    %v1590 = vpop.f32.mrf.mxu0
    %v1591 = vadd.f32 %v1552, %v1590
    %1592 = vmatmul.bf16.gmra.mxu0 %v670
    %v1593 = vpop.f32.mrf.mxu0
    %v1594 = vadd.f32 %v1555, %v1593
    %v1595 = vpop.f32.mrf.mxu0
    %v1596 = vadd.f32 %v1557, %v1595
    %1597 = vmatmul.bf16.gmra.mxu0 %v673
    %v1598 = vpop.f32.mrf.mxu0
    %v1599 = vadd.f32 %v1560, %v1598
    %v1600 = vpop.f32.mrf.mxu0
    %v1601 = vadd.f32 %v1562, %v1600
    %1602 = vdwg.mxu0
    %1603 = vmatpush.bf16.msra.mxu0 %v1388
    %1604 = vmatpush.bf16.msra.mxu0 %v1385
    %1605 = vmatpush.bf16.msra.mxu0 %v1382
    %1606 = vmatpush.bf16.msra.mxu0 %v1379
    %1607 = vmatpush.bf16.msra.mxu0 %v1376
    %1608 = vmatpush.bf16.msra.mxu0 %v1373
    %1609 = vmatpush.bf16.msra.mxu0 %v1370
    %1610 = vmatpush.bf16.msra.mxu0 %v1367
    %1611 = vmatmul.bf16.gmra.mxu0 %v325
    %v1612 = vpop.f32.mrf.mxu0
    %v1613 = vadd.f32 0.0, %v1612
    %v1614 = vpop.f32.mrf.mxu0
    %v1615 = vadd.f32 0.0, %v1614
    %1616 = vmatmul.bf16.gmra.mxu0 %v328
    %v1617 = vpop.f32.mrf.mxu0
    %v1618 = vadd.f32 0.0, %v1617
    %v1619 = vpop.f32.mrf.mxu0
    %v1620 = vadd.f32 0.0, %v1619
    %1621 = vmatmul.bf16.gmra.mxu0 %v331
    %v1622 = vpop.f32.mrf.mxu0
    %v1623 = vadd.f32 0.0, %v1622
    %v1624 = vpop.f32.mrf.mxu0
    %v1625 = vadd.f32 0.0, %v1624
    %1626 = vmatmul.bf16.gmra.mxu0 %v334
    %v1627 = vpop.f32.mrf.mxu0
    %v1628 = vadd.f32 0.0, %v1627
    %v1629 = vpop.f32.mrf.mxu0
    %v1630 = vadd.f32 0.0, %v1629
    %1631 = vmatmul.bf16.gmra.mxu0 %v337
    %v1632 = vpop.f32.mrf.mxu0
    %v1633 = vadd.f32 0.0, %v1632
    %v1634 = vpop.f32.mrf.mxu0
    %v1635 = vadd.f32 0.0, %v1634
    %1636 = vmatmul.bf16.gmra.mxu0 %v340
    %v1637 = vpop.f32.mrf.mxu0
    %v1638 = vadd.f32 0.0, %v1637
    %v1639 = vpop.f32.mrf.mxu0
    %v1640 = vadd.f32 0.0, %v1639
    %1641 = vdwg.mxu0
    %1642 = vmatpush.bf16.msra.mxu0 %v1412
    %1643 = vmatpush.bf16.msra.mxu0 %v1409
    %1644 = vmatpush.bf16.msra.mxu0 %v1406
    %1645 = vmatpush.bf16.msra.mxu0 %v1403
    %1646 = vmatpush.bf16.msra.mxu0 %v1400
    %1647 = vmatpush.bf16.msra.mxu0 %v1397
    %1648 = vmatpush.bf16.msra.mxu0 %v1394
    %1649 = vmatpush.bf16.msra.mxu0 %v1391
    %1650 = vmatmul.bf16.gmra.mxu0 %v326
    %v1651 = vpop.f32.mrf.mxu0
    %v1652 = vadd.f32 %v1613, %v1651
    %v1653 = vpop.f32.mrf.mxu0
    %v1654 = vadd.f32 %v1615, %v1653
    %1655 = vmatmul.bf16.gmra.mxu0 %v329
    %v1656 = vpop.f32.mrf.mxu0
    %v1657 = vadd.f32 %v1618, %v1656
    %v1658 = vpop.f32.mrf.mxu0
    %v1659 = vadd.f32 %v1620, %v1658
    %1660 = vmatmul.bf16.gmra.mxu0 %v332
    %v1661 = vpop.f32.mrf.mxu0
    %v1662 = vadd.f32 %v1623, %v1661
    %v1663 = vpop.f32.mrf.mxu0
    %v1664 = vadd.f32 %v1625, %v1663
    %1665 = vmatmul.bf16.gmra.mxu0 %v335
    %v1666 = vpop.f32.mrf.mxu0
    %v1667 = vadd.f32 %v1628, %v1666
    %v1668 = vpop.f32.mrf.mxu0
    %v1669 = vadd.f32 %v1630, %v1668
    %1670 = vmatmul.bf16.gmra.mxu0 %v338
    %v1671 = vpop.f32.mrf.mxu0
    %v1672 = vadd.f32 %v1633, %v1671
    %v1673 = vpop.f32.mrf.mxu0
    %v1674 = vadd.f32 %v1635, %v1673
    %1675 = vmatmul.bf16.gmra.mxu0 %v341
    %v1676 = vpop.f32.mrf.mxu0
    %v1677 = vadd.f32 %v1638, %v1676
    %v1678 = vpop.f32.mrf.mxu0
    %v1679 = vadd.f32 %v1640, %v1678
    %1680 = vdwg.mxu0
    %1681 = vmatpush.bf16.msra.mxu0 0
    %1682 = vmatpush.bf16.msra.mxu0 0
    %1683 = vmatpush.bf16.msra.mxu0 0
    %1684 = vmatpush.bf16.msra.mxu0 0
    %1685 = vmatpush.bf16.msra.mxu0 0
    %1686 = vmatpush.bf16.msra.mxu0 %v1481
    %1687 = vmatpush.bf16.msra.mxu0 %v1418
    %1688 = vmatpush.bf16.msra.mxu0 %v1415
    %1689 = vmatmul.bf16.gmra.mxu0 %v658
    %v1690 = vpop.f32.mrf.mxu0
    %v1691 = vadd.f32 %v1652, %v1690
    %v1692 = vpop.f32.mrf.mxu0
    %v1693 = vadd.f32 %v1654, %v1692
    %1694 = vmatmul.bf16.gmra.mxu0 %v661
    %v1695 = vpop.f32.mrf.mxu0
    %v1696 = vadd.f32 %v1657, %v1695
    %v1697 = vpop.f32.mrf.mxu0
    %v1698 = vadd.f32 %v1659, %v1697
    %1699 = vmatmul.bf16.gmra.mxu0 %v664
    %v1700 = vpop.f32.mrf.mxu0
    %v1701 = vadd.f32 %v1662, %v1700
    %v1702 = vpop.f32.mrf.mxu0
    %v1703 = vadd.f32 %v1664, %v1702
    %1704 = vmatmul.bf16.gmra.mxu0 %v667
    %v1705 = vpop.f32.mrf.mxu0
    %v1706 = vadd.f32 %v1667, %v1705
    %v1707 = vpop.f32.mrf.mxu0
    %v1708 = vadd.f32 %v1669, %v1707
    %1709 = vmatmul.bf16.gmra.mxu0 %v670
    %v1710 = vpop.f32.mrf.mxu0
    %v1711 = vadd.f32 %v1672, %v1710
    %v1712 = vpop.f32.mrf.mxu0
    %v1713 = vadd.f32 %v1674, %v1712
    %1714 = vmatmul.bf16.gmra.mxu0 %v673
    %v1715 = vpop.f32.mrf.mxu0
    %v1716 = vadd.f32 %v1677, %v1715
    %v1717 = vpop.f32.mrf.mxu0
    %v1718 = vadd.f32 %v1679, %v1717
    %1719 = vdwg.mxu0
    %1720 = vmatpush.bf16.msra.mxu0 %v1389
    %1721 = vmatpush.bf16.msra.mxu0 %v1386
    %1722 = vmatpush.bf16.msra.mxu0 %v1383
    %1723 = vmatpush.bf16.msra.mxu0 %v1380
    %1724 = vmatpush.bf16.msra.mxu0 %v1377
    %1725 = vmatpush.bf16.msra.mxu0 %v1374
    %1726 = vmatpush.bf16.msra.mxu0 %v1371
    %1727 = vmatpush.bf16.msra.mxu0 %v1368
    %1728 = vmatmul.bf16.gmra.mxu0 %v325
    %v1729 = vpop.f32.mrf.mxu0
    %v1730 = vadd.f32 0.0, %v1729
    %v1731 = vpop.f32.mrf.mxu0
    %v1732 = vadd.f32 0.0, %v1731
    %1733 = vmatmul.bf16.gmra.mxu0 %v328
    %v1734 = vpop.f32.mrf.mxu0
    %v1735 = vadd.f32 0.0, %v1734
    %v1736 = vpop.f32.mrf.mxu0
    %v1737 = vadd.f32 0.0, %v1736
    %1738 = vmatmul.bf16.gmra.mxu0 %v331
    %v1739 = vpop.f32.mrf.mxu0
    %v1740 = vadd.f32 0.0, %v1739
    %v1741 = vpop.f32.mrf.mxu0
    %v1742 = vadd.f32 0.0, %v1741
    %1743 = vmatmul.bf16.gmra.mxu0 %v334
    %v1744 = vpop.f32.mrf.mxu0
    %v1745 = vadd.f32 0.0, %v1744
    %v1746 = vpop.f32.mrf.mxu0
    %v1747 = vadd.f32 0.0, %v1746
    %1748 = vmatmul.bf16.gmra.mxu0 %v337
    %v1749 = vpop.f32.mrf.mxu0
    %v1750 = vadd.f32 0.0, %v1749
    %v1751 = vpop.f32.mrf.mxu0
    %v1752 = vadd.f32 0.0, %v1751
    %1753 = vmatmul.bf16.gmra.mxu0 %v340
    %v1754 = vpop.f32.mrf.mxu0
    %v1755 = vadd.f32 0.0, %v1754
    %v1756 = vpop.f32.mrf.mxu0
    %v1757 = vadd.f32 0.0, %v1756
    %1758 = vdwg.mxu0
    %1759 = vmatpush.bf16.msra.mxu0 %v1413
    %1760 = vmatpush.bf16.msra.mxu0 %v1410
    %1761 = vmatpush.bf16.msra.mxu0 %v1407
    %1762 = vmatpush.bf16.msra.mxu0 %v1404
    %1763 = vmatpush.bf16.msra.mxu0 %v1401
    %1764 = vmatpush.bf16.msra.mxu0 %v1398
    %1765 = vmatpush.bf16.msra.mxu0 %v1395
    %1766 = vmatpush.bf16.msra.mxu0 %v1392
    %1767 = vmatmul.bf16.gmra.mxu0 %v326
    %v1768 = vpop.f32.mrf.mxu0
    %v1769 = vadd.f32 %v1730, %v1768
    %v1770 = vpop.f32.mrf.mxu0
    %v1771 = vadd.f32 %v1732, %v1770
    %1772 = vmatmul.bf16.gmra.mxu0 %v329
    %v1773 = vpop.f32.mrf.mxu0
    %v1774 = vadd.f32 %v1735, %v1773
    %v1775 = vpop.f32.mrf.mxu0
    %v1776 = vadd.f32 %v1737, %v1775
    %1777 = vmatmul.bf16.gmra.mxu0 %v332
    %v1778 = vpop.f32.mrf.mxu0
    %v1779 = vadd.f32 %v1740, %v1778
    %v1780 = vpop.f32.mrf.mxu0
    %v1781 = vadd.f32 %v1742, %v1780
    %1782 = vmatmul.bf16.gmra.mxu0 %v335
    %v1783 = vpop.f32.mrf.mxu0
    %v1784 = vadd.f32 %v1745, %v1783
    %v1785 = vpop.f32.mrf.mxu0
    %v1786 = vadd.f32 %v1747, %v1785
    %1787 = vmatmul.bf16.gmra.mxu0 %v338
    %v1788 = vpop.f32.mrf.mxu0
    %v1789 = vadd.f32 %v1750, %v1788
    %v1790 = vpop.f32.mrf.mxu0
    %v1791 = vadd.f32 %v1752, %v1790
    %1792 = vmatmul.bf16.gmra.mxu0 %v341
    %v1793 = vpop.f32.mrf.mxu0
    %v1794 = vadd.f32 %v1755, %v1793
    %v1795 = vpop.f32.mrf.mxu0
    %v1796 = vadd.f32 %v1757, %v1795
    %1797 = vdwg.mxu0
    %1798 = vmatpush.bf16.msra.mxu0 0
    %1799 = vmatpush.bf16.msra.mxu0 0
    %1800 = vmatpush.bf16.msra.mxu0 0
    %1801 = vmatpush.bf16.msra.mxu0 0
    %1802 = vmatpush.bf16.msra.mxu0 0
    %1803 = vmatpush.bf16.msra.mxu0 %v1484
    %1804 = vmatpush.bf16.msra.mxu0 %v1419
    %1805 = vmatpush.bf16.msra.mxu0 %v1416
    %1806 = vmatmul.bf16.gmra.mxu0 %v658
    %v1807 = vpop.f32.mrf.mxu0
    %v1808 = vadd.f32 %v1769, %v1807
    %v1809 = vpop.f32.mrf.mxu0
    %v1810 = vadd.f32 %v1771, %v1809
    %1811 = vmatmul.bf16.gmra.mxu0 %v661
    %v1812 = vpop.f32.mrf.mxu0
    %v1813 = vadd.f32 %v1774, %v1812
    %v1814 = vpop.f32.mrf.mxu0
    %v1815 = vadd.f32 %v1776, %v1814
    %1816 = vmatmul.bf16.gmra.mxu0 %v664
    %v1817 = vpop.f32.mrf.mxu0
    %v1818 = vadd.f32 %v1779, %v1817
    %v1819 = vpop.f32.mrf.mxu0
    %v1820 = vadd.f32 %v1781, %v1819
    %1821 = vmatmul.bf16.gmra.mxu0 %v667
    %v1822 = vpop.f32.mrf.mxu0
    %v1823 = vadd.f32 %v1784, %v1822
    %v1824 = vpop.f32.mrf.mxu0
    %v1825 = vadd.f32 %v1786, %v1824
    %1826 = vmatmul.bf16.gmra.mxu0 %v670
    %v1827 = vpop.f32.mrf.mxu0
    %v1828 = vadd.f32 %v1789, %v1827
    %v1829 = vpop.f32.mrf.mxu0
    %v1830 = vadd.f32 %v1791, %v1829
    %1831 = vmatmul.bf16.gmra.mxu0 %v673
    %v1832 = vpop.f32.mrf.mxu0
    %v1833 = vadd.f32 %v1794, %v1832
    %v1834 = vpop.f32.mrf.mxu0
    %v1835 = vadd.f32 %v1796, %v1834
    %1836 = vdwg.mxu0
    %v1837 = vrot.slane %v1574, 6
    %v1838 = vrot.slane %v1691, 6
    %v1839 = vrot.slane %v1808, 6
    %v1840 = vrot.slane %v1576, 6
    %v1841 = vrot.slane %v1693, 6
    %v1842 = vrot.slane %v1810, 6
    %v1843 = vrot.slane %v1579, 6
    %v1844 = vrot.slane %v1696, 6
    %v1845 = vrot.slane %v1813, 6
    %v1846 = vrot.slane %v1581, 6
    %v1847 = vrot.slane %v1698, 6
    %v1848 = vrot.slane %v1815, 6
    %v1849 = vrot.slane %v1584, 6
    %v1850 = vrot.slane %v1701, 6
    %v1851 = vrot.slane %v1818, 6
    %v1852 = vrot.slane %v1586, 6
    %v1853 = vrot.slane %v1703, 6
    %v1854 = vrot.slane %v1820, 6
    %v1855 = vrot.slane %v1589, 6
    %v1856 = vrot.slane %v1706, 6
    %v1857 = vrot.slane %v1823, 6
    %v1858 = vrot.slane %v1591, 6
    %v1859 = vrot.slane %v1708, 6
    %v1860 = vrot.slane %v1825, 6
    %v1861 = vrot.slane %v1594, 6
    %v1862 = vrot.slane %v1711, 6
    %v1863 = vrot.slane %v1828, 6
    %v1864 = vrot.slane %v1596, 6
    %v1865 = vrot.slane %v1713, 6
    %v1866 = vrot.slane %v1830, 6
    %v1867 = vrot.slane %v1599, 6
    %v1868 = vrot.slane %v1716, 6
    %v1869 = vrot.slane %v1833, 6
    %v1870 = vrot.slane %v1601, 6
    %v1871 = vrot.slane %v1718, 6
    %v1872 = vrot.slane %v1835, 6
    %vm1873 = vcmp.lt.s32.totalorder %v1073, 2
    %v1874 = vsel %vm1873, %v1864, %v1867
    %v1875 = vsel %vm1873, %v1865, %v1868
    %v1876 = vsel %vm1873, %v1866, %v1869
    %v1877 = vsel %vm1873, %v1861, %v1864
    %v1878 = vsel %vm1873, %v1862, %v1865
    %v1879 = vsel %vm1873, %v1863, %v1866
    %v1880 = vsel %vm1873, %v1855, %v1858
    %v1881 = vsel %vm1873, %v1856, %v1859
    %v1882 = vsel %vm1873, %v1857, %v1860
    %v1883 = vsel %vm1873, %v1852, %v1855
    %v1884 = vsel %vm1873, %v1853, %v1856
    %v1885 = vsel %vm1873, %v1854, %v1857
    %v1886 = vsel %vm1873, %v1846, %v1849
    %v1887 = vsel %vm1873, %v1847, %v1850
    %v1888 = vsel %vm1873, %v1848, %v1851
    %v1889 = vsel %vm1873, %v1843, %v1846
    %v1890 = vsel %vm1873, %v1844, %v1847
    %v1891 = vsel %vm1873, %v1845, %v1848
    %v1892 = vsel %vm1873, %v1837, %v1840
    %v1893 = vsel %vm1873, %v1838, %v1841
    %v1894 = vsel %vm1873, %v1839, %v1842
    %v1895 = vsel %vm1873, %v1870, %v1837
    %v1896 = vsel %vm1873, %v1871, %v1838
    %v1897 = vsel %vm1873, %v1872, %v1839
    %v1898 = vadd.f32 %v1096, %v1895
    %v1899 = vadd.f32 %v1097, %v1896
    %v1900 = vadd.f32 %v1098, %v1897
    %v1901 = vadd.f32 %v1093, %v1892
    %v1902 = vadd.f32 %v1094, %v1893
    %v1903 = vadd.f32 %v1095, %v1894
    %v1904 = vadd.f32 %v1090, %v1889
    %v1905 = vadd.f32 %v1091, %v1890
    %v1906 = vadd.f32 %v1092, %v1891
    %v1907 = vadd.f32 %v1087, %v1886
    %v1908 = vadd.f32 %v1088, %v1887
    %v1909 = vadd.f32 %v1089, %v1888
    %v1910 = vadd.f32 %v1084, %v1883
    %v1911 = vadd.f32 %v1085, %v1884
    %v1912 = vadd.f32 %v1086, %v1885
    %v1913 = vadd.f32 %v1081, %v1880
    %v1914 = vadd.f32 %v1082, %v1881
    %v1915 = vadd.f32 %v1083, %v1882
    %v1916 = vadd.f32 %v1078, %v1877
    %v1917 = vadd.f32 %v1079, %v1878
    %v1918 = vadd.f32 %v1080, %v1879
    %v1919 = vadd.f32 %v1075, %v1874
    %v1920 = vadd.f32 %v1076, %v1875
    %v1921 = vadd.f32 %v1077, %v1876
    %s1922 = scalar_lea.vmem [#allocation6], 912
    %v1923 = vld [vmem:[%s1922] sm:$0xff]
    %v1924 = vld [vmem:[%s1922 + $0x8] sm:$0xf]
    %v1925 = vld [vmem:[%s1922 + $0xc] sm:$0xff]
    %v1926 = vld [vmem:[%s1922 + $0x14] sm:$0xf]
    %v1927 = vld [vmem:[%s1922 + $0x18] sm:$0xff]
    %v1928 = vld [vmem:[%s1922 + $0x20] sm:$0xf]
    %v1929 = vld [vmem:[%s1922 + $0x24] sm:$0xff]
    %v1930 = vld [vmem:[%s1922 + $0x2c] sm:$0xf]
    %v1931 = vld [vmem:[%s1922 + $0x30] sm:$0xff]
    %v1932 = vld [vmem:[%s1922 + $0x38] sm:$0xf]
    %v1933 = vld [vmem:[%s1922 + $0x3c] sm:$0xff]
    %v1934 = vld [vmem:[%s1922 + $0x44] sm:$0xf]
    %v1935 = vld [vmem:[%s1922 + $0x48] sm:$0xff]
    %v1936 = vld [vmem:[%s1922 + $0x50] sm:$0xf]
    %v1937 = vld [vmem:[%s1922 + $0x54] sm:$0xff]
    %v1938 = vld [vmem:[%s1922 + $0x5c] sm:$0xf]
    %v1939 = vld [vmem:[%s1922 + $0x60] sm:$0xff]
    %v1940 = vld [vmem:[%s1922 + $0x68] sm:$0xf]
    %v1941 = vld [vmem:[%s1922 + $0x6c] sm:$0xff]
    %v1942 = vld [vmem:[%s1922 + $0x74] sm:$0xf]
    %v1943 = vld [vmem:[%s1922 + $0x78] sm:$0xff]
    %v1944 = vld [vmem:[%s1922 + $0x80] sm:$0xf]
    %v1945 = vld [vmem:[%s1922 + $0x84] sm:$0xff]
    %v1946 = vld [vmem:[%s1922 + $0x8c] sm:$0xf]
    %v1947 = vld [vmem:[%s1922 + $0x90] sm:$0xff]
    %v1948 = vld [vmem:[%s1922 + $0x98] sm:$0xf]
    %v1949 = vld [vmem:[%s1922 + $0x9c] sm:$0xff]
    %v1950 = vld [vmem:[%s1922 + $0xa4] sm:$0xf]
    %v1951 = vld [vmem:[%s1922 + $0xa8] sm:$0xff]
    %v1952 = vld [vmem:[%s1922 + $0xb0] sm:$0xf]
    %v1953 = vld [vmem:[%s1922 + $0xb4] sm:$0xff]
    %v1954 = vld [vmem:[%s1922 + $0xbc] sm:$0xf]
    %v1955 = vld [vmem:[%s1922 + $0xc0] sm:$0xff]
    %v1956 = vld [vmem:[%s1922 + $0xc8] sm:$0xf]
    %v1957 = vld [vmem:[%s1922 + $0xcc] sm:$0xff]
    %v1958 = vld [vmem:[%s1922 + $0xd4] sm:$0xf]
    %v1959 = vld [vmem:[%s1922 + $0xd8] sm:$0xff]
    %v1960 = vld [vmem:[%s1922 + $0xe0] sm:$0xf]
    %v1961 = vld [vmem:[%s1922 + $0xe4] sm:$0xff]
    %v1962 = vld [vmem:[%s1922 + $0xec] sm:$0xf]
    %v1963 = vld [vmem:[%s1922 + $0xf0] sm:$0xff]
    %v1964 = vld [vmem:[%s1922 + $0xf8] sm:$0xf]
    %v1965 = vld [vmem:[%s1922 + $0xfc] sm:$0xff]
    %v1966 = vld [vmem:[%s1922 + $0x104] sm:$0xf]
    %v1967 = vld [vmem:[%s1922 + $0x108] sm:$0xff]
    %v1968 = vld [vmem:[%s1922 + $0x110] sm:$0xf]
    %v1969 = vld [vmem:[%s1922 + $0x114] sm:$0xff]
    %v1970 = vld [vmem:[%s1922 + $0x11c] sm:$0xf]
    %v1971 = vld [vmem:[%s1922 + $0x120] sm:$0xff]
    %v1972 = vld [vmem:[%s1922 + $0x128] sm:$0xf]
    %v1973 = vld [vmem:[%s1922 + $0x12c] sm:$0xff]
    %v1974 = vld [vmem:[%s1922 + $0x134] sm:$0xf]
    %v1975 = vld [vmem:[%s1922 + $0x138] sm:$0xff]
    %v1976 = vld [vmem:[%s1922 + $0x140] sm:$0xf]
    %v1977 = vld [vmem:[%s1922 + $0x144] sm:$0xff]
    %v1978 = vld [vmem:[%s1922 + $0x14c] sm:$0xf]
    %v1979 = vld [vmem:[%s1922 + $0x150] sm:$0xff]
    %v1980 = vld [vmem:[%s1922 + $0x158] sm:$0xf]
    %v1981 = vld [vmem:[%s1922 + $0x15c] sm:$0xff]
    %v1982 = vld [vmem:[%s1922 + $0x164] sm:$0xf]
    %v1983 = vld [vmem:[%s1922 + $0x168] sm:$0xff]
    %v1984 = vld [vmem:[%s1922 + $0x170] sm:$0xf]
    %v1985 = vld [vmem:[%s1922 + $0x174] sm:$0xff]
    %v1986 = vld [vmem:[%s1922 + $0x17c] sm:$0xf]
    %v1987 = vld [vmem:[%s1922 + $0x180] sm:$0xff]
    %v1988 = vld [vmem:[%s1922 + $0x188] sm:$0xf]
    %v1989 = vld [vmem:[%s1922 + $0x18c] sm:$0xff]
    %v1990 = vld [vmem:[%s1922 + $0x194] sm:$0xf]
    %v1991 = vld [vmem:[%s1922 + $0x198] sm:$0xff]
    %v1992 = vld [vmem:[%s1922 + $0x1a0] sm:$0xf]
    %v1993 = vld [vmem:[%s1922 + $0x1a4] sm:$0xff]
    %v1994 = vld [vmem:[%s1922 + $0x1ac] sm:$0xf]
    %v1995 = vld [vmem:[%s1922 + $0x1b0] sm:$0xff]
    %v1996 = vld [vmem:[%s1922 + $0x1b8] sm:$0xf]
    %v1997 = vld [vmem:[%s1922 + $0x1bc] sm:$0x33]
    %v1998 = vld [vmem:[%s1922 + $0x1c4] sm:$0x3]
    %v2075 = vunpack.c.l.b16 %v1923
    %v2076 = vunpack.c.h.b16 %v1923
    %v2077 = vunpack.c.l.b16 %v1924
    %v2078 = vunpack.c.l.b16 %v1925
    %v2079 = vunpack.c.h.b16 %v1925
    %v2080 = vunpack.c.l.b16 %v1926
    %v2081 = vunpack.c.l.b16 %v1927
    %v2082 = vunpack.c.h.b16 %v1927
    %v2083 = vunpack.c.l.b16 %v1928
    %v2084 = vunpack.c.l.b16 %v1929
    %v2085 = vunpack.c.h.b16 %v1929
    %v2086 = vunpack.c.l.b16 %v1930
    %v2087 = vunpack.c.l.b16 %v1931
    %v2088 = vunpack.c.h.b16 %v1931
    %v2089 = vunpack.c.l.b16 %v1932
    %v2090 = vunpack.c.l.b16 %v1933
    %v2091 = vunpack.c.h.b16 %v1933
    %v2092 = vunpack.c.l.b16 %v1934
    %v2093 = vunpack.c.l.b16 %v1935
    %v2094 = vunpack.c.h.b16 %v1935
    %v2095 = vunpack.c.l.b16 %v1936
    %v2096 = vunpack.c.l.b16 %v1937
    %v2097 = vunpack.c.h.b16 %v1937
    %v2098 = vunpack.c.l.b16 %v1938
    %v2099 = vunpack.c.l.b16 %v1939
    %v2100 = vunpack.c.h.b16 %v1939
    %v2101 = vunpack.c.l.b16 %v1940
    %v2102 = vunpack.c.l.b16 %v1941
    %v2103 = vunpack.c.h.b16 %v1941
    %v2104 = vunpack.c.l.b16 %v1942
    %v2105 = vunpack.c.l.b16 %v1943
    %v2106 = vunpack.c.h.b16 %v1943
    %v2107 = vunpack.c.l.b16 %v1944
    %v2108 = vunpack.c.l.b16 %v1945
    %v2109 = vunpack.c.h.b16 %v1945
    %v2110 = vunpack.c.l.b16 %v1946
    %v2111 = vunpack.c.l.b16 %v1947
    %v2112 = vunpack.c.h.b16 %v1947
    %v2113 = vunpack.c.l.b16 %v1948
    %v2114 = vunpack.c.l.b16 %v1949
    %v2115 = vunpack.c.h.b16 %v1949
    %v2116 = vunpack.c.l.b16 %v1950
    %v2117 = vunpack.c.l.b16 %v1951
    %v2118 = vunpack.c.h.b16 %v1951
    %v2119 = vunpack.c.l.b16 %v1952
    %v2120 = vunpack.c.l.b16 %v1953
    %v2121 = vunpack.c.h.b16 %v1953
    %v2122 = vunpack.c.l.b16 %v1954
    %v2123 = vunpack.c.l.b16 %v1955
    %v2124 = vunpack.c.h.b16 %v1955
    %v2125 = vunpack.c.l.b16 %v1956
    %v2126 = vunpack.c.l.b16 %v1957
    %v2127 = vunpack.c.h.b16 %v1957
    %v2128 = vunpack.c.l.b16 %v1958
    %v2129 = vunpack.c.l.b16 %v1959
    %v2130 = vunpack.c.h.b16 %v1959
    %v2131 = vunpack.c.l.b16 %v1960
    %v2132 = vunpack.c.l.b16 %v1961
    %v2133 = vunpack.c.h.b16 %v1961
    %v2134 = vunpack.c.l.b16 %v1962
    %v2135 = vunpack.c.l.b16 %v1963
    %v2136 = vunpack.c.h.b16 %v1963
    %v2137 = vunpack.c.l.b16 %v1964
    %v2138 = vunpack.c.l.b16 %v1965
    %v2139 = vunpack.c.h.b16 %v1965
    %v2140 = vunpack.c.l.b16 %v1966
    %v2141 = vunpack.c.l.b16 %v1967
    %v2142 = vunpack.c.h.b16 %v1967
    %v2143 = vunpack.c.l.b16 %v1968
    %v2144 = vunpack.c.l.b16 %v1969
    %v2145 = vunpack.c.h.b16 %v1969
    %v2146 = vunpack.c.l.b16 %v1970
    %v2147 = vunpack.c.l.b16 %v1971
    %v2148 = vunpack.c.h.b16 %v1971
    %v2149 = vunpack.c.l.b16 %v1972
    %v2150 = vunpack.c.l.b16 %v1973
    %v2151 = vunpack.c.h.b16 %v1973
    %v2152 = vunpack.c.l.b16 %v1974
    %v2153 = vunpack.c.l.b16 %v1975
    %v2154 = vunpack.c.h.b16 %v1975
    %v2155 = vunpack.c.l.b16 %v1976
    %v2156 = vunpack.c.l.b16 %v1977
    %v2157 = vunpack.c.h.b16 %v1977
    %v2158 = vunpack.c.l.b16 %v1978
    %v2159 = vunpack.c.l.b16 %v1979
    %v2160 = vunpack.c.h.b16 %v1979
    %v2161 = vunpack.c.l.b16 %v1980
    %v2162 = vunpack.c.l.b16 %v1981
    %v2163 = vunpack.c.h.b16 %v1981
    %v2164 = vunpack.c.l.b16 %v1982
    %v2165 = vunpack.c.l.b16 %v1983
    %v2166 = vunpack.c.h.b16 %v1983
    %v2167 = vunpack.c.l.b16 %v1984
    %v2168 = vunpack.c.l.b16 %v1985
    %v2169 = vunpack.c.h.b16 %v1985
    %v2170 = vunpack.c.l.b16 %v1986
    %v2171 = vunpack.c.l.b16 %v1987
    %v2172 = vunpack.c.h.b16 %v1987
    %v2173 = vunpack.c.l.b16 %v1988
    %v2174 = vunpack.c.l.b16 %v1989
    %v2175 = vunpack.c.h.b16 %v1989
    %v2176 = vunpack.c.l.b16 %v1990
    %v2177 = vunpack.c.l.b16 %v1991
    %v2178 = vunpack.c.h.b16 %v1991
    %v2179 = vunpack.c.l.b16 %v1992
    %v2180 = vunpack.c.l.b16 %v1993
    %v2181 = vunpack.c.h.b16 %v1993
    %v2182 = vunpack.c.l.b16 %v1994
    %v2183 = vunpack.c.l.b16 %v1995
    %v2184 = vunpack.c.h.b16 %v1995
    %v2185 = vunpack.c.l.b16 %v1996
    %v2186 = vunpack.c.l.b16 %v1997
    %v2187 = vunpack.c.h.b16 %v1997
    %v2188 = vunpack.c.l.b16 %v1998
    %v2189 = vpack.c.b16 %v2078, %v2075
    %v2190 = vpack.c.b16 %v2079, %v2076
    %v2191 = vpack.c.b16 %v2080, %v2077
    %v2192 = vpack.c.b16 %v2084, %v2081
    %v2193 = vpack.c.b16 %v2085, %v2082
    %v2194 = vpack.c.b16 %v2086, %v2083
    %v2195 = vpack.c.b16 %v2090, %v2087
    %v2196 = vpack.c.b16 %v2091, %v2088
    %v2197 = vpack.c.b16 %v2092, %v2089
    %v2198 = vpack.c.b16 %v2096, %v2093
    %v2199 = vpack.c.b16 %v2097, %v2094
    %v2200 = vpack.c.b16 %v2098, %v2095
    %v2201 = vpack.c.b16 %v2102, %v2099
    %v2202 = vpack.c.b16 %v2103, %v2100
    %v2203 = vpack.c.b16 %v2104, %v2101
    %v2204 = vpack.c.b16 %v2108, %v2105
    %v2205 = vpack.c.b16 %v2109, %v2106
    %v2206 = vpack.c.b16 %v2110, %v2107
    %v2207 = vpack.c.b16 %v2114, %v2111
    %v2208 = vpack.c.b16 %v2115, %v2112
    %v2209 = vpack.c.b16 %v2116, %v2113
    %v2210 = vpack.c.b16 %v2120, %v2117
    %v2211 = vpack.c.b16 %v2121, %v2118
    %v2212 = vpack.c.b16 %v2122, %v2119
    %v2213 = vpack.c.b16 %v2126, %v2123
    %v2214 = vpack.c.b16 %v2127, %v2124
    %v2215 = vpack.c.b16 %v2128, %v2125
    %v2216 = vpack.c.b16 %v2132, %v2129
    %v2217 = vpack.c.b16 %v2133, %v2130
    %v2218 = vpack.c.b16 %v2134, %v2131
    %v2219 = vpack.c.b16 %v2138, %v2135
    %v2220 = vpack.c.b16 %v2139, %v2136
    %v2221 = vpack.c.b16 %v2140, %v2137
    %v2222 = vpack.c.b16 %v2144, %v2141
    %v2223 = vpack.c.b16 %v2145, %v2142
    %v2224 = vpack.c.b16 %v2146, %v2143
    %v2225 = vpack.c.b16 %v2150, %v2147
    %v2226 = vpack.c.b16 %v2151, %v2148
    %v2227 = vpack.c.b16 %v2152, %v2149
    %v2228 = vpack.c.b16 %v2156, %v2153
    %v2229 = vpack.c.b16 %v2157, %v2154
    %v2230 = vpack.c.b16 %v2158, %v2155
    %v2231 = vpack.c.b16 %v2162, %v2159
    %v2232 = vpack.c.b16 %v2163, %v2160
    %v2233 = vpack.c.b16 %v2164, %v2161
    %v2234 = vpack.c.b16 %v2168, %v2165
    %v2235 = vpack.c.b16 %v2169, %v2166
    %v2236 = vpack.c.b16 %v2170, %v2167
    %v2237 = vpack.c.b16 %v2174, %v2171
    %v2238 = vpack.c.b16 %v2175, %v2172
    %v2239 = vpack.c.b16 %v2176, %v2173
    %v2240 = vpack.c.b16 %v2180, %v2177
    %v2241 = vpack.c.b16 %v2181, %v2178
    %v2242 = vpack.c.b16 %v2182, %v2179
    %v2243 = vpack.c.b16 %v2186, %v2183
    %v2244 = vpack.c.b16 %v2187, %v2184
    %v2245 = vpack.c.b16 %v2188, %v2185
    %v2301 = vsel %vm675, %v2243, 0
    %v2304 = vsel %vm675, %v2244, 0
    %v2307 = vsel %vm675, %v2245, 0
    %2309 = vmatpush.bf16.msra.mxu0 %v2210
    %2310 = vmatpush.bf16.msra.mxu0 %v2207
    %2311 = vmatpush.bf16.msra.mxu0 %v2204
    %2312 = vmatpush.bf16.msra.mxu0 %v2201
    %2313 = vmatpush.bf16.msra.mxu0 %v2198
    %2314 = vmatpush.bf16.msra.mxu0 %v2195
    %2315 = vmatpush.bf16.msra.mxu0 %v2192
    %2316 = vmatpush.bf16.msra.mxu0 %v2189
    %2317 = vmatmul.bf16.gmra.mxu0 %v325
    %v2318 = vpop.f32.mrf.mxu0
    %v2319 = vadd.f32 0.0, %v2318
    %v2320 = vpop.f32.mrf.mxu0
    %v2321 = vadd.f32 0.0, %v2320
    %2322 = vmatmul.bf16.gmra.mxu0 %v328
    %v2323 = vpop.f32.mrf.mxu0
    %v2324 = vadd.f32 0.0, %v2323
    %v2325 = vpop.f32.mrf.mxu0
    %v2326 = vadd.f32 0.0, %v2325
    %2327 = vmatmul.bf16.gmra.mxu0 %v331
    %v2328 = vpop.f32.mrf.mxu0
    %v2329 = vadd.f32 0.0, %v2328
    %v2330 = vpop.f32.mrf.mxu0
    %v2331 = vadd.f32 0.0, %v2330
    %2332 = vmatmul.bf16.gmra.mxu0 %v334
    %v2333 = vpop.f32.mrf.mxu0
    %v2334 = vadd.f32 0.0, %v2333
    %v2335 = vpop.f32.mrf.mxu0
    %v2336 = vadd.f32 0.0, %v2335
    %2337 = vmatmul.bf16.gmra.mxu0 %v337
    %v2338 = vpop.f32.mrf.mxu0
    %v2339 = vadd.f32 0.0, %v2338
    %v2340 = vpop.f32.mrf.mxu0
    %v2341 = vadd.f32 0.0, %v2340
    %2342 = vmatmul.bf16.gmra.mxu0 %v340
    %v2343 = vpop.f32.mrf.mxu0
    %v2344 = vadd.f32 0.0, %v2343
    %v2345 = vpop.f32.mrf.mxu0
    %v2346 = vadd.f32 0.0, %v2345
    %2347 = vdwg.mxu0
    %2348 = vmatpush.bf16.msra.mxu0 %v2234
    %2349 = vmatpush.bf16.msra.mxu0 %v2231
    %2350 = vmatpush.bf16.msra.mxu0 %v2228
    %2351 = vmatpush.bf16.msra.mxu0 %v2225
    %2352 = vmatpush.bf16.msra.mxu0 %v2222
    %2353 = vmatpush.bf16.msra.mxu0 %v2219
    %2354 = vmatpush.bf16.msra.mxu0 %v2216
    %2355 = vmatpush.bf16.msra.mxu0 %v2213
    %2356 = vmatmul.bf16.gmra.mxu0 %v326
    %v2357 = vpop.f32.mrf.mxu0
    %v2358 = vadd.f32 %v2319, %v2357
    %v2359 = vpop.f32.mrf.mxu0
    %v2360 = vadd.f32 %v2321, %v2359
    %2361 = vmatmul.bf16.gmra.mxu0 %v329
    %v2362 = vpop.f32.mrf.mxu0
    %v2363 = vadd.f32 %v2324, %v2362
    %v2364 = vpop.f32.mrf.mxu0
    %v2365 = vadd.f32 %v2326, %v2364
    %2366 = vmatmul.bf16.gmra.mxu0 %v332
    %v2367 = vpop.f32.mrf.mxu0
    %v2368 = vadd.f32 %v2329, %v2367
    %v2369 = vpop.f32.mrf.mxu0
    %v2370 = vadd.f32 %v2331, %v2369
    %2371 = vmatmul.bf16.gmra.mxu0 %v335
    %v2372 = vpop.f32.mrf.mxu0
    %v2373 = vadd.f32 %v2334, %v2372
    %v2374 = vpop.f32.mrf.mxu0
    %v2375 = vadd.f32 %v2336, %v2374
    %2376 = vmatmul.bf16.gmra.mxu0 %v338
    %v2377 = vpop.f32.mrf.mxu0
    %v2378 = vadd.f32 %v2339, %v2377
    %v2379 = vpop.f32.mrf.mxu0
    %v2380 = vadd.f32 %v2341, %v2379
    %2381 = vmatmul.bf16.gmra.mxu0 %v341
    %v2382 = vpop.f32.mrf.mxu0
    %v2383 = vadd.f32 %v2344, %v2382
    %v2384 = vpop.f32.mrf.mxu0
    %v2385 = vadd.f32 %v2346, %v2384
    %2386 = vdwg.mxu0
    %2387 = vmatpush.bf16.msra.mxu0 0
    %2388 = vmatpush.bf16.msra.mxu0 0
    %2389 = vmatpush.bf16.msra.mxu0 0
    %2390 = vmatpush.bf16.msra.mxu0 0
    %2391 = vmatpush.bf16.msra.mxu0 0
    %2392 = vmatpush.bf16.msra.mxu0 %v2301
    %2393 = vmatpush.bf16.msra.mxu0 %v2240
    %2394 = vmatpush.bf16.msra.mxu0 %v2237
    %2395 = vmatmul.bf16.gmra.mxu0 %v658
    %v2396 = vpop.f32.mrf.mxu0
    %v2397 = vadd.f32 %v2358, %v2396
    %v2398 = vpop.f32.mrf.mxu0
    %v2399 = vadd.f32 %v2360, %v2398
    %2400 = vmatmul.bf16.gmra.mxu0 %v661
    %v2401 = vpop.f32.mrf.mxu0
    %v2402 = vadd.f32 %v2363, %v2401
    %v2403 = vpop.f32.mrf.mxu0
    %v2404 = vadd.f32 %v2365, %v2403
    %2405 = vmatmul.bf16.gmra.mxu0 %v664
    %v2406 = vpop.f32.mrf.mxu0
    %v2407 = vadd.f32 %v2368, %v2406
    %v2408 = vpop.f32.mrf.mxu0
    %v2409 = vadd.f32 %v2370, %v2408
    %2410 = vmatmul.bf16.gmra.mxu0 %v667
    %v2411 = vpop.f32.mrf.mxu0
    %v2412 = vadd.f32 %v2373, %v2411
    %v2413 = vpop.f32.mrf.mxu0
    %v2414 = vadd.f32 %v2375, %v2413
    %2415 = vmatmul.bf16.gmra.mxu0 %v670
    %v2416 = vpop.f32.mrf.mxu0
    %v2417 = vadd.f32 %v2378, %v2416
    %v2418 = vpop.f32.mrf.mxu0
    %v2419 = vadd.f32 %v2380, %v2418
    %2420 = vmatmul.bf16.gmra.mxu0 %v673
    %v2421 = vpop.f32.mrf.mxu0
    %v2422 = vadd.f32 %v2383, %v2421
    %v2423 = vpop.f32.mrf.mxu0
    %v2424 = vadd.f32 %v2385, %v2423
    %2425 = vdwg.mxu0
    %2426 = vmatpush.bf16.msra.mxu0 %v2211
    %2427 = vmatpush.bf16.msra.mxu0 %v2208
    %2428 = vmatpush.bf16.msra.mxu0 %v2205
    %2429 = vmatpush.bf16.msra.mxu0 %v2202
    %2430 = vmatpush.bf16.msra.mxu0 %v2199
    %2431 = vmatpush.bf16.msra.mxu0 %v2196
    %2432 = vmatpush.bf16.msra.mxu0 %v2193
    %2433 = vmatpush.bf16.msra.mxu0 %v2190
    %2434 = vmatmul.bf16.gmra.mxu0 %v325
    %v2435 = vpop.f32.mrf.mxu0
    %v2436 = vadd.f32 0.0, %v2435
    %v2437 = vpop.f32.mrf.mxu0
    %v2438 = vadd.f32 0.0, %v2437
    %2439 = vmatmul.bf16.gmra.mxu0 %v328
    %v2440 = vpop.f32.mrf.mxu0
    %v2441 = vadd.f32 0.0, %v2440
    %v2442 = vpop.f32.mrf.mxu0
    %v2443 = vadd.f32 0.0, %v2442
    %2444 = vmatmul.bf16.gmra.mxu0 %v331
    %v2445 = vpop.f32.mrf.mxu0
    %v2446 = vadd.f32 0.0, %v2445
    %v2447 = vpop.f32.mrf.mxu0
    %v2448 = vadd.f32 0.0, %v2447
    %2449 = vmatmul.bf16.gmra.mxu0 %v334
    %v2450 = vpop.f32.mrf.mxu0
    %v2451 = vadd.f32 0.0, %v2450
    %v2452 = vpop.f32.mrf.mxu0
    %v2453 = vadd.f32 0.0, %v2452
    %2454 = vmatmul.bf16.gmra.mxu0 %v337
    %v2455 = vpop.f32.mrf.mxu0
    %v2456 = vadd.f32 0.0, %v2455
    %v2457 = vpop.f32.mrf.mxu0
    %v2458 = vadd.f32 0.0, %v2457
    %2459 = vmatmul.bf16.gmra.mxu0 %v340
    %v2460 = vpop.f32.mrf.mxu0
    %v2461 = vadd.f32 0.0, %v2460
    %v2462 = vpop.f32.mrf.mxu0
    %v2463 = vadd.f32 0.0, %v2462
    %2464 = vdwg.mxu0
    %2465 = vmatpush.bf16.msra.mxu0 %v2235
    %2466 = vmatpush.bf16.msra.mxu0 %v2232
    %2467 = vmatpush.bf16.msra.mxu0 %v2229
    %2468 = vmatpush.bf16.msra.mxu0 %v2226
    %2469 = vmatpush.bf16.msra.mxu0 %v2223
    %2470 = vmatpush.bf16.msra.mxu0 %v2220
    %2471 = vmatpush.bf16.msra.mxu0 %v2217
    %2472 = vmatpush.bf16.msra.mxu0 %v2214
    %2473 = vmatmul.bf16.gmra.mxu0 %v326
    %v2474 = vpop.f32.mrf.mxu0
    %v2475 = vadd.f32 %v2436, %v2474
    %v2476 = vpop.f32.mrf.mxu0
    %v2477 = vadd.f32 %v2438, %v2476
    %2478 = vmatmul.bf16.gmra.mxu0 %v329
    %v2479 = vpop.f32.mrf.mxu0
    %v2480 = vadd.f32 %v2441, %v2479
    %v2481 = vpop.f32.mrf.mxu0
    %v2482 = vadd.f32 %v2443, %v2481
    %2483 = vmatmul.bf16.gmra.mxu0 %v332
    %v2484 = vpop.f32.mrf.mxu0
    %v2485 = vadd.f32 %v2446, %v2484
    %v2486 = vpop.f32.mrf.mxu0
    %v2487 = vadd.f32 %v2448, %v2486
    %2488 = vmatmul.bf16.gmra.mxu0 %v335
    %v2489 = vpop.f32.mrf.mxu0
    %v2490 = vadd.f32 %v2451, %v2489
    %v2491 = vpop.f32.mrf.mxu0
    %v2492 = vadd.f32 %v2453, %v2491
    %2493 = vmatmul.bf16.gmra.mxu0 %v338
    %v2494 = vpop.f32.mrf.mxu0
    %v2495 = vadd.f32 %v2456, %v2494
    %v2496 = vpop.f32.mrf.mxu0
    %v2497 = vadd.f32 %v2458, %v2496
    %2498 = vmatmul.bf16.gmra.mxu0 %v341
    %v2499 = vpop.f32.mrf.mxu0
    %v2500 = vadd.f32 %v2461, %v2499
    %v2501 = vpop.f32.mrf.mxu0
    %v2502 = vadd.f32 %v2463, %v2501
    %2503 = vdwg.mxu0
    %2504 = vmatpush.bf16.msra.mxu0 0
    %2505 = vmatpush.bf16.msra.mxu0 0
    %2506 = vmatpush.bf16.msra.mxu0 0
    %2507 = vmatpush.bf16.msra.mxu0 0
    %2508 = vmatpush.bf16.msra.mxu0 0
    %2509 = vmatpush.bf16.msra.mxu0 %v2304
    %2510 = vmatpush.bf16.msra.mxu0 %v2241
    %2511 = vmatpush.bf16.msra.mxu0 %v2238
    %2512 = vmatmul.bf16.gmra.mxu0 %v658
    %v2513 = vpop.f32.mrf.mxu0
    %v2514 = vadd.f32 %v2475, %v2513
    %v2515 = vpop.f32.mrf.mxu0
    %v2516 = vadd.f32 %v2477, %v2515
    %2517 = vmatmul.bf16.gmra.mxu0 %v661
    %v2518 = vpop.f32.mrf.mxu0
    %v2519 = vadd.f32 %v2480, %v2518
    %v2520 = vpop.f32.mrf.mxu0
    %v2521 = vadd.f32 %v2482, %v2520
    %2522 = vmatmul.bf16.gmra.mxu0 %v664
    %v2523 = vpop.f32.mrf.mxu0
    %v2524 = vadd.f32 %v2485, %v2523
    %v2525 = vpop.f32.mrf.mxu0
    %v2526 = vadd.f32 %v2487, %v2525
    %2527 = vmatmul.bf16.gmra.mxu0 %v667
    %v2528 = vpop.f32.mrf.mxu0
    %v2529 = vadd.f32 %v2490, %v2528
    %v2530 = vpop.f32.mrf.mxu0
    %v2531 = vadd.f32 %v2492, %v2530
    %2532 = vmatmul.bf16.gmra.mxu0 %v670
    %v2533 = vpop.f32.mrf.mxu0
    %v2534 = vadd.f32 %v2495, %v2533
    %v2535 = vpop.f32.mrf.mxu0
    %v2536 = vadd.f32 %v2497, %v2535
    %2537 = vmatmul.bf16.gmra.mxu0 %v673
    %v2538 = vpop.f32.mrf.mxu0
    %v2539 = vadd.f32 %v2500, %v2538
    %v2540 = vpop.f32.mrf.mxu0
    %v2541 = vadd.f32 %v2502, %v2540
    %2542 = vdwg.mxu0
    %2543 = vmatpush.bf16.msra.mxu0 %v2212
    %2544 = vmatpush.bf16.msra.mxu0 %v2209
    %2545 = vmatpush.bf16.msra.mxu0 %v2206
    %2546 = vmatpush.bf16.msra.mxu0 %v2203
    %2547 = vmatpush.bf16.msra.mxu0 %v2200
    %2548 = vmatpush.bf16.msra.mxu0 %v2197
    %2549 = vmatpush.bf16.msra.mxu0 %v2194
    %2550 = vmatpush.bf16.msra.mxu0 %v2191
    %2551 = vmatmul.bf16.gmra.mxu0 %v325
    %v2552 = vpop.f32.mrf.mxu0
    %v2553 = vadd.f32 0.0, %v2552
    %v2554 = vpop.f32.mrf.mxu0
    %v2555 = vadd.f32 0.0, %v2554
    %2556 = vmatmul.bf16.gmra.mxu0 %v328
    %v2557 = vpop.f32.mrf.mxu0
    %v2558 = vadd.f32 0.0, %v2557
    %v2559 = vpop.f32.mrf.mxu0
    %v2560 = vadd.f32 0.0, %v2559
    %2561 = vmatmul.bf16.gmra.mxu0 %v331
    %v2562 = vpop.f32.mrf.mxu0
    %v2563 = vadd.f32 0.0, %v2562
    %v2564 = vpop.f32.mrf.mxu0
    %v2565 = vadd.f32 0.0, %v2564
    %2566 = vmatmul.bf16.gmra.mxu0 %v334
    %v2567 = vpop.f32.mrf.mxu0
    %v2568 = vadd.f32 0.0, %v2567
    %v2569 = vpop.f32.mrf.mxu0
    %v2570 = vadd.f32 0.0, %v2569
    %2571 = vmatmul.bf16.gmra.mxu0 %v337
    %v2572 = vpop.f32.mrf.mxu0
    %v2573 = vadd.f32 0.0, %v2572
    %v2574 = vpop.f32.mrf.mxu0
    %v2575 = vadd.f32 0.0, %v2574
    %2576 = vmatmul.bf16.gmra.mxu0 %v340
    %v2577 = vpop.f32.mrf.mxu0
    %v2578 = vadd.f32 0.0, %v2577
    %v2579 = vpop.f32.mrf.mxu0
    %v2580 = vadd.f32 0.0, %v2579
    %2581 = vdwg.mxu0
    %2582 = vmatpush.bf16.msra.mxu0 %v2236
    %2583 = vmatpush.bf16.msra.mxu0 %v2233
    %2584 = vmatpush.bf16.msra.mxu0 %v2230
    %2585 = vmatpush.bf16.msra.mxu0 %v2227
    %2586 = vmatpush.bf16.msra.mxu0 %v2224
    %2587 = vmatpush.bf16.msra.mxu0 %v2221
    %2588 = vmatpush.bf16.msra.mxu0 %v2218
    %2589 = vmatpush.bf16.msra.mxu0 %v2215
    %2590 = vmatmul.bf16.gmra.mxu0 %v326
    %v2591 = vpop.f32.mrf.mxu0
    %v2592 = vadd.f32 %v2553, %v2591
    %v2593 = vpop.f32.mrf.mxu0
    %v2594 = vadd.f32 %v2555, %v2593
    %2595 = vmatmul.bf16.gmra.mxu0 %v329
    %v2596 = vpop.f32.mrf.mxu0
    %v2597 = vadd.f32 %v2558, %v2596
    %v2598 = vpop.f32.mrf.mxu0
    %v2599 = vadd.f32 %v2560, %v2598
    %2600 = vmatmul.bf16.gmra.mxu0 %v332
    %v2601 = vpop.f32.mrf.mxu0
    %v2602 = vadd.f32 %v2563, %v2601
    %v2603 = vpop.f32.mrf.mxu0
    %v2604 = vadd.f32 %v2565, %v2603
    %2605 = vmatmul.bf16.gmra.mxu0 %v335
    %v2606 = vpop.f32.mrf.mxu0
    %v2607 = vadd.f32 %v2568, %v2606
    %v2608 = vpop.f32.mrf.mxu0
    %v2609 = vadd.f32 %v2570, %v2608
    %2610 = vmatmul.bf16.gmra.mxu0 %v338
    %v2611 = vpop.f32.mrf.mxu0
    %v2612 = vadd.f32 %v2573, %v2611
    %v2613 = vpop.f32.mrf.mxu0
    %v2614 = vadd.f32 %v2575, %v2613
    %2615 = vmatmul.bf16.gmra.mxu0 %v341
    %v2616 = vpop.f32.mrf.mxu0
    %v2617 = vadd.f32 %v2578, %v2616
    %v2618 = vpop.f32.mrf.mxu0
    %v2619 = vadd.f32 %v2580, %v2618
    %2620 = vdwg.mxu0
    %2621 = vmatpush.bf16.msra.mxu0 0
    %2622 = vmatpush.bf16.msra.mxu0 0
    %2623 = vmatpush.bf16.msra.mxu0 0
    %2624 = vmatpush.bf16.msra.mxu0 0
    %2625 = vmatpush.bf16.msra.mxu0 0
    %2626 = vmatpush.bf16.msra.mxu0 %v2307
    %2627 = vmatpush.bf16.msra.mxu0 %v2242
    %2628 = vmatpush.bf16.msra.mxu0 %v2239
    %2629 = vmatmul.bf16.gmra.mxu0 %v658
    %v2630 = vpop.f32.mrf.mxu0
    %v2631 = vadd.f32 %v2592, %v2630
    %v2632 = vpop.f32.mrf.mxu0
    %v2633 = vadd.f32 %v2594, %v2632
    %2634 = vmatmul.bf16.gmra.mxu0 %v661
    %v2635 = vpop.f32.mrf.mxu0
    %v2636 = vadd.f32 %v2597, %v2635
    %v2637 = vpop.f32.mrf.mxu0
    %v2638 = vadd.f32 %v2599, %v2637
    %2639 = vmatmul.bf16.gmra.mxu0 %v664
    %v2640 = vpop.f32.mrf.mxu0
    %v2641 = vadd.f32 %v2602, %v2640
    %v2642 = vpop.f32.mrf.mxu0
    %v2643 = vadd.f32 %v2604, %v2642
    %2644 = vmatmul.bf16.gmra.mxu0 %v667
    %v2645 = vpop.f32.mrf.mxu0
    %v2646 = vadd.f32 %v2607, %v2645
    %v2647 = vpop.f32.mrf.mxu0
    %v2648 = vadd.f32 %v2609, %v2647
    %2649 = vmatmul.bf16.gmra.mxu0 %v670
    %v2650 = vpop.f32.mrf.mxu0
    %v2651 = vadd.f32 %v2612, %v2650
    %v2652 = vpop.f32.mrf.mxu0
    %v2653 = vadd.f32 %v2614, %v2652
    %2654 = vmatmul.bf16.gmra.mxu0 %v673
    %v2655 = vpop.f32.mrf.mxu0
    %v2656 = vadd.f32 %v2617, %v2655
    %v2657 = vpop.f32.mrf.mxu0
    %v2658 = vadd.f32 %v2619, %v2657
    %2659 = vdwg.mxu0
    %v2660 = vrot.slane %v2397, 7
    %v2661 = vrot.slane %v2514, 7
    %v2662 = vrot.slane %v2631, 7
    %v2663 = vrot.slane %v2399, 7
    %v2664 = vrot.slane %v2516, 7
    %v2665 = vrot.slane %v2633, 7
    %v2666 = vrot.slane %v2402, 7
    %v2667 = vrot.slane %v2519, 7
    %v2668 = vrot.slane %v2636, 7
    %v2669 = vrot.slane %v2404, 7
    %v2670 = vrot.slane %v2521, 7
    %v2671 = vrot.slane %v2638, 7
    %v2672 = vrot.slane %v2407, 7
    %v2673 = vrot.slane %v2524, 7
    %v2674 = vrot.slane %v2641, 7
    %v2675 = vrot.slane %v2409, 7
    %v2676 = vrot.slane %v2526, 7
    %v2677 = vrot.slane %v2643, 7
    %v2678 = vrot.slane %v2412, 7
    %v2679 = vrot.slane %v2529, 7
    %v2680 = vrot.slane %v2646, 7
    %v2681 = vrot.slane %v2414, 7
    %v2682 = vrot.slane %v2531, 7
    %v2683 = vrot.slane %v2648, 7
    %v2684 = vrot.slane %v2417, 7
    %v2685 = vrot.slane %v2534, 7
    %v2686 = vrot.slane %v2651, 7
    %v2687 = vrot.slane %v2419, 7
    %v2688 = vrot.slane %v2536, 7
    %v2689 = vrot.slane %v2653, 7
    %v2690 = vrot.slane %v2422, 7
    %v2691 = vrot.slane %v2539, 7
    %v2692 = vrot.slane %v2656, 7
    %v2693 = vrot.slane %v2424, 7
    %v2694 = vrot.slane %v2541, 7
    %v2695 = vrot.slane %v2658, 7
    %vm2696 = vcmp.lt.s32.totalorder %v1073, 1
    %v2697 = vsel %vm2696, %v2687, %v2690
    %v2698 = vsel %vm2696, %v2688, %v2691
    %v2699 = vsel %vm2696, %v2689, %v2692
    %v2700 = vsel %vm2696, %v2684, %v2687
    %v2701 = vsel %vm2696, %v2685, %v2688
    %v2702 = vsel %vm2696, %v2686, %v2689
    %v2703 = vsel %vm2696, %v2678, %v2681
    %v2704 = vsel %vm2696, %v2679, %v2682
    %v2705 = vsel %vm2696, %v2680, %v2683
    %v2706 = vsel %vm2696, %v2675, %v2678
    %v2707 = vsel %vm2696, %v2676, %v2679
    %v2708 = vsel %vm2696, %v2677, %v2680
    %v2709 = vsel %vm2696, %v2669, %v2672
    %v2710 = vsel %vm2696, %v2670, %v2673
    %v2711 = vsel %vm2696, %v2671, %v2674
    %v2712 = vsel %vm2696, %v2666, %v2669
    %v2713 = vsel %vm2696, %v2667, %v2670
    %v2714 = vsel %vm2696, %v2668, %v2671
    %v2715 = vsel %vm2696, %v2660, %v2663
    %v2716 = vsel %vm2696, %v2661, %v2664
    %v2717 = vsel %vm2696, %v2662, %v2665
    %v2718 = vsel %vm2696, %v2693, %v2660
    %v2719 = vsel %vm2696, %v2694, %v2661
    %v2720 = vsel %vm2696, %v2695, %v2662
    %v2721 = vadd.f32 %v1898, %v2718
    %v2722 = vadd.f32 %v1899, %v2719
    %v2723 = vadd.f32 %v1900, %v2720
    %v2724 = vadd.f32 %v1901, %v2715
    %v2725 = vadd.f32 %v1902, %v2716
    %v2726 = vadd.f32 %v1903, %v2717
    %v2727 = vadd.f32 %v1904, %v2712
    %v2728 = vadd.f32 %v1905, %v2713
    %v2729 = vadd.f32 %v1906, %v2714
    %v2730 = vadd.f32 %v1907, %v2709
    %v2731 = vadd.f32 %v1908, %v2710
    %v2732 = vadd.f32 %v1909, %v2711
    %v2733 = vadd.f32 %v1910, %v2706
    %v2734 = vadd.f32 %v1911, %v2707
    %v2735 = vadd.f32 %v1912, %v2708
    %v2736 = vadd.f32 %v1913, %v2703
    %v2737 = vadd.f32 %v1914, %v2704
    %v2738 = vadd.f32 %v1915, %v2705
    %v2739 = vadd.f32 %v1916, %v2700
    %v2740 = vadd.f32 %v1917, %v2701
    %v2741 = vadd.f32 %v1918, %v2702
    %v2742 = vadd.f32 %v1919, %v2697
    %v2743 = vadd.f32 %v1920, %v2698
    %v2744 = vadd.f32 %v1921, %v2699
    %s2745 = scalar_lea.vmem [#allocation6], 1368
    %v2746 = vld [vmem:[%s2745] sm:$0xff]
    %v2747 = vld [vmem:[%s2745 + $0x8] sm:$0xf]
    %v2748 = vld [vmem:[%s2745 + $0xc] sm:$0xff]
    %v2749 = vld [vmem:[%s2745 + $0x14] sm:$0xf]
    %v2750 = vld [vmem:[%s2745 + $0x18] sm:$0xff]
    %v2751 = vld [vmem:[%s2745 + $0x20] sm:$0xf]
    %v2752 = vld [vmem:[%s2745 + $0x24] sm:$0xff]
    %v2753 = vld [vmem:[%s2745 + $0x2c] sm:$0xf]
    %v2754 = vld [vmem:[%s2745 + $0x30] sm:$0xff]
    %v2755 = vld [vmem:[%s2745 + $0x38] sm:$0xf]
    %v2756 = vld [vmem:[%s2745 + $0x3c] sm:$0xff]
    %v2757 = vld [vmem:[%s2745 + $0x44] sm:$0xf]
    %v2758 = vld [vmem:[%s2745 + $0x48] sm:$0xff]
    %v2759 = vld [vmem:[%s2745 + $0x50] sm:$0xf]
    %v2760 = vld [vmem:[%s2745 + $0x54] sm:$0xff]
    %v2761 = vld [vmem:[%s2745 + $0x5c] sm:$0xf]
    %v2762 = vld [vmem:[%s2745 + $0x60] sm:$0xff]
    %v2763 = vld [vmem:[%s2745 + $0x68] sm:$0xf]
    %v2764 = vld [vmem:[%s2745 + $0x6c] sm:$0xff]
    %v2765 = vld [vmem:[%s2745 + $0x74] sm:$0xf]
    %v2766 = vld [vmem:[%s2745 + $0x78] sm:$0xff]
    %v2767 = vld [vmem:[%s2745 + $0x80] sm:$0xf]
    %v2768 = vld [vmem:[%s2745 + $0x84] sm:$0xff]
    %v2769 = vld [vmem:[%s2745 + $0x8c] sm:$0xf]
    %v2770 = vld [vmem:[%s2745 + $0x90] sm:$0xff]
    %v2771 = vld [vmem:[%s2745 + $0x98] sm:$0xf]
    %v2772 = vld [vmem:[%s2745 + $0x9c] sm:$0xff]
    %v2773 = vld [vmem:[%s2745 + $0xa4] sm:$0xf]
    %v2774 = vld [vmem:[%s2745 + $0xa8] sm:$0xff]
    %v2775 = vld [vmem:[%s2745 + $0xb0] sm:$0xf]
    %v2776 = vld [vmem:[%s2745 + $0xb4] sm:$0xff]
    %v2777 = vld [vmem:[%s2745 + $0xbc] sm:$0xf]
    %v2778 = vld [vmem:[%s2745 + $0xc0] sm:$0xff]
    %v2779 = vld [vmem:[%s2745 + $0xc8] sm:$0xf]
    %v2780 = vld [vmem:[%s2745 + $0xcc] sm:$0xff]
    %v2781 = vld [vmem:[%s2745 + $0xd4] sm:$0xf]
    %v2782 = vld [vmem:[%s2745 + $0xd8] sm:$0xff]
    %v2783 = vld [vmem:[%s2745 + $0xe0] sm:$0xf]
    %v2784 = vld [vmem:[%s2745 + $0xe4] sm:$0xff]
    %v2785 = vld [vmem:[%s2745 + $0xec] sm:$0xf]
    %v2786 = vld [vmem:[%s2745 + $0xf0] sm:$0xff]
    %v2787 = vld [vmem:[%s2745 + $0xf8] sm:$0xf]
    %v2788 = vld [vmem:[%s2745 + $0xfc] sm:$0xff]
    %v2789 = vld [vmem:[%s2745 + $0x104] sm:$0xf]
    %v2790 = vld [vmem:[%s2745 + $0x108] sm:$0xff]
    %v2791 = vld [vmem:[%s2745 + $0x110] sm:$0xf]
    %v2792 = vld [vmem:[%s2745 + $0x114] sm:$0xff]
    %v2793 = vld [vmem:[%s2745 + $0x11c] sm:$0xf]
    %v2794 = vld [vmem:[%s2745 + $0x120] sm:$0xff]
    %v2795 = vld [vmem:[%s2745 + $0x128] sm:$0xf]
    %v2796 = vld [vmem:[%s2745 + $0x12c] sm:$0xff]
    %v2797 = vld [vmem:[%s2745 + $0x134] sm:$0xf]
    %v2798 = vld [vmem:[%s2745 + $0x138] sm:$0xff]
    %v2799 = vld [vmem:[%s2745 + $0x140] sm:$0xf]
    %v2800 = vld [vmem:[%s2745 + $0x144] sm:$0xff]
    %v2801 = vld [vmem:[%s2745 + $0x14c] sm:$0xf]
    %v2802 = vld [vmem:[%s2745 + $0x150] sm:$0xff]
    %v2803 = vld [vmem:[%s2745 + $0x158] sm:$0xf]
    %v2804 = vld [vmem:[%s2745 + $0x15c] sm:$0xff]
    %v2805 = vld [vmem:[%s2745 + $0x164] sm:$0xf]
    %v2806 = vld [vmem:[%s2745 + $0x168] sm:$0xff]
    %v2807 = vld [vmem:[%s2745 + $0x170] sm:$0xf]
    %v2808 = vld [vmem:[%s2745 + $0x174] sm:$0xff]
    %v2809 = vld [vmem:[%s2745 + $0x17c] sm:$0xf]
    %v2810 = vld [vmem:[%s2745 + $0x180] sm:$0xff]
    %v2811 = vld [vmem:[%s2745 + $0x188] sm:$0xf]
    %v2812 = vld [vmem:[%s2745 + $0x18c] sm:$0xff]
    %v2813 = vld [vmem:[%s2745 + $0x194] sm:$0xf]
    %v2814 = vld [vmem:[%s2745 + $0x198] sm:$0xff]
    %v2815 = vld [vmem:[%s2745 + $0x1a0] sm:$0xf]
    %v2816 = vld [vmem:[%s2745 + $0x1a4] sm:$0xff]
    %v2817 = vld [vmem:[%s2745 + $0x1ac] sm:$0xf]
    %v2818 = vld [vmem:[%s2745 + $0x1b0] sm:$0xff]
    %v2819 = vld [vmem:[%s2745 + $0x1b8] sm:$0xf]
    %v2820 = vld [vmem:[%s2745 + $0x1bc] sm:$0x33]
    %v2821 = vld [vmem:[%s2745 + $0x1c4] sm:$0x3]
    %v2898 = vunpack.c.l.b16 %v2746
    %v2899 = vunpack.c.h.b16 %v2746
    %v2900 = vunpack.c.l.b16 %v2747
    %v2901 = vunpack.c.l.b16 %v2748
    %v2902 = vunpack.c.h.b16 %v2748
    %v2903 = vunpack.c.l.b16 %v2749
    %v2904 = vunpack.c.l.b16 %v2750
    %v2905 = vunpack.c.h.b16 %v2750
    %v2906 = vunpack.c.l.b16 %v2751
    %v2907 = vunpack.c.l.b16 %v2752
    %v2908 = vunpack.c.h.b16 %v2752
    %v2909 = vunpack.c.l.b16 %v2753
    %v2910 = vunpack.c.l.b16 %v2754
    %v2911 = vunpack.c.h.b16 %v2754
    %v2912 = vunpack.c.l.b16 %v2755
    %v2913 = vunpack.c.l.b16 %v2756
    %v2914 = vunpack.c.h.b16 %v2756
    %v2915 = vunpack.c.l.b16 %v2757
    %v2916 = vunpack.c.l.b16 %v2758
    %v2917 = vunpack.c.h.b16 %v2758
    %v2918 = vunpack.c.l.b16 %v2759
    %v2919 = vunpack.c.l.b16 %v2760
    %v2920 = vunpack.c.h.b16 %v2760
    %v2921 = vunpack.c.l.b16 %v2761
    %v2922 = vunpack.c.l.b16 %v2762
    %v2923 = vunpack.c.h.b16 %v2762
    %v2924 = vunpack.c.l.b16 %v2763
    %v2925 = vunpack.c.l.b16 %v2764
    %v2926 = vunpack.c.h.b16 %v2764
    %v2927 = vunpack.c.l.b16 %v2765
    %v2928 = vunpack.c.l.b16 %v2766
    %v2929 = vunpack.c.h.b16 %v2766
    %v2930 = vunpack.c.l.b16 %v2767
    %v2931 = vunpack.c.l.b16 %v2768
    %v2932 = vunpack.c.h.b16 %v2768
    %v2933 = vunpack.c.l.b16 %v2769
    %v2934 = vunpack.c.l.b16 %v2770
    %v2935 = vunpack.c.h.b16 %v2770
    %v2936 = vunpack.c.l.b16 %v2771
    %v2937 = vunpack.c.l.b16 %v2772
    %v2938 = vunpack.c.h.b16 %v2772
    %v2939 = vunpack.c.l.b16 %v2773
    %v2940 = vunpack.c.l.b16 %v2774
    %v2941 = vunpack.c.h.b16 %v2774
    %v2942 = vunpack.c.l.b16 %v2775
    %v2943 = vunpack.c.l.b16 %v2776
    %v2944 = vunpack.c.h.b16 %v2776
    %v2945 = vunpack.c.l.b16 %v2777
    %v2946 = vunpack.c.l.b16 %v2778
    %v2947 = vunpack.c.h.b16 %v2778
    %v2948 = vunpack.c.l.b16 %v2779
    %v2949 = vunpack.c.l.b16 %v2780
    %v2950 = vunpack.c.h.b16 %v2780
    %v2951 = vunpack.c.l.b16 %v2781
    %v2952 = vunpack.c.l.b16 %v2782
    %v2953 = vunpack.c.h.b16 %v2782
    %v2954 = vunpack.c.l.b16 %v2783
    %v2955 = vunpack.c.l.b16 %v2784
    %v2956 = vunpack.c.h.b16 %v2784
    %v2957 = vunpack.c.l.b16 %v2785
    %v2958 = vunpack.c.l.b16 %v2786
    %v2959 = vunpack.c.h.b16 %v2786
    %v2960 = vunpack.c.l.b16 %v2787
    %v2961 = vunpack.c.l.b16 %v2788
    %v2962 = vunpack.c.h.b16 %v2788
    %v2963 = vunpack.c.l.b16 %v2789
    %v2964 = vunpack.c.l.b16 %v2790
    %v2965 = vunpack.c.h.b16 %v2790
    %v2966 = vunpack.c.l.b16 %v2791
    %v2967 = vunpack.c.l.b16 %v2792
    %v2968 = vunpack.c.h.b16 %v2792
    %v2969 = vunpack.c.l.b16 %v2793
    %v2970 = vunpack.c.l.b16 %v2794
    %v2971 = vunpack.c.h.b16 %v2794
    %v2972 = vunpack.c.l.b16 %v2795
    %v2973 = vunpack.c.l.b16 %v2796
    %v2974 = vunpack.c.h.b16 %v2796
    %v2975 = vunpack.c.l.b16 %v2797
    %v2976 = vunpack.c.l.b16 %v2798
    %v2977 = vunpack.c.h.b16 %v2798
    %v2978 = vunpack.c.l.b16 %v2799
    %v2979 = vunpack.c.l.b16 %v2800
    %v2980 = vunpack.c.h.b16 %v2800
    %v2981 = vunpack.c.l.b16 %v2801
    %v2982 = vunpack.c.l.b16 %v2802
    %v2983 = vunpack.c.h.b16 %v2802
    %v2984 = vunpack.c.l.b16 %v2803
    %v2985 = vunpack.c.l.b16 %v2804
    %v2986 = vunpack.c.h.b16 %v2804
    %v2987 = vunpack.c.l.b16 %v2805
    %v2988 = vunpack.c.l.b16 %v2806
    %v2989 = vunpack.c.h.b16 %v2806
    %v2990 = vunpack.c.l.b16 %v2807
    %v2991 = vunpack.c.l.b16 %v2808
    %v2992 = vunpack.c.h.b16 %v2808
    %v2993 = vunpack.c.l.b16 %v2809
    %v2994 = vunpack.c.l.b16 %v2810
    %v2995 = vunpack.c.h.b16 %v2810
    %v2996 = vunpack.c.l.b16 %v2811
    %v2997 = vunpack.c.l.b16 %v2812
    %v2998 = vunpack.c.h.b16 %v2812
    %v2999 = vunpack.c.l.b16 %v2813
    %v3000 = vunpack.c.l.b16 %v2814
    %v3001 = vunpack.c.h.b16 %v2814
    %v3002 = vunpack.c.l.b16 %v2815
    %v3003 = vunpack.c.l.b16 %v2816
    %v3004 = vunpack.c.h.b16 %v2816
    %v3005 = vunpack.c.l.b16 %v2817
    %v3006 = vunpack.c.l.b16 %v2818
    %v3007 = vunpack.c.h.b16 %v2818
    %v3008 = vunpack.c.l.b16 %v2819
    %v3009 = vunpack.c.l.b16 %v2820
    %v3010 = vunpack.c.h.b16 %v2820
    %v3011 = vunpack.c.l.b16 %v2821
    %v3012 = vpack.c.b16 %v2901, %v2898
    %v3013 = vpack.c.b16 %v2902, %v2899
    %v3014 = vpack.c.b16 %v2903, %v2900
    %v3015 = vpack.c.b16 %v2907, %v2904
    %v3016 = vpack.c.b16 %v2908, %v2905
    %v3017 = vpack.c.b16 %v2909, %v2906
    %v3018 = vpack.c.b16 %v2913, %v2910
    %v3019 = vpack.c.b16 %v2914, %v2911
    %v3020 = vpack.c.b16 %v2915, %v2912
    %v3021 = vpack.c.b16 %v2919, %v2916
    %v3022 = vpack.c.b16 %v2920, %v2917
    %v3023 = vpack.c.b16 %v2921, %v2918
    %v3024 = vpack.c.b16 %v2925, %v2922
    %v3025 = vpack.c.b16 %v2926, %v2923
    %v3026 = vpack.c.b16 %v2927, %v2924
    %v3027 = vpack.c.b16 %v2931, %v2928
    %v3028 = vpack.c.b16 %v2932, %v2929
    %v3029 = vpack.c.b16 %v2933, %v2930
    %v3030 = vpack.c.b16 %v2937, %v2934
    %v3031 = vpack.c.b16 %v2938, %v2935
    %v3032 = vpack.c.b16 %v2939, %v2936
    %v3033 = vpack.c.b16 %v2943, %v2940
    %v3034 = vpack.c.b16 %v2944, %v2941
    %v3035 = vpack.c.b16 %v2945, %v2942
    %v3036 = vpack.c.b16 %v2949, %v2946
    %v3037 = vpack.c.b16 %v2950, %v2947
    %v3038 = vpack.c.b16 %v2951, %v2948
    %v3039 = vpack.c.b16 %v2955, %v2952
    %v3040 = vpack.c.b16 %v2956, %v2953
    %v3041 = vpack.c.b16 %v2957, %v2954
    %v3042 = vpack.c.b16 %v2961, %v2958
    %v3043 = vpack.c.b16 %v2962, %v2959
    %v3044 = vpack.c.b16 %v2963, %v2960
    %v3045 = vpack.c.b16 %v2967, %v2964
    %v3046 = vpack.c.b16 %v2968, %v2965
    %v3047 = vpack.c.b16 %v2969, %v2966
    %v3048 = vpack.c.b16 %v2973, %v2970
    %v3049 = vpack.c.b16 %v2974, %v2971
    %v3050 = vpack.c.b16 %v2975, %v2972
    %v3051 = vpack.c.b16 %v2979, %v2976
    %v3052 = vpack.c.b16 %v2980, %v2977
    %v3053 = vpack.c.b16 %v2981, %v2978
    %v3054 = vpack.c.b16 %v2985, %v2982
    %v3055 = vpack.c.b16 %v2986, %v2983
    %v3056 = vpack.c.b16 %v2987, %v2984
    %v3057 = vpack.c.b16 %v2991, %v2988
    %v3058 = vpack.c.b16 %v2992, %v2989
    %v3059 = vpack.c.b16 %v2993, %v2990
    %v3060 = vpack.c.b16 %v2997, %v2994
    %v3061 = vpack.c.b16 %v2998, %v2995
    %v3062 = vpack.c.b16 %v2999, %v2996
    %v3063 = vpack.c.b16 %v3003, %v3000
    %v3064 = vpack.c.b16 %v3004, %v3001
    %v3065 = vpack.c.b16 %v3005, %v3002
    %v3066 = vpack.c.b16 %v3009, %v3006
    %v3067 = vpack.c.b16 %v3010, %v3007
    %v3068 = vpack.c.b16 %v3011, %v3008
    %v3124 = vsel %vm675, %v3066, 0
    %v3127 = vsel %vm675, %v3067, 0
    %v3130 = vsel %vm675, %v3068, 0
    %3132 = vmatpush.bf16.msra.mxu0 %v3033
    %3133 = vmatpush.bf16.msra.mxu0 %v3030
    %3134 = vmatpush.bf16.msra.mxu0 %v3027
    %3135 = vmatpush.bf16.msra.mxu0 %v3024
    %3136 = vmatpush.bf16.msra.mxu0 %v3021
    %3137 = vmatpush.bf16.msra.mxu0 %v3018
    %3138 = vmatpush.bf16.msra.mxu0 %v3015
    %3139 = vmatpush.bf16.msra.mxu0 %v3012
    %3140 = vmatmul.bf16.gmra.mxu0 %v325
    %v3141 = vpop.f32.mrf.mxu0
    %v3142 = vadd.f32 0.0, %v3141
    %v3143 = vpop.f32.mrf.mxu0
    %v3144 = vadd.f32 0.0, %v3143
    %3145 = vmatmul.bf16.gmra.mxu0 %v328
    %v3146 = vpop.f32.mrf.mxu0
    %v3147 = vpop.f32.mrf.mxu0
    %v3148 = vadd.f32 0.0, %v3147
    %3149 = vmatmul.bf16.gmra.mxu0 %v331
    %v3150 = vpop.f32.mrf.mxu0
    %v3151 = vadd.f32 0.0, %v3150
    %v3152 = vpop.f32.mrf.mxu0
    %3153 = vmatmul.bf16.gmra.mxu0 %v334
    %v3154 = vpop.f32.mrf.mxu0
    %v3155 = vadd.f32 0.0, %v3154
    %v3156 = vpop.f32.mrf.mxu0
    %v3157 = vadd.f32 0.0, %v3156
    %3158 = vmatmul.bf16.gmra.mxu0 %v337
    %v3159 = vpop.f32.mrf.mxu0
    %v3160 = vpop.f32.mrf.mxu0
    %v3161 = vadd.f32 0.0, %v3160
    %3162 = vmatmul.bf16.gmra.mxu0 %v340
    %v3163 = vpop.f32.mrf.mxu0
    %v3164 = vadd.f32 0.0, %v3163
    %v3165 = vpop.f32.mrf.mxu0
    %3166 = vdwg.mxu0
    %3167 = vmatpush.bf16.msra.mxu0 %v3057
    %3168 = vmatpush.bf16.msra.mxu0 %v3054
    %3169 = vmatpush.bf16.msra.mxu0 %v3051
    %3170 = vmatpush.bf16.msra.mxu0 %v3048
    %3171 = vmatpush.bf16.msra.mxu0 %v3045
    %3172 = vmatpush.bf16.msra.mxu0 %v3042
    %3173 = vmatpush.bf16.msra.mxu0 %v3039
    %3174 = vmatpush.bf16.msra.mxu0 %v3036
    %3175 = vmatmul.bf16.gmra.mxu0 %v326
    %v3176 = vpop.f32.mrf.mxu0
    %v3177 = vadd.f32 %v3142, %v3176
    %v3178 = vpop.f32.mrf.mxu0
    %v3179 = vadd.f32 %v3144, %v3178
    %3180 = vmatmul.bf16.gmra.mxu0 %v329
    %v3181 = vpop.f32.mrf.mxu0
    %v3182 = vpop.f32.mrf.mxu0
    %v3183 = vadd.f32 %v3148, %v3182
    %3184 = vmatmul.bf16.gmra.mxu0 %v332
    %v3185 = vpop.f32.mrf.mxu0
    %v3186 = vadd.f32 %v3151, %v3185
    %v3187 = vpop.f32.mrf.mxu0
    %3188 = vmatmul.bf16.gmra.mxu0 %v335
    %v3189 = vpop.f32.mrf.mxu0
    %v3190 = vadd.f32 %v3155, %v3189
    %v3191 = vpop.f32.mrf.mxu0
    %v3192 = vadd.f32 %v3157, %v3191
    %3193 = vmatmul.bf16.gmra.mxu0 %v338
    %v3194 = vpop.f32.mrf.mxu0
    %v3195 = vpop.f32.mrf.mxu0
    %v3196 = vadd.f32 %v3161, %v3195
    %3197 = vmatmul.bf16.gmra.mxu0 %v341
    %v3198 = vpop.f32.mrf.mxu0
    %v3199 = vadd.f32 %v3164, %v3198
    %v3200 = vpop.f32.mrf.mxu0
    %3201 = vdwg.mxu0
    %3202 = vmatpush.bf16.msra.mxu0 0
    %3203 = vmatpush.bf16.msra.mxu0 0
    %3204 = vmatpush.bf16.msra.mxu0 0
    %3205 = vmatpush.bf16.msra.mxu0 0
    %3206 = vmatpush.bf16.msra.mxu0 0
    %3207 = vmatpush.bf16.msra.mxu0 %v3124
    %3208 = vmatpush.bf16.msra.mxu0 %v3063
    %3209 = vmatpush.bf16.msra.mxu0 %v3060
    %3210 = vmatmul.bf16.gmra.mxu0 %v658
    %v3211 = vpop.f32.mrf.mxu0
    %v3212 = vadd.f32 %v3177, %v3211
    %v3213 = vpop.f32.mrf.mxu0
    %v3214 = vadd.f32 %v3179, %v3213
    %3215 = vmatmul.bf16.gmra.mxu0 %v661
    %v3216 = vpop.f32.mrf.mxu0
    %v3217 = vpop.f32.mrf.mxu0
    %v3218 = vadd.f32 %v3183, %v3217
    %3219 = vmatmul.bf16.gmra.mxu0 %v664
    %v3220 = vpop.f32.mrf.mxu0
    %v3221 = vadd.f32 %v3186, %v3220
    %v3222 = vpop.f32.mrf.mxu0
    %3223 = vmatmul.bf16.gmra.mxu0 %v667
    %v3224 = vpop.f32.mrf.mxu0
    %v3225 = vadd.f32 %v3190, %v3224
    %v3226 = vpop.f32.mrf.mxu0
    %v3227 = vadd.f32 %v3192, %v3226
    %3228 = vmatmul.bf16.gmra.mxu0 %v670
    %v3229 = vpop.f32.mrf.mxu0
    %v3230 = vpop.f32.mrf.mxu0
    %v3231 = vadd.f32 %v3196, %v3230
    %3232 = vmatmul.bf16.gmra.mxu0 %v673
    %v3233 = vpop.f32.mrf.mxu0
    %v3234 = vadd.f32 %v3199, %v3233
    %v3235 = vpop.f32.mrf.mxu0
    %3236 = vdwg.mxu0
    %3237 = vmatpush.bf16.msra.mxu0 %v3034
    %3238 = vmatpush.bf16.msra.mxu0 %v3031
    %3239 = vmatpush.bf16.msra.mxu0 %v3028
    %3240 = vmatpush.bf16.msra.mxu0 %v3025
    %3241 = vmatpush.bf16.msra.mxu0 %v3022
    %3242 = vmatpush.bf16.msra.mxu0 %v3019
    %3243 = vmatpush.bf16.msra.mxu0 %v3016
    %3244 = vmatpush.bf16.msra.mxu0 %v3013
    %3245 = vmatmul.bf16.gmra.mxu0 %v325
    %v3246 = vpop.f32.mrf.mxu0
    %v3247 = vadd.f32 0.0, %v3246
    %v3248 = vpop.f32.mrf.mxu0
    %v3249 = vadd.f32 0.0, %v3248
    %3250 = vmatmul.bf16.gmra.mxu0 %v328
    %v3251 = vpop.f32.mrf.mxu0
    %v3252 = vpop.f32.mrf.mxu0
    %v3253 = vadd.f32 0.0, %v3252
    %3254 = vmatmul.bf16.gmra.mxu0 %v331
    %v3255 = vpop.f32.mrf.mxu0
    %v3256 = vadd.f32 0.0, %v3255
    %v3257 = vpop.f32.mrf.mxu0
    %3258 = vmatmul.bf16.gmra.mxu0 %v334
    %v3259 = vpop.f32.mrf.mxu0
    %v3260 = vadd.f32 0.0, %v3259
    %v3261 = vpop.f32.mrf.mxu0
    %v3262 = vadd.f32 0.0, %v3261
    %3263 = vmatmul.bf16.gmra.mxu0 %v337
    %v3264 = vpop.f32.mrf.mxu0
    %v3265 = vpop.f32.mrf.mxu0
    %v3266 = vadd.f32 0.0, %v3265
    %3267 = vmatmul.bf16.gmra.mxu0 %v340
    %v3268 = vpop.f32.mrf.mxu0
    %v3269 = vadd.f32 0.0, %v3268
    %v3270 = vpop.f32.mrf.mxu0
    %3271 = vdwg.mxu0
    %3272 = vmatpush.bf16.msra.mxu0 %v3058
    %3273 = vmatpush.bf16.msra.mxu0 %v3055
    %3274 = vmatpush.bf16.msra.mxu0 %v3052
    %3275 = vmatpush.bf16.msra.mxu0 %v3049
    %3276 = vmatpush.bf16.msra.mxu0 %v3046
    %3277 = vmatpush.bf16.msra.mxu0 %v3043
    %3278 = vmatpush.bf16.msra.mxu0 %v3040
    %3279 = vmatpush.bf16.msra.mxu0 %v3037
    %3280 = vmatmul.bf16.gmra.mxu0 %v326
    %v3281 = vpop.f32.mrf.mxu0
    %v3282 = vadd.f32 %v3247, %v3281
    %v3283 = vpop.f32.mrf.mxu0
    %v3284 = vadd.f32 %v3249, %v3283
    %3285 = vmatmul.bf16.gmra.mxu0 %v329
    %v3286 = vpop.f32.mrf.mxu0
    %v3287 = vpop.f32.mrf.mxu0
    %v3288 = vadd.f32 %v3253, %v3287
    %3289 = vmatmul.bf16.gmra.mxu0 %v332
    %v3290 = vpop.f32.mrf.mxu0
    %v3291 = vadd.f32 %v3256, %v3290
    %v3292 = vpop.f32.mrf.mxu0
    %3293 = vmatmul.bf16.gmra.mxu0 %v335
    %v3294 = vpop.f32.mrf.mxu0
    %v3295 = vadd.f32 %v3260, %v3294
    %v3296 = vpop.f32.mrf.mxu0
    %v3297 = vadd.f32 %v3262, %v3296
    %3298 = vmatmul.bf16.gmra.mxu0 %v338
    %v3299 = vpop.f32.mrf.mxu0
    %v3300 = vpop.f32.mrf.mxu0
    %v3301 = vadd.f32 %v3266, %v3300
    %3302 = vmatmul.bf16.gmra.mxu0 %v341
    %v3303 = vpop.f32.mrf.mxu0
    %v3304 = vadd.f32 %v3269, %v3303
    %v3305 = vpop.f32.mrf.mxu0
    %3306 = vdwg.mxu0
    %3307 = vmatpush.bf16.msra.mxu0 0
    %3308 = vmatpush.bf16.msra.mxu0 0
    %3309 = vmatpush.bf16.msra.mxu0 0
    %3310 = vmatpush.bf16.msra.mxu0 0
    %3311 = vmatpush.bf16.msra.mxu0 0
    %3312 = vmatpush.bf16.msra.mxu0 %v3127
    %3313 = vmatpush.bf16.msra.mxu0 %v3064
    %3314 = vmatpush.bf16.msra.mxu0 %v3061
    %3315 = vmatmul.bf16.gmra.mxu0 %v658
    %v3316 = vpop.f32.mrf.mxu0
    %v3317 = vadd.f32 %v3282, %v3316
    %v3318 = vpop.f32.mrf.mxu0
    %v3319 = vadd.f32 %v3284, %v3318
    %3320 = vmatmul.bf16.gmra.mxu0 %v661
    %v3321 = vpop.f32.mrf.mxu0
    %v3322 = vpop.f32.mrf.mxu0
    %v3323 = vadd.f32 %v3288, %v3322
    %3324 = vmatmul.bf16.gmra.mxu0 %v664
    %v3325 = vpop.f32.mrf.mxu0
    %v3326 = vadd.f32 %v3291, %v3325
    %v3327 = vpop.f32.mrf.mxu0
    %3328 = vmatmul.bf16.gmra.mxu0 %v667
    %v3329 = vpop.f32.mrf.mxu0
    %v3330 = vadd.f32 %v3295, %v3329
    %v3331 = vpop.f32.mrf.mxu0
    %v3332 = vadd.f32 %v3297, %v3331
    %3333 = vmatmul.bf16.gmra.mxu0 %v670
    %v3334 = vpop.f32.mrf.mxu0
    %v3335 = vpop.f32.mrf.mxu0
    %v3336 = vadd.f32 %v3301, %v3335
    %3337 = vmatmul.bf16.gmra.mxu0 %v673
    %v3338 = vpop.f32.mrf.mxu0
    %v3339 = vadd.f32 %v3304, %v3338
    %v3340 = vpop.f32.mrf.mxu0
    %3341 = vdwg.mxu0
    %3342 = vmatpush.bf16.msra.mxu0 %v3035
    %3343 = vmatpush.bf16.msra.mxu0 %v3032
    %3344 = vmatpush.bf16.msra.mxu0 %v3029
    %3345 = vmatpush.bf16.msra.mxu0 %v3026
    %3346 = vmatpush.bf16.msra.mxu0 %v3023
    %3347 = vmatpush.bf16.msra.mxu0 %v3020
    %3348 = vmatpush.bf16.msra.mxu0 %v3017
    %3349 = vmatpush.bf16.msra.mxu0 %v3014
    %3350 = vmatmul.bf16.gmra.mxu0 %v325
    %v3351 = vpop.f32.mrf.mxu0
    %v3352 = vadd.f32 0.0, %v3351
    %v3353 = vpop.f32.mrf.mxu0
    %v3354 = vadd.f32 0.0, %v3353
    %3355 = vmatmul.bf16.gmra.mxu0 %v328
    %v3356 = vpop.f32.mrf.mxu0
    %v3357 = vpop.f32.mrf.mxu0
    %v3358 = vadd.f32 0.0, %v3357
    %3359 = vmatmul.bf16.gmra.mxu0 %v331
    %v3360 = vpop.f32.mrf.mxu0
    %v3361 = vadd.f32 0.0, %v3360
    %v3362 = vpop.f32.mrf.mxu0
    %3363 = vmatmul.bf16.gmra.mxu0 %v334
    %v3364 = vpop.f32.mrf.mxu0
    %v3365 = vadd.f32 0.0, %v3364
    %v3366 = vpop.f32.mrf.mxu0
    %v3367 = vadd.f32 0.0, %v3366
    %3368 = vmatmul.bf16.gmra.mxu0 %v337
    %v3369 = vpop.f32.mrf.mxu0
    %v3370 = vpop.f32.mrf.mxu0
    %v3371 = vadd.f32 0.0, %v3370
    %3372 = vmatmul.bf16.gmra.mxu0 %v340
    %v3373 = vpop.f32.mrf.mxu0
    %v3374 = vadd.f32 0.0, %v3373
    %v3375 = vpop.f32.mrf.mxu0
    %3376 = vdwg.mxu0
    %3377 = vmatpush.bf16.msra.mxu0 %v3059
    %3378 = vmatpush.bf16.msra.mxu0 %v3056
    %3379 = vmatpush.bf16.msra.mxu0 %v3053
    %3380 = vmatpush.bf16.msra.mxu0 %v3050
    %3381 = vmatpush.bf16.msra.mxu0 %v3047
    %3382 = vmatpush.bf16.msra.mxu0 %v3044
    %3383 = vmatpush.bf16.msra.mxu0 %v3041
    %3384 = vmatpush.bf16.msra.mxu0 %v3038
    %3385 = vmatmul.bf16.gmra.mxu0 %v326
    %v3386 = vpop.f32.mrf.mxu0
    %v3387 = vadd.f32 %v3352, %v3386
    %v3388 = vpop.f32.mrf.mxu0
    %v3389 = vadd.f32 %v3354, %v3388
    %3390 = vmatmul.bf16.gmra.mxu0 %v329
    %v3391 = vpop.f32.mrf.mxu0
    %v3392 = vpop.f32.mrf.mxu0
    %v3393 = vadd.f32 %v3358, %v3392
    %3394 = vmatmul.bf16.gmra.mxu0 %v332
    %v3395 = vpop.f32.mrf.mxu0
    %v3396 = vadd.f32 %v3361, %v3395
    %v3397 = vpop.f32.mrf.mxu0
    %3398 = vmatmul.bf16.gmra.mxu0 %v335
    %v3399 = vpop.f32.mrf.mxu0
    %v3400 = vadd.f32 %v3365, %v3399
    %v3401 = vpop.f32.mrf.mxu0
    %v3402 = vadd.f32 %v3367, %v3401
    %3403 = vmatmul.bf16.gmra.mxu0 %v338
    %v3404 = vpop.f32.mrf.mxu0
    %v3405 = vpop.f32.mrf.mxu0
    %v3406 = vadd.f32 %v3371, %v3405
    %3407 = vmatmul.bf16.gmra.mxu0 %v341
    %v3408 = vpop.f32.mrf.mxu0
    %v3409 = vadd.f32 %v3374, %v3408
    %v3410 = vpop.f32.mrf.mxu0
    %3411 = vdwg.mxu0
    %3412 = vmatpush.bf16.msra.mxu0 0
    %3413 = vmatpush.bf16.msra.mxu0 0
    %3414 = vmatpush.bf16.msra.mxu0 0
    %3415 = vmatpush.bf16.msra.mxu0 0
    %3416 = vmatpush.bf16.msra.mxu0 0
    %3417 = vmatpush.bf16.msra.mxu0 %v3130
    %3418 = vmatpush.bf16.msra.mxu0 %v3065
    %3419 = vmatpush.bf16.msra.mxu0 %v3062
    %3420 = vmatmul.bf16.gmra.mxu0 %v658
    %v3421 = vpop.f32.mrf.mxu0
    %v3422 = vadd.f32 %v3387, %v3421
    %v3423 = vpop.f32.mrf.mxu0
    %v3424 = vadd.f32 %v3389, %v3423
    %3425 = vmatmul.bf16.gmra.mxu0 %v661
    %v3426 = vpop.f32.mrf.mxu0
    %v3427 = vpop.f32.mrf.mxu0
    %v3428 = vadd.f32 %v3393, %v3427
    %3429 = vmatmul.bf16.gmra.mxu0 %v664
    %v3430 = vpop.f32.mrf.mxu0
    %v3431 = vadd.f32 %v3396, %v3430
    %v3432 = vpop.f32.mrf.mxu0
    %3433 = vmatmul.bf16.gmra.mxu0 %v667
    %v3434 = vpop.f32.mrf.mxu0
    %v3435 = vadd.f32 %v3400, %v3434
    %v3436 = vpop.f32.mrf.mxu0
    %v3437 = vadd.f32 %v3402, %v3436
    %3438 = vmatmul.bf16.gmra.mxu0 %v670
    %v3439 = vpop.f32.mrf.mxu0
    %v3440 = vpop.f32.mrf.mxu0
    %v3441 = vadd.f32 %v3406, %v3440
    %3442 = vmatmul.bf16.gmra.mxu0 %v673
    %v3443 = vpop.f32.mrf.mxu0
    %v3444 = vadd.f32 %v3409, %v3443
    %v3445 = vpop.f32.mrf.mxu0
    %3446 = vdwg.mxu0
    %v3447 = vadd.f32 %v2721, %v3212
    %v3448 = vadd.f32 %v2722, %v3317
    %v3449 = vadd.f32 %v2723, %v3422
    %v3450 = vadd.f32 %v2724, %v3214
    %v3451 = vadd.f32 %v2725, %v3319
    %v3452 = vadd.f32 %v2726, %v3424
    %v3453 = vadd.f32 %v2727, %v3218
    %v3454 = vadd.f32 %v2728, %v3323
    %v3455 = vadd.f32 %v2729, %v3428
    %v3456 = vadd.f32 %v2730, %v3221
    %v3457 = vadd.f32 %v2731, %v3326
    %v3458 = vadd.f32 %v2732, %v3431
    %v3459 = vadd.f32 %v2733, %v3225
    %v3460 = vadd.f32 %v2734, %v3330
    %v3461 = vadd.f32 %v2735, %v3435
    %v3462 = vadd.f32 %v2736, %v3227
    %v3463 = vadd.f32 %v2737, %v3332
    %v3464 = vadd.f32 %v2738, %v3437
    %v3465 = vadd.f32 %v2739, %v3231
    %v3466 = vadd.f32 %v2740, %v3336
    %v3467 = vadd.f32 %v2741, %v3441
    %v3468 = vadd.f32 %v2742, %v3234
    %v3469 = vadd.f32 %v2743, %v3339
    %v3470 = vadd.f32 %v2744, %v3444
    %s3471 = scalar_lea.vmem [#allocation6], 1824
    %v3472 = vld [vmem:[%s3471] sm:$0xff]
    %v3473 = vld [vmem:[%s3471 + $0x8] sm:$0xf]
    %v3474 = vld [vmem:[%s3471 + $0xc] sm:$0xff]
    %v3475 = vld [vmem:[%s3471 + $0x14] sm:$0xf]
    %v3476 = vld [vmem:[%s3471 + $0x18] sm:$0xff]
    %v3477 = vld [vmem:[%s3471 + $0x20] sm:$0xf]
    %v3478 = vld [vmem:[%s3471 + $0x24] sm:$0xff]
    %v3479 = vld [vmem:[%s3471 + $0x2c] sm:$0xf]
    %v3480 = vld [vmem:[%s3471 + $0x30] sm:$0xff]
    %v3481 = vld [vmem:[%s3471 + $0x38] sm:$0xf]
    %v3482 = vld [vmem:[%s3471 + $0x3c] sm:$0xff]
    %v3483 = vld [vmem:[%s3471 + $0x44] sm:$0xf]
    %v3484 = vld [vmem:[%s3471 + $0x48] sm:$0xff]
    %v3485 = vld [vmem:[%s3471 + $0x50] sm:$0xf]
    %v3486 = vld [vmem:[%s3471 + $0x54] sm:$0xff]
    %v3487 = vld [vmem:[%s3471 + $0x5c] sm:$0xf]
    %v3488 = vld [vmem:[%s3471 + $0x60] sm:$0xff]
    %v3489 = vld [vmem:[%s3471 + $0x68] sm:$0xf]
    %v3490 = vld [vmem:[%s3471 + $0x6c] sm:$0xff]
    %v3491 = vld [vmem:[%s3471 + $0x74] sm:$0xf]
    %v3492 = vld [vmem:[%s3471 + $0x78] sm:$0xff]
    %v3493 = vld [vmem:[%s3471 + $0x80] sm:$0xf]
    %v3494 = vld [vmem:[%s3471 + $0x84] sm:$0xff]
    %v3495 = vld [vmem:[%s3471 + $0x8c] sm:$0xf]
    %v3496 = vld [vmem:[%s3471 + $0x90] sm:$0xff]
    %v3497 = vld [vmem:[%s3471 + $0x98] sm:$0xf]
    %v3498 = vld [vmem:[%s3471 + $0x9c] sm:$0xff]
    %v3499 = vld [vmem:[%s3471 + $0xa4] sm:$0xf]
    %v3500 = vld [vmem:[%s3471 + $0xa8] sm:$0xff]
    %v3501 = vld [vmem:[%s3471 + $0xb0] sm:$0xf]
    %v3502 = vld [vmem:[%s3471 + $0xb4] sm:$0xff]
    %v3503 = vld [vmem:[%s3471 + $0xbc] sm:$0xf]
    %v3504 = vld [vmem:[%s3471 + $0xc0] sm:$0xff]
    %v3505 = vld [vmem:[%s3471 + $0xc8] sm:$0xf]
    %v3506 = vld [vmem:[%s3471 + $0xcc] sm:$0xff]
    %v3507 = vld [vmem:[%s3471 + $0xd4] sm:$0xf]
    %v3508 = vld [vmem:[%s3471 + $0xd8] sm:$0xff]
    %v3509 = vld [vmem:[%s3471 + $0xe0] sm:$0xf]
    %v3510 = vld [vmem:[%s3471 + $0xe4] sm:$0xff]
    %v3511 = vld [vmem:[%s3471 + $0xec] sm:$0xf]
    %v3512 = vld [vmem:[%s3471 + $0xf0] sm:$0xff]
    %v3513 = vld [vmem:[%s3471 + $0xf8] sm:$0xf]
    %v3514 = vld [vmem:[%s3471 + $0xfc] sm:$0xff]
    %v3515 = vld [vmem:[%s3471 + $0x104] sm:$0xf]
    %v3516 = vld [vmem:[%s3471 + $0x108] sm:$0xff]
    %v3517 = vld [vmem:[%s3471 + $0x110] sm:$0xf]
    %v3518 = vld [vmem:[%s3471 + $0x114] sm:$0xff]
    %v3519 = vld [vmem:[%s3471 + $0x11c] sm:$0xf]
    %v3520 = vld [vmem:[%s3471 + $0x120] sm:$0xff]
    %v3521 = vld [vmem:[%s3471 + $0x128] sm:$0xf]
    %v3522 = vld [vmem:[%s3471 + $0x12c] sm:$0xff]
    %v3523 = vld [vmem:[%s3471 + $0x134] sm:$0xf]
    %v3524 = vld [vmem:[%s3471 + $0x138] sm:$0xff]
    %v3525 = vld [vmem:[%s3471 + $0x140] sm:$0xf]
    %v3526 = vld [vmem:[%s3471 + $0x144] sm:$0xff]
    %v3527 = vld [vmem:[%s3471 + $0x14c] sm:$0xf]
    %v3528 = vld [vmem:[%s3471 + $0x150] sm:$0xff]
    %v3529 = vld [vmem:[%s3471 + $0x158] sm:$0xf]
    %v3530 = vld [vmem:[%s3471 + $0x15c] sm:$0xff]
    %v3531 = vld [vmem:[%s3471 + $0x164] sm:$0xf]
    %v3532 = vld [vmem:[%s3471 + $0x168] sm:$0xff]
    %v3533 = vld [vmem:[%s3471 + $0x170] sm:$0xf]
    %v3534 = vld [vmem:[%s3471 + $0x174] sm:$0xff]
    %v3535 = vld [vmem:[%s3471 + $0x17c] sm:$0xf]
    %v3536 = vld [vmem:[%s3471 + $0x180] sm:$0xff]
    %v3537 = vld [vmem:[%s3471 + $0x188] sm:$0xf]
    %v3538 = vld [vmem:[%s3471 + $0x18c] sm:$0xff]
    %v3539 = vld [vmem:[%s3471 + $0x194] sm:$0xf]
    %v3540 = vld [vmem:[%s3471 + $0x198] sm:$0xff]
    %v3541 = vld [vmem:[%s3471 + $0x1a0] sm:$0xf]
    %v3542 = vld [vmem:[%s3471 + $0x1a4] sm:$0xff]
    %v3543 = vld [vmem:[%s3471 + $0x1ac] sm:$0xf]
    %v3544 = vld [vmem:[%s3471 + $0x1b0] sm:$0xff]
    %v3545 = vld [vmem:[%s3471 + $0x1b8] sm:$0xf]
    %v3546 = vld [vmem:[%s3471 + $0x1bc] sm:$0x33]
    %v3547 = vld [vmem:[%s3471 + $0x1c4] sm:$0x3]
    %v3624 = vunpack.c.l.b16 %v3472
    %v3625 = vunpack.c.h.b16 %v3472
    %v3626 = vunpack.c.l.b16 %v3473
    %v3627 = vunpack.c.l.b16 %v3474
    %v3628 = vunpack.c.h.b16 %v3474
    %v3629 = vunpack.c.l.b16 %v3475
    %v3630 = vunpack.c.l.b16 %v3476
    %v3631 = vunpack.c.h.b16 %v3476
    %v3632 = vunpack.c.l.b16 %v3477
    %v3633 = vunpack.c.l.b16 %v3478
    %v3634 = vunpack.c.h.b16 %v3478
    %v3635 = vunpack.c.l.b16 %v3479
    %v3636 = vunpack.c.l.b16 %v3480
    %v3637 = vunpack.c.h.b16 %v3480
    %v3638 = vunpack.c.l.b16 %v3481
    %v3639 = vunpack.c.l.b16 %v3482
    %v3640 = vunpack.c.h.b16 %v3482
    %v3641 = vunpack.c.l.b16 %v3483
    %v3642 = vunpack.c.l.b16 %v3484
    %v3643 = vunpack.c.h.b16 %v3484
    %v3644 = vunpack.c.l.b16 %v3485
    %v3645 = vunpack.c.l.b16 %v3486
    %v3646 = vunpack.c.h.b16 %v3486
    %v3647 = vunpack.c.l.b16 %v3487
    %v3648 = vunpack.c.l.b16 %v3488
    %v3649 = vunpack.c.h.b16 %v3488
    %v3650 = vunpack.c.l.b16 %v3489
    %v3651 = vunpack.c.l.b16 %v3490
    %v3652 = vunpack.c.h.b16 %v3490
    %v3653 = vunpack.c.l.b16 %v3491
    %v3654 = vunpack.c.l.b16 %v3492
    %v3655 = vunpack.c.h.b16 %v3492
    %v3656 = vunpack.c.l.b16 %v3493
    %v3657 = vunpack.c.l.b16 %v3494
    %v3658 = vunpack.c.h.b16 %v3494
    %v3659 = vunpack.c.l.b16 %v3495
    %v3660 = vunpack.c.l.b16 %v3496
    %v3661 = vunpack.c.h.b16 %v3496
    %v3662 = vunpack.c.l.b16 %v3497
    %v3663 = vunpack.c.l.b16 %v3498
    %v3664 = vunpack.c.h.b16 %v3498
    %v3665 = vunpack.c.l.b16 %v3499
    %v3666 = vunpack.c.l.b16 %v3500
    %v3667 = vunpack.c.h.b16 %v3500
    %v3668 = vunpack.c.l.b16 %v3501
    %v3669 = vunpack.c.l.b16 %v3502
    %v3670 = vunpack.c.h.b16 %v3502
    %v3671 = vunpack.c.l.b16 %v3503
    %v3672 = vunpack.c.l.b16 %v3504
    %v3673 = vunpack.c.h.b16 %v3504
    %v3674 = vunpack.c.l.b16 %v3505
    %v3675 = vunpack.c.l.b16 %v3506
    %v3676 = vunpack.c.h.b16 %v3506
    %v3677 = vunpack.c.l.b16 %v3507
    %v3678 = vunpack.c.l.b16 %v3508
    %v3679 = vunpack.c.h.b16 %v3508
    %v3680 = vunpack.c.l.b16 %v3509
    %v3681 = vunpack.c.l.b16 %v3510
    %v3682 = vunpack.c.h.b16 %v3510
    %v3683 = vunpack.c.l.b16 %v3511
    %v3684 = vunpack.c.l.b16 %v3512
    %v3685 = vunpack.c.h.b16 %v3512
    %v3686 = vunpack.c.l.b16 %v3513
    %v3687 = vunpack.c.l.b16 %v3514
    %v3688 = vunpack.c.h.b16 %v3514
    %v3689 = vunpack.c.l.b16 %v3515
    %v3690 = vunpack.c.l.b16 %v3516
    %v3691 = vunpack.c.h.b16 %v3516
    %v3692 = vunpack.c.l.b16 %v3517
    %v3693 = vunpack.c.l.b16 %v3518
    %v3694 = vunpack.c.h.b16 %v3518
    %v3695 = vunpack.c.l.b16 %v3519
    %v3696 = vunpack.c.l.b16 %v3520
    %v3697 = vunpack.c.h.b16 %v3520
    %v3698 = vunpack.c.l.b16 %v3521
    %v3699 = vunpack.c.l.b16 %v3522
    %v3700 = vunpack.c.h.b16 %v3522
    %v3701 = vunpack.c.l.b16 %v3523
    %v3702 = vunpack.c.l.b16 %v3524
    %v3703 = vunpack.c.h.b16 %v3524
    %v3704 = vunpack.c.l.b16 %v3525
    %v3705 = vunpack.c.l.b16 %v3526
    %v3706 = vunpack.c.h.b16 %v3526
    %v3707 = vunpack.c.l.b16 %v3527
    %v3708 = vunpack.c.l.b16 %v3528
    %v3709 = vunpack.c.h.b16 %v3528
    %v3710 = vunpack.c.l.b16 %v3529
    %v3711 = vunpack.c.l.b16 %v3530
    %v3712 = vunpack.c.h.b16 %v3530
    %v3713 = vunpack.c.l.b16 %v3531
    %v3714 = vunpack.c.l.b16 %v3532
    %v3715 = vunpack.c.h.b16 %v3532
    %v3716 = vunpack.c.l.b16 %v3533
    %v3717 = vunpack.c.l.b16 %v3534
    %v3718 = vunpack.c.h.b16 %v3534
    %v3719 = vunpack.c.l.b16 %v3535
    %v3720 = vunpack.c.l.b16 %v3536
    %v3721 = vunpack.c.h.b16 %v3536
    %v3722 = vunpack.c.l.b16 %v3537
    %v3723 = vunpack.c.l.b16 %v3538
    %v3724 = vunpack.c.h.b16 %v3538
    %v3725 = vunpack.c.l.b16 %v3539
    %v3726 = vunpack.c.l.b16 %v3540
    %v3727 = vunpack.c.h.b16 %v3540
    %v3728 = vunpack.c.l.b16 %v3541
    %v3729 = vunpack.c.l.b16 %v3542
    %v3730 = vunpack.c.h.b16 %v3542
    %v3731 = vunpack.c.l.b16 %v3543
    %v3732 = vunpack.c.l.b16 %v3544
    %v3733 = vunpack.c.h.b16 %v3544
    %v3734 = vunpack.c.l.b16 %v3545
    %v3735 = vunpack.c.l.b16 %v3546
    %v3736 = vunpack.c.h.b16 %v3546
    %v3737 = vunpack.c.l.b16 %v3547
    %v3738 = vpack.c.b16 %v3627, %v3624
    %v3739 = vpack.c.b16 %v3628, %v3625
    %v3740 = vpack.c.b16 %v3629, %v3626
    %v3741 = vpack.c.b16 %v3633, %v3630
    %v3742 = vpack.c.b16 %v3634, %v3631
    %v3743 = vpack.c.b16 %v3635, %v3632
    %v3744 = vpack.c.b16 %v3639, %v3636
    %v3745 = vpack.c.b16 %v3640, %v3637
    %v3746 = vpack.c.b16 %v3641, %v3638
    %v3747 = vpack.c.b16 %v3645, %v3642
    %v3748 = vpack.c.b16 %v3646, %v3643
    %v3749 = vpack.c.b16 %v3647, %v3644
    %v3750 = vpack.c.b16 %v3651, %v3648
    %v3751 = vpack.c.b16 %v3652, %v3649
    %v3752 = vpack.c.b16 %v3653, %v3650
    %v3753 = vpack.c.b16 %v3657, %v3654
    %v3754 = vpack.c.b16 %v3658, %v3655
    %v3755 = vpack.c.b16 %v3659, %v3656
    %v3756 = vpack.c.b16 %v3663, %v3660
    %v3757 = vpack.c.b16 %v3664, %v3661
    %v3758 = vpack.c.b16 %v3665, %v3662
    %v3759 = vpack.c.b16 %v3669, %v3666
    %v3760 = vpack.c.b16 %v3670, %v3667
    %v3761 = vpack.c.b16 %v3671, %v3668
    %v3762 = vpack.c.b16 %v3675, %v3672
    %v3763 = vpack.c.b16 %v3676, %v3673
    %v3764 = vpack.c.b16 %v3677, %v3674
    %v3765 = vpack.c.b16 %v3681, %v3678
    %v3766 = vpack.c.b16 %v3682, %v3679
    %v3767 = vpack.c.b16 %v3683, %v3680
    %v3768 = vpack.c.b16 %v3687, %v3684
    %v3769 = vpack.c.b16 %v3688, %v3685
    %v3770 = vpack.c.b16 %v3689, %v3686
    %v3771 = vpack.c.b16 %v3693, %v3690
    %v3772 = vpack.c.b16 %v3694, %v3691
    %v3773 = vpack.c.b16 %v3695, %v3692
    %v3774 = vpack.c.b16 %v3699, %v3696
    %v3775 = vpack.c.b16 %v3700, %v3697
    %v3776 = vpack.c.b16 %v3701, %v3698
    %v3777 = vpack.c.b16 %v3705, %v3702
    %v3778 = vpack.c.b16 %v3706, %v3703
    %v3779 = vpack.c.b16 %v3707, %v3704
    %v3780 = vpack.c.b16 %v3711, %v3708
    %v3781 = vpack.c.b16 %v3712, %v3709
    %v3782 = vpack.c.b16 %v3713, %v3710
    %v3783 = vpack.c.b16 %v3717, %v3714
    %v3784 = vpack.c.b16 %v3718, %v3715
    %v3785 = vpack.c.b16 %v3719, %v3716
    %v3786 = vpack.c.b16 %v3723, %v3720
    %v3787 = vpack.c.b16 %v3724, %v3721
    %v3788 = vpack.c.b16 %v3725, %v3722
    %v3789 = vpack.c.b16 %v3729, %v3726
    %v3790 = vpack.c.b16 %v3730, %v3727
    %v3791 = vpack.c.b16 %v3731, %v3728
    %v3792 = vpack.c.b16 %v3735, %v3732
    %v3793 = vpack.c.b16 %v3736, %v3733
    %v3794 = vpack.c.b16 %v3737, %v3734
    %v3850 = vsel %vm675, %v3792, 0
    %v3853 = vsel %vm675, %v3793, 0
    %v3856 = vsel %vm675, %v3794, 0
    %3858 = vmatpush.bf16.msra.mxu0 %v3759
    %3859 = vmatpush.bf16.msra.mxu0 %v3756
    %3860 = vmatpush.bf16.msra.mxu0 %v3753
    %3861 = vmatpush.bf16.msra.mxu0 %v3750
    %3862 = vmatpush.bf16.msra.mxu0 %v3747
    %3863 = vmatpush.bf16.msra.mxu0 %v3744
    %3864 = vmatpush.bf16.msra.mxu0 %v3741
    %3865 = vmatpush.bf16.msra.mxu0 %v3738
    %3866 = vmatmul.bf16.gmra.mxu0 %v325
    %v3867 = vpop.f32.mrf.mxu0
    %v3868 = vadd.f32 0.0, %v3867
    %v3869 = vpop.f32.mrf.mxu0
    %v3870 = vadd.f32 0.0, %v3869
    %3871 = vmatmul.bf16.gmra.mxu0 %v328
    %v3872 = vpop.f32.mrf.mxu0
    %v3873 = vadd.f32 0.0, %v3872
    %v3874 = vpop.f32.mrf.mxu0
    %v3875 = vadd.f32 0.0, %v3874
    %3876 = vmatmul.bf16.gmra.mxu0 %v331
    %v3877 = vpop.f32.mrf.mxu0
    %v3878 = vadd.f32 0.0, %v3877
    %v3879 = vpop.f32.mrf.mxu0
    %v3880 = vadd.f32 0.0, %v3879
    %3881 = vmatmul.bf16.gmra.mxu0 %v334
    %v3882 = vpop.f32.mrf.mxu0
    %v3883 = vadd.f32 0.0, %v3882
    %v3884 = vpop.f32.mrf.mxu0
    %v3885 = vadd.f32 0.0, %v3884
    %3886 = vmatmul.bf16.gmra.mxu0 %v337
    %v3887 = vpop.f32.mrf.mxu0
    %v3888 = vadd.f32 0.0, %v3887
    %v3889 = vpop.f32.mrf.mxu0
    %v3890 = vadd.f32 0.0, %v3889
    %3891 = vmatmul.bf16.gmra.mxu0 %v340
    %v3892 = vpop.f32.mrf.mxu0
    %v3893 = vadd.f32 0.0, %v3892
    %v3894 = vpop.f32.mrf.mxu0
    %v3895 = vadd.f32 0.0, %v3894
    %3896 = vdwg.mxu0
    %3897 = vmatpush.bf16.msra.mxu0 %v3783
    %3898 = vmatpush.bf16.msra.mxu0 %v3780
    %3899 = vmatpush.bf16.msra.mxu0 %v3777
    %3900 = vmatpush.bf16.msra.mxu0 %v3774
    %3901 = vmatpush.bf16.msra.mxu0 %v3771
    %3902 = vmatpush.bf16.msra.mxu0 %v3768
    %3903 = vmatpush.bf16.msra.mxu0 %v3765
    %3904 = vmatpush.bf16.msra.mxu0 %v3762
    %3905 = vmatmul.bf16.gmra.mxu0 %v326
    %v3906 = vpop.f32.mrf.mxu0
    %v3907 = vadd.f32 %v3868, %v3906
    %v3908 = vpop.f32.mrf.mxu0
    %v3909 = vadd.f32 %v3870, %v3908
    %3910 = vmatmul.bf16.gmra.mxu0 %v329
    %v3911 = vpop.f32.mrf.mxu0
    %v3912 = vadd.f32 %v3873, %v3911
    %v3913 = vpop.f32.mrf.mxu0
    %v3914 = vadd.f32 %v3875, %v3913
    %3915 = vmatmul.bf16.gmra.mxu0 %v332
    %v3916 = vpop.f32.mrf.mxu0
    %v3917 = vadd.f32 %v3878, %v3916
    %v3918 = vpop.f32.mrf.mxu0
    %v3919 = vadd.f32 %v3880, %v3918
    %3920 = vmatmul.bf16.gmra.mxu0 %v335
    %v3921 = vpop.f32.mrf.mxu0
    %v3922 = vadd.f32 %v3883, %v3921
    %v3923 = vpop.f32.mrf.mxu0
    %v3924 = vadd.f32 %v3885, %v3923
    %3925 = vmatmul.bf16.gmra.mxu0 %v338
    %v3926 = vpop.f32.mrf.mxu0
    %v3927 = vadd.f32 %v3888, %v3926
    %v3928 = vpop.f32.mrf.mxu0
    %v3929 = vadd.f32 %v3890, %v3928
    %3930 = vmatmul.bf16.gmra.mxu0 %v341
    %v3931 = vpop.f32.mrf.mxu0
    %v3932 = vadd.f32 %v3893, %v3931
    %v3933 = vpop.f32.mrf.mxu0
    %v3934 = vadd.f32 %v3895, %v3933
    %3935 = vdwg.mxu0
    %3936 = vmatpush.bf16.msra.mxu0 0
    %3937 = vmatpush.bf16.msra.mxu0 0
    %3938 = vmatpush.bf16.msra.mxu0 0
    %3939 = vmatpush.bf16.msra.mxu0 0
    %3940 = vmatpush.bf16.msra.mxu0 0
    %3941 = vmatpush.bf16.msra.mxu0 %v3850
    %3942 = vmatpush.bf16.msra.mxu0 %v3789
    %3943 = vmatpush.bf16.msra.mxu0 %v3786
    %3944 = vmatmul.bf16.gmra.mxu0 %v658
    %v3945 = vpop.f32.mrf.mxu0
    %v3946 = vadd.f32 %v3907, %v3945
    %v3947 = vpop.f32.mrf.mxu0
    %v3948 = vadd.f32 %v3909, %v3947
    %3949 = vmatmul.bf16.gmra.mxu0 %v661
    %v3950 = vpop.f32.mrf.mxu0
    %v3951 = vadd.f32 %v3912, %v3950
    %v3952 = vpop.f32.mrf.mxu0
    %v3953 = vadd.f32 %v3914, %v3952
    %3954 = vmatmul.bf16.gmra.mxu0 %v664
    %v3955 = vpop.f32.mrf.mxu0
    %v3956 = vadd.f32 %v3917, %v3955
    %v3957 = vpop.f32.mrf.mxu0
    %v3958 = vadd.f32 %v3919, %v3957
    %3959 = vmatmul.bf16.gmra.mxu0 %v667
    %v3960 = vpop.f32.mrf.mxu0
    %v3961 = vadd.f32 %v3922, %v3960
    %v3962 = vpop.f32.mrf.mxu0
    %v3963 = vadd.f32 %v3924, %v3962
    %3964 = vmatmul.bf16.gmra.mxu0 %v670
    %v3965 = vpop.f32.mrf.mxu0
    %v3966 = vadd.f32 %v3927, %v3965
    %v3967 = vpop.f32.mrf.mxu0
    %v3968 = vadd.f32 %v3929, %v3967
    %3969 = vmatmul.bf16.gmra.mxu0 %v673
    %v3970 = vpop.f32.mrf.mxu0
    %v3971 = vadd.f32 %v3932, %v3970
    %v3972 = vpop.f32.mrf.mxu0
    %v3973 = vadd.f32 %v3934, %v3972
    %3974 = vdwg.mxu0
    %3975 = vmatpush.bf16.msra.mxu0 %v3760
    %3976 = vmatpush.bf16.msra.mxu0 %v3757
    %3977 = vmatpush.bf16.msra.mxu0 %v3754
    %3978 = vmatpush.bf16.msra.mxu0 %v3751
    %3979 = vmatpush.bf16.msra.mxu0 %v3748
    %3980 = vmatpush.bf16.msra.mxu0 %v3745
    %3981 = vmatpush.bf16.msra.mxu0 %v3742
    %3982 = vmatpush.bf16.msra.mxu0 %v3739
    %3983 = vmatmul.bf16.gmra.mxu0 %v325
    %v3984 = vpop.f32.mrf.mxu0
    %v3985 = vadd.f32 0.0, %v3984
    %v3986 = vpop.f32.mrf.mxu0
    %v3987 = vadd.f32 0.0, %v3986
    %3988 = vmatmul.bf16.gmra.mxu0 %v328
    %v3989 = vpop.f32.mrf.mxu0
    %v3990 = vadd.f32 0.0, %v3989
    %v3991 = vpop.f32.mrf.mxu0
    %v3992 = vadd.f32 0.0, %v3991
    %3993 = vmatmul.bf16.gmra.mxu0 %v331
    %v3994 = vpop.f32.mrf.mxu0
    %v3995 = vadd.f32 0.0, %v3994
    %v3996 = vpop.f32.mrf.mxu0
    %v3997 = vadd.f32 0.0, %v3996
    %3998 = vmatmul.bf16.gmra.mxu0 %v334
    %v3999 = vpop.f32.mrf.mxu0
    %v4000 = vadd.f32 0.0, %v3999
    %v4001 = vpop.f32.mrf.mxu0
    %v4002 = vadd.f32 0.0, %v4001
    %4003 = vmatmul.bf16.gmra.mxu0 %v337
    %v4004 = vpop.f32.mrf.mxu0
    %v4005 = vadd.f32 0.0, %v4004
    %v4006 = vpop.f32.mrf.mxu0
    %v4007 = vadd.f32 0.0, %v4006
    %4008 = vmatmul.bf16.gmra.mxu0 %v340
    %v4009 = vpop.f32.mrf.mxu0
    %v4010 = vadd.f32 0.0, %v4009
    %v4011 = vpop.f32.mrf.mxu0
    %v4012 = vadd.f32 0.0, %v4011
    %4013 = vdwg.mxu0
    %4014 = vmatpush.bf16.msra.mxu0 %v3784
    %4015 = vmatpush.bf16.msra.mxu0 %v3781
    %4016 = vmatpush.bf16.msra.mxu0 %v3778
    %4017 = vmatpush.bf16.msra.mxu0 %v3775
    %4018 = vmatpush.bf16.msra.mxu0 %v3772
    %4019 = vmatpush.bf16.msra.mxu0 %v3769
    %4020 = vmatpush.bf16.msra.mxu0 %v3766
    %4021 = vmatpush.bf16.msra.mxu0 %v3763
    %4022 = vmatmul.bf16.gmra.mxu0 %v326
    %v4023 = vpop.f32.mrf.mxu0
    %v4024 = vadd.f32 %v3985, %v4023
    %v4025 = vpop.f32.mrf.mxu0
    %v4026 = vadd.f32 %v3987, %v4025
    %4027 = vmatmul.bf16.gmra.mxu0 %v329
    %v4028 = vpop.f32.mrf.mxu0
    %v4029 = vadd.f32 %v3990, %v4028
    %v4030 = vpop.f32.mrf.mxu0
    %v4031 = vadd.f32 %v3992, %v4030
    %4032 = vmatmul.bf16.gmra.mxu0 %v332
    %v4033 = vpop.f32.mrf.mxu0
    %v4034 = vadd.f32 %v3995, %v4033
    %v4035 = vpop.f32.mrf.mxu0
    %v4036 = vadd.f32 %v3997, %v4035
    %4037 = vmatmul.bf16.gmra.mxu0 %v335
    %v4038 = vpop.f32.mrf.mxu0
    %v4039 = vadd.f32 %v4000, %v4038
    %v4040 = vpop.f32.mrf.mxu0
    %v4041 = vadd.f32 %v4002, %v4040
    %4042 = vmatmul.bf16.gmra.mxu0 %v338
    %v4043 = vpop.f32.mrf.mxu0
    %v4044 = vadd.f32 %v4005, %v4043
    %v4045 = vpop.f32.mrf.mxu0
    %v4046 = vadd.f32 %v4007, %v4045
    %4047 = vmatmul.bf16.gmra.mxu0 %v341
    %v4048 = vpop.f32.mrf.mxu0
    %v4049 = vadd.f32 %v4010, %v4048
    %v4050 = vpop.f32.mrf.mxu0
    %v4051 = vadd.f32 %v4012, %v4050
    %4052 = vdwg.mxu0
    %4053 = vmatpush.bf16.msra.mxu0 0
    %4054 = vmatpush.bf16.msra.mxu0 0
    %4055 = vmatpush.bf16.msra.mxu0 0
    %4056 = vmatpush.bf16.msra.mxu0 0
    %4057 = vmatpush.bf16.msra.mxu0 0
    %4058 = vmatpush.bf16.msra.mxu0 %v3853
    %4059 = vmatpush.bf16.msra.mxu0 %v3790
    %4060 = vmatpush.bf16.msra.mxu0 %v3787
    %4061 = vmatmul.bf16.gmra.mxu0 %v658
    %v4062 = vpop.f32.mrf.mxu0
    %v4063 = vadd.f32 %v4024, %v4062
    %v4064 = vpop.f32.mrf.mxu0
    %v4065 = vadd.f32 %v4026, %v4064
    %4066 = vmatmul.bf16.gmra.mxu0 %v661
    %v4067 = vpop.f32.mrf.mxu0
    %v4068 = vadd.f32 %v4029, %v4067
    %v4069 = vpop.f32.mrf.mxu0
    %v4070 = vadd.f32 %v4031, %v4069
    %4071 = vmatmul.bf16.gmra.mxu0 %v664
    %v4072 = vpop.f32.mrf.mxu0
    %v4073 = vadd.f32 %v4034, %v4072
    %v4074 = vpop.f32.mrf.mxu0
    %v4075 = vadd.f32 %v4036, %v4074
    %4076 = vmatmul.bf16.gmra.mxu0 %v667
    %v4077 = vpop.f32.mrf.mxu0
    %v4078 = vadd.f32 %v4039, %v4077
    %v4079 = vpop.f32.mrf.mxu0
    %v4080 = vadd.f32 %v4041, %v4079
    %4081 = vmatmul.bf16.gmra.mxu0 %v670
    %v4082 = vpop.f32.mrf.mxu0
    %v4083 = vadd.f32 %v4044, %v4082
    %v4084 = vpop.f32.mrf.mxu0
    %v4085 = vadd.f32 %v4046, %v4084
    %4086 = vmatmul.bf16.gmra.mxu0 %v673
    %v4087 = vpop.f32.mrf.mxu0
    %v4088 = vadd.f32 %v4049, %v4087
    %v4089 = vpop.f32.mrf.mxu0
    %v4090 = vadd.f32 %v4051, %v4089
    %4091 = vdwg.mxu0
    %4092 = vmatpush.bf16.msra.mxu0 %v3761
    %4093 = vmatpush.bf16.msra.mxu0 %v3758
    %4094 = vmatpush.bf16.msra.mxu0 %v3755
    %4095 = vmatpush.bf16.msra.mxu0 %v3752
    %4096 = vmatpush.bf16.msra.mxu0 %v3749
    %4097 = vmatpush.bf16.msra.mxu0 %v3746
    %4098 = vmatpush.bf16.msra.mxu0 %v3743
    %4099 = vmatpush.bf16.msra.mxu0 %v3740
    %4100 = vmatmul.bf16.gmra.mxu0 %v325
    %v4101 = vpop.f32.mrf.mxu0
    %v4102 = vadd.f32 0.0, %v4101
    %v4103 = vpop.f32.mrf.mxu0
    %v4104 = vadd.f32 0.0, %v4103
    %4105 = vmatmul.bf16.gmra.mxu0 %v328
    %v4106 = vpop.f32.mrf.mxu0
    %v4107 = vadd.f32 0.0, %v4106
    %v4108 = vpop.f32.mrf.mxu0
    %v4109 = vadd.f32 0.0, %v4108
    %4110 = vmatmul.bf16.gmra.mxu0 %v331
    %v4111 = vpop.f32.mrf.mxu0
    %v4112 = vadd.f32 0.0, %v4111
    %v4113 = vpop.f32.mrf.mxu0
    %v4114 = vadd.f32 0.0, %v4113
    %4115 = vmatmul.bf16.gmra.mxu0 %v334
    %v4116 = vpop.f32.mrf.mxu0
    %v4117 = vadd.f32 0.0, %v4116
    %v4118 = vpop.f32.mrf.mxu0
    %v4119 = vadd.f32 0.0, %v4118
    %4120 = vmatmul.bf16.gmra.mxu0 %v337
    %v4121 = vpop.f32.mrf.mxu0
    %v4122 = vadd.f32 0.0, %v4121
    %v4123 = vpop.f32.mrf.mxu0
    %v4124 = vadd.f32 0.0, %v4123
    %4125 = vmatmul.bf16.gmra.mxu0 %v340
    %v4126 = vpop.f32.mrf.mxu0
    %v4127 = vadd.f32 0.0, %v4126
    %v4128 = vpop.f32.mrf.mxu0
    %v4129 = vadd.f32 0.0, %v4128
    %4130 = vdwg.mxu0
    %4131 = vmatpush.bf16.msra.mxu0 %v3785
    %4132 = vmatpush.bf16.msra.mxu0 %v3782
    %4133 = vmatpush.bf16.msra.mxu0 %v3779
    %4134 = vmatpush.bf16.msra.mxu0 %v3776
    %4135 = vmatpush.bf16.msra.mxu0 %v3773
    %4136 = vmatpush.bf16.msra.mxu0 %v3770
    %4137 = vmatpush.bf16.msra.mxu0 %v3767
    %4138 = vmatpush.bf16.msra.mxu0 %v3764
    %4139 = vmatmul.bf16.gmra.mxu0 %v326
    %v4140 = vpop.f32.mrf.mxu0
    %v4141 = vadd.f32 %v4102, %v4140
    %v4142 = vpop.f32.mrf.mxu0
    %v4143 = vadd.f32 %v4104, %v4142
    %4144 = vmatmul.bf16.gmra.mxu0 %v329
    %v4145 = vpop.f32.mrf.mxu0
    %v4146 = vadd.f32 %v4107, %v4145
    %v4147 = vpop.f32.mrf.mxu0
    %v4148 = vadd.f32 %v4109, %v4147
    %4149 = vmatmul.bf16.gmra.mxu0 %v332
    %v4150 = vpop.f32.mrf.mxu0
    %v4151 = vadd.f32 %v4112, %v4150
    %v4152 = vpop.f32.mrf.mxu0
    %v4153 = vadd.f32 %v4114, %v4152
    %4154 = vmatmul.bf16.gmra.mxu0 %v335
    %v4155 = vpop.f32.mrf.mxu0
    %v4156 = vadd.f32 %v4117, %v4155
    %v4157 = vpop.f32.mrf.mxu0
    %v4158 = vadd.f32 %v4119, %v4157
    %4159 = vmatmul.bf16.gmra.mxu0 %v338
    %v4160 = vpop.f32.mrf.mxu0
    %v4161 = vadd.f32 %v4122, %v4160
    %v4162 = vpop.f32.mrf.mxu0
    %v4163 = vadd.f32 %v4124, %v4162
    %4164 = vmatmul.bf16.gmra.mxu0 %v341
    %v4165 = vpop.f32.mrf.mxu0
    %v4166 = vadd.f32 %v4127, %v4165
    %v4167 = vpop.f32.mrf.mxu0
    %v4168 = vadd.f32 %v4129, %v4167
    %4169 = vdwg.mxu0
    %4170 = vmatpush.bf16.msra.mxu0 0
    %4171 = vmatpush.bf16.msra.mxu0 0
    %4172 = vmatpush.bf16.msra.mxu0 0
    %4173 = vmatpush.bf16.msra.mxu0 0
    %4174 = vmatpush.bf16.msra.mxu0 0
    %4175 = vmatpush.bf16.msra.mxu0 %v3856
    %4176 = vmatpush.bf16.msra.mxu0 %v3791
    %4177 = vmatpush.bf16.msra.mxu0 %v3788
    %4178 = vmatmul.bf16.gmra.mxu0 %v658
    %v4179 = vpop.f32.mrf.mxu0
    %v4180 = vadd.f32 %v4141, %v4179
    %v4181 = vpop.f32.mrf.mxu0
    %v4182 = vadd.f32 %v4143, %v4181
    %4183 = vmatmul.bf16.gmra.mxu0 %v661
    %v4184 = vpop.f32.mrf.mxu0
    %v4185 = vadd.f32 %v4146, %v4184
    %v4186 = vpop.f32.mrf.mxu0
    %v4187 = vadd.f32 %v4148, %v4186
    %4188 = vmatmul.bf16.gmra.mxu0 %v664
    %v4189 = vpop.f32.mrf.mxu0
    %v4190 = vadd.f32 %v4151, %v4189
    %v4191 = vpop.f32.mrf.mxu0
    %v4192 = vadd.f32 %v4153, %v4191
    %4193 = vmatmul.bf16.gmra.mxu0 %v667
    %v4194 = vpop.f32.mrf.mxu0
    %v4195 = vadd.f32 %v4156, %v4194
    %v4196 = vpop.f32.mrf.mxu0
    %v4197 = vadd.f32 %v4158, %v4196
    %4198 = vmatmul.bf16.gmra.mxu0 %v670
    %v4199 = vpop.f32.mrf.mxu0
    %v4200 = vadd.f32 %v4161, %v4199
    %v4201 = vpop.f32.mrf.mxu0
    %v4202 = vadd.f32 %v4163, %v4201
    %4203 = vmatmul.bf16.gmra.mxu0 %v673
    %v4204 = vpop.f32.mrf.mxu0
    %v4205 = vadd.f32 %v4166, %v4204
    %v4206 = vpop.f32.mrf.mxu0
    %v4207 = vadd.f32 %v4168, %v4206
    %4208 = vdwg.mxu0
    %v4209 = vrot.slane %v3946, 1
    %v4210 = vrot.slane %v4063, 1
    %v4211 = vrot.slane %v4180, 1
    %v4212 = vrot.slane %v3948, 1
    %v4213 = vrot.slane %v4065, 1
    %v4214 = vrot.slane %v4182, 1
    %v4215 = vrot.slane %v3951, 1
    %v4216 = vrot.slane %v4068, 1
    %v4217 = vrot.slane %v4185, 1
    %v4218 = vrot.slane %v3953, 1
    %v4219 = vrot.slane %v4070, 1
    %v4220 = vrot.slane %v4187, 1
    %v4221 = vrot.slane %v3956, 1
    %v4222 = vrot.slane %v4073, 1
    %v4223 = vrot.slane %v4190, 1
    %v4224 = vrot.slane %v3958, 1
    %v4225 = vrot.slane %v4075, 1
    %v4226 = vrot.slane %v4192, 1
    %v4227 = vrot.slane %v3961, 1
    %v4228 = vrot.slane %v4078, 1
    %v4229 = vrot.slane %v4195, 1
    %v4230 = vrot.slane %v3963, 1
    %v4231 = vrot.slane %v4080, 1
    %v4232 = vrot.slane %v4197, 1
    %v4233 = vrot.slane %v3966, 1
    %v4234 = vrot.slane %v4083, 1
    %v4235 = vrot.slane %v4200, 1
    %v4236 = vrot.slane %v3968, 1
    %v4237 = vrot.slane %v4085, 1
    %v4238 = vrot.slane %v4202, 1
    %v4239 = vrot.slane %v3971, 1
    %v4240 = vrot.slane %v4088, 1
    %v4241 = vrot.slane %v4205, 1
    %v4242 = vrot.slane %v3973, 1
    %v4243 = vrot.slane %v4090, 1
    %v4244 = vrot.slane %v4207, 1
    %vm4245 = vcmp.lt.s32.totalorder %v1073, 7
    %v4246 = vsel %vm4245, %v4239, %v4242
    %v4247 = vsel %vm4245, %v4240, %v4243
    %v4248 = vsel %vm4245, %v4241, %v4244
    %v4249 = vsel %vm4245, %v4236, %v4239
    %v4250 = vsel %vm4245, %v4237, %v4240
    %v4251 = vsel %vm4245, %v4238, %v4241
    %v4252 = vsel %vm4245, %v4230, %v4233
    %v4253 = vsel %vm4245, %v4231, %v4234
    %v4254 = vsel %vm4245, %v4232, %v4235
    %v4255 = vsel %vm4245, %v4227, %v4230
    %v4256 = vsel %vm4245, %v4228, %v4231
    %v4257 = vsel %vm4245, %v4229, %v4232
    %v4258 = vsel %vm4245, %v4221, %v4224
    %v4259 = vsel %vm4245, %v4222, %v4225
    %v4260 = vsel %vm4245, %v4223, %v4226
    %v4261 = vsel %vm4245, %v4218, %v4221
    %v4262 = vsel %vm4245, %v4219, %v4222
    %v4263 = vsel %vm4245, %v4220, %v4223
    %v4264 = vsel %vm4245, %v4212, %v4215
    %v4265 = vsel %vm4245, %v4213, %v4216
    %v4266 = vsel %vm4245, %v4214, %v4217
    %v4267 = vsel %vm4245, %v4209, %v4212
    %v4268 = vsel %vm4245, %v4210, %v4213
    %v4269 = vsel %vm4245, %v4211, %v4214
    %v4270 = vadd.f32 %v3447, %v4267
    %v4271 = vadd.f32 %v3448, %v4268
    %v4272 = vadd.f32 %v3449, %v4269
    %v4273 = vadd.f32 %v3450, %v4264
    %v4274 = vadd.f32 %v3451, %v4265
    %v4275 = vadd.f32 %v3452, %v4266
    %v4276 = vadd.f32 %v3453, %v4261
    %v4277 = vadd.f32 %v3454, %v4262
    %v4278 = vadd.f32 %v3455, %v4263
    %v4279 = vadd.f32 %v3456, %v4258
    %v4280 = vadd.f32 %v3457, %v4259
    %v4281 = vadd.f32 %v3458, %v4260
    %v4282 = vadd.f32 %v3459, %v4255
    %v4283 = vadd.f32 %v3460, %v4256
    %v4284 = vadd.f32 %v3461, %v4257
    %v4285 = vadd.f32 %v3462, %v4252
    %v4286 = vadd.f32 %v3463, %v4253
    %v4287 = vadd.f32 %v3464, %v4254
    %v4288 = vadd.f32 %v3465, %v4249
    %v4289 = vadd.f32 %v3466, %v4250
    %v4290 = vadd.f32 %v3467, %v4251
    %v4291 = vadd.f32 %v3468, %v4246
    %v4292 = vadd.f32 %v3469, %v4247
    %v4293 = vadd.f32 %v3470, %v4248
    %s4294 = scalar_lea.vmem [#allocation6], 2280
    %v4295 = vld [vmem:[%s4294] sm:$0xff]
    %v4296 = vld [vmem:[%s4294 + $0x8] sm:$0xf]
    %v4297 = vld [vmem:[%s4294 + $0xc] sm:$0xff]
    %v4298 = vld [vmem:[%s4294 + $0x14] sm:$0xf]
    %v4299 = vld [vmem:[%s4294 + $0x18] sm:$0xff]
    %v4300 = vld [vmem:[%s4294 + $0x20] sm:$0xf]
    %v4301 = vld [vmem:[%s4294 + $0x24] sm:$0xff]
    %v4302 = vld [vmem:[%s4294 + $0x2c] sm:$0xf]
    %v4303 = vld [vmem:[%s4294 + $0x30] sm:$0xff]
    %v4304 = vld [vmem:[%s4294 + $0x38] sm:$0xf]
    %v4305 = vld [vmem:[%s4294 + $0x3c] sm:$0xff]
    %v4306 = vld [vmem:[%s4294 + $0x44] sm:$0xf]
    %v4307 = vld [vmem:[%s4294 + $0x48] sm:$0xff]
    %v4308 = vld [vmem:[%s4294 + $0x50] sm:$0xf]
    %v4309 = vld [vmem:[%s4294 + $0x54] sm:$0xff]
    %v4310 = vld [vmem:[%s4294 + $0x5c] sm:$0xf]
    %v4311 = vld [vmem:[%s4294 + $0x60] sm:$0xff]
    %v4312 = vld [vmem:[%s4294 + $0x68] sm:$0xf]
    %v4313 = vld [vmem:[%s4294 + $0x6c] sm:$0xff]
    %v4314 = vld [vmem:[%s4294 + $0x74] sm:$0xf]
    %v4315 = vld [vmem:[%s4294 + $0x78] sm:$0xff]
    %v4316 = vld [vmem:[%s4294 + $0x80] sm:$0xf]
    %v4317 = vld [vmem:[%s4294 + $0x84] sm:$0xff]
    %v4318 = vld [vmem:[%s4294 + $0x8c] sm:$0xf]
    %v4319 = vld [vmem:[%s4294 + $0x90] sm:$0xff]
    %v4320 = vld [vmem:[%s4294 + $0x98] sm:$0xf]
    %v4321 = vld [vmem:[%s4294 + $0x9c] sm:$0xff]
    %v4322 = vld [vmem:[%s4294 + $0xa4] sm:$0xf]
    %v4323 = vld [vmem:[%s4294 + $0xa8] sm:$0xff]
    %v4324 = vld [vmem:[%s4294 + $0xb0] sm:$0xf]
    %v4325 = vld [vmem:[%s4294 + $0xb4] sm:$0xff]
    %v4326 = vld [vmem:[%s4294 + $0xbc] sm:$0xf]
    %v4327 = vld [vmem:[%s4294 + $0xc0] sm:$0xff]
    %v4328 = vld [vmem:[%s4294 + $0xc8] sm:$0xf]
    %v4329 = vld [vmem:[%s4294 + $0xcc] sm:$0xff]
    %v4330 = vld [vmem:[%s4294 + $0xd4] sm:$0xf]
    %v4331 = vld [vmem:[%s4294 + $0xd8] sm:$0xff]
    %v4332 = vld [vmem:[%s4294 + $0xe0] sm:$0xf]
    %v4333 = vld [vmem:[%s4294 + $0xe4] sm:$0xff]
    %v4334 = vld [vmem:[%s4294 + $0xec] sm:$0xf]
    %v4335 = vld [vmem:[%s4294 + $0xf0] sm:$0xff]
    %v4336 = vld [vmem:[%s4294 + $0xf8] sm:$0xf]
    %v4337 = vld [vmem:[%s4294 + $0xfc] sm:$0xff]
    %v4338 = vld [vmem:[%s4294 + $0x104] sm:$0xf]
    %v4339 = vld [vmem:[%s4294 + $0x108] sm:$0xff]
    %v4340 = vld [vmem:[%s4294 + $0x110] sm:$0xf]
    %v4341 = vld [vmem:[%s4294 + $0x114] sm:$0xff]
    %v4342 = vld [vmem:[%s4294 + $0x11c] sm:$0xf]
    %v4343 = vld [vmem:[%s4294 + $0x120] sm:$0xff]
    %v4344 = vld [vmem:[%s4294 + $0x128] sm:$0xf]
    %v4345 = vld [vmem:[%s4294 + $0x12c] sm:$0xff]
    %v4346 = vld [vmem:[%s4294 + $0x134] sm:$0xf]
    %v4347 = vld [vmem:[%s4294 + $0x138] sm:$0xff]
    %v4348 = vld [vmem:[%s4294 + $0x140] sm:$0xf]
    %v4349 = vld [vmem:[%s4294 + $0x144] sm:$0xff]
    %v4350 = vld [vmem:[%s4294 + $0x14c] sm:$0xf]
    %v4351 = vld [vmem:[%s4294 + $0x150] sm:$0xff]
    %v4352 = vld [vmem:[%s4294 + $0x158] sm:$0xf]
    %v4353 = vld [vmem:[%s4294 + $0x15c] sm:$0xff]
    %v4354 = vld [vmem:[%s4294 + $0x164] sm:$0xf]
    %v4355 = vld [vmem:[%s4294 + $0x168] sm:$0xff]
    %v4356 = vld [vmem:[%s4294 + $0x170] sm:$0xf]
    %v4357 = vld [vmem:[%s4294 + $0x174] sm:$0xff]
    %v4358 = vld [vmem:[%s4294 + $0x17c] sm:$0xf]
    %v4359 = vld [vmem:[%s4294 + $0x180] sm:$0xff]
    %v4360 = vld [vmem:[%s4294 + $0x188] sm:$0xf]
    %v4361 = vld [vmem:[%s4294 + $0x18c] sm:$0xff]
    %v4362 = vld [vmem:[%s4294 + $0x194] sm:$0xf]
    %v4363 = vld [vmem:[%s4294 + $0x198] sm:$0xff]
    %v4364 = vld [vmem:[%s4294 + $0x1a0] sm:$0xf]
    %v4365 = vld [vmem:[%s4294 + $0x1a4] sm:$0xff]
    %v4366 = vld [vmem:[%s4294 + $0x1ac] sm:$0xf]
    %v4367 = vld [vmem:[%s4294 + $0x1b0] sm:$0xff]
    %v4368 = vld [vmem:[%s4294 + $0x1b8] sm:$0xf]
    %v4369 = vld [vmem:[%s4294 + $0x1bc] sm:$0x33]
    %v4370 = vld [vmem:[%s4294 + $0x1c4] sm:$0x3]
    %v4447 = vunpack.c.l.b16 %v4295
    %v4448 = vunpack.c.h.b16 %v4295
    %v4449 = vunpack.c.l.b16 %v4296
    %v4450 = vunpack.c.l.b16 %v4297
    %v4451 = vunpack.c.h.b16 %v4297
    %v4452 = vunpack.c.l.b16 %v4298
    %v4453 = vunpack.c.l.b16 %v4299
    %v4454 = vunpack.c.h.b16 %v4299
    %v4455 = vunpack.c.l.b16 %v4300
    %v4456 = vunpack.c.l.b16 %v4301
    %v4457 = vunpack.c.h.b16 %v4301
    %v4458 = vunpack.c.l.b16 %v4302
    %v4459 = vunpack.c.l.b16 %v4303
    %v4460 = vunpack.c.h.b16 %v4303
    %v4461 = vunpack.c.l.b16 %v4304
    %v4462 = vunpack.c.l.b16 %v4305
    %v4463 = vunpack.c.h.b16 %v4305
    %v4464 = vunpack.c.l.b16 %v4306
    %v4465 = vunpack.c.l.b16 %v4307
    %v4466 = vunpack.c.h.b16 %v4307
    %v4467 = vunpack.c.l.b16 %v4308
    %v4468 = vunpack.c.l.b16 %v4309
    %v4469 = vunpack.c.h.b16 %v4309
    %v4470 = vunpack.c.l.b16 %v4310
    %v4471 = vunpack.c.l.b16 %v4311
    %v4472 = vunpack.c.h.b16 %v4311
    %v4473 = vunpack.c.l.b16 %v4312
    %v4474 = vunpack.c.l.b16 %v4313
    %v4475 = vunpack.c.h.b16 %v4313
    %v4476 = vunpack.c.l.b16 %v4314
    %v4477 = vunpack.c.l.b16 %v4315
    %v4478 = vunpack.c.h.b16 %v4315
    %v4479 = vunpack.c.l.b16 %v4316
    %v4480 = vunpack.c.l.b16 %v4317
    %v4481 = vunpack.c.h.b16 %v4317
    %v4482 = vunpack.c.l.b16 %v4318
    %v4483 = vunpack.c.l.b16 %v4319
    %v4484 = vunpack.c.h.b16 %v4319
    %v4485 = vunpack.c.l.b16 %v4320
    %v4486 = vunpack.c.l.b16 %v4321
    %v4487 = vunpack.c.h.b16 %v4321
    %v4488 = vunpack.c.l.b16 %v4322
    %v4489 = vunpack.c.l.b16 %v4323
    %v4490 = vunpack.c.h.b16 %v4323
    %v4491 = vunpack.c.l.b16 %v4324
    %v4492 = vunpack.c.l.b16 %v4325
    %v4493 = vunpack.c.h.b16 %v4325
    %v4494 = vunpack.c.l.b16 %v4326
    %v4495 = vunpack.c.l.b16 %v4327
    %v4496 = vunpack.c.h.b16 %v4327
    %v4497 = vunpack.c.l.b16 %v4328
    %v4498 = vunpack.c.l.b16 %v4329
    %v4499 = vunpack.c.h.b16 %v4329
    %v4500 = vunpack.c.l.b16 %v4330
    %v4501 = vunpack.c.l.b16 %v4331
    %v4502 = vunpack.c.h.b16 %v4331
    %v4503 = vunpack.c.l.b16 %v4332
    %v4504 = vunpack.c.l.b16 %v4333
    %v4505 = vunpack.c.h.b16 %v4333
    %v4506 = vunpack.c.l.b16 %v4334
    %v4507 = vunpack.c.l.b16 %v4335
    %v4508 = vunpack.c.h.b16 %v4335
    %v4509 = vunpack.c.l.b16 %v4336
    %v4510 = vunpack.c.l.b16 %v4337
    %v4511 = vunpack.c.h.b16 %v4337
    %v4512 = vunpack.c.l.b16 %v4338
    %v4513 = vunpack.c.l.b16 %v4339
    %v4514 = vunpack.c.h.b16 %v4339
    %v4515 = vunpack.c.l.b16 %v4340
    %v4516 = vunpack.c.l.b16 %v4341
    %v4517 = vunpack.c.h.b16 %v4341
    %v4518 = vunpack.c.l.b16 %v4342
    %v4519 = vunpack.c.l.b16 %v4343
    %v4520 = vunpack.c.h.b16 %v4343
    %v4521 = vunpack.c.l.b16 %v4344
    %v4522 = vunpack.c.l.b16 %v4345
    %v4523 = vunpack.c.h.b16 %v4345
    %v4524 = vunpack.c.l.b16 %v4346
    %v4525 = vunpack.c.l.b16 %v4347
    %v4526 = vunpack.c.h.b16 %v4347
    %v4527 = vunpack.c.l.b16 %v4348
    %v4528 = vunpack.c.l.b16 %v4349
    %v4529 = vunpack.c.h.b16 %v4349
    %v4530 = vunpack.c.l.b16 %v4350
    %v4531 = vunpack.c.l.b16 %v4351
    %v4532 = vunpack.c.h.b16 %v4351
    %v4533 = vunpack.c.l.b16 %v4352
    %v4534 = vunpack.c.l.b16 %v4353
    %v4535 = vunpack.c.h.b16 %v4353
    %v4536 = vunpack.c.l.b16 %v4354
    %v4537 = vunpack.c.l.b16 %v4355
    %v4538 = vunpack.c.h.b16 %v4355
    %v4539 = vunpack.c.l.b16 %v4356
    %v4540 = vunpack.c.l.b16 %v4357
    %v4541 = vunpack.c.h.b16 %v4357
    %v4542 = vunpack.c.l.b16 %v4358
    %v4543 = vunpack.c.l.b16 %v4359
    %v4544 = vunpack.c.h.b16 %v4359
    %v4545 = vunpack.c.l.b16 %v4360
    %v4546 = vunpack.c.l.b16 %v4361
    %v4547 = vunpack.c.h.b16 %v4361
    %v4548 = vunpack.c.l.b16 %v4362
    %v4549 = vunpack.c.l.b16 %v4363
    %v4550 = vunpack.c.h.b16 %v4363
    %v4551 = vunpack.c.l.b16 %v4364
    %v4552 = vunpack.c.l.b16 %v4365
    %v4553 = vunpack.c.h.b16 %v4365
    %v4554 = vunpack.c.l.b16 %v4366
    %v4555 = vunpack.c.l.b16 %v4367
    %v4556 = vunpack.c.h.b16 %v4367
    %v4557 = vunpack.c.l.b16 %v4368
    %v4558 = vunpack.c.l.b16 %v4369
    %v4559 = vunpack.c.h.b16 %v4369
    %v4560 = vunpack.c.l.b16 %v4370
    %v4561 = vpack.c.b16 %v4450, %v4447
    %v4562 = vpack.c.b16 %v4451, %v4448
    %v4563 = vpack.c.b16 %v4452, %v4449
    %v4564 = vpack.c.b16 %v4456, %v4453
    %v4565 = vpack.c.b16 %v4457, %v4454
    %v4566 = vpack.c.b16 %v4458, %v4455
    %v4567 = vpack.c.b16 %v4462, %v4459
    %v4568 = vpack.c.b16 %v4463, %v4460
    %v4569 = vpack.c.b16 %v4464, %v4461
    %v4570 = vpack.c.b16 %v4468, %v4465
    %v4571 = vpack.c.b16 %v4469, %v4466
    %v4572 = vpack.c.b16 %v4470, %v4467
    %v4573 = vpack.c.b16 %v4474, %v4471
    %v4574 = vpack.c.b16 %v4475, %v4472
    %v4575 = vpack.c.b16 %v4476, %v4473
    %v4576 = vpack.c.b16 %v4480, %v4477
    %v4577 = vpack.c.b16 %v4481, %v4478
    %v4578 = vpack.c.b16 %v4482, %v4479
    %v4579 = vpack.c.b16 %v4486, %v4483
    %v4580 = vpack.c.b16 %v4487, %v4484
    %v4581 = vpack.c.b16 %v4488, %v4485
    %v4582 = vpack.c.b16 %v4492, %v4489
    %v4583 = vpack.c.b16 %v4493, %v4490
    %v4584 = vpack.c.b16 %v4494, %v4491
    %v4585 = vpack.c.b16 %v4498, %v4495
    %v4586 = vpack.c.b16 %v4499, %v4496
    %v4587 = vpack.c.b16 %v4500, %v4497
    %v4588 = vpack.c.b16 %v4504, %v4501
    %v4589 = vpack.c.b16 %v4505, %v4502
    %v4590 = vpack.c.b16 %v4506, %v4503
    %v4591 = vpack.c.b16 %v4510, %v4507
    %v4592 = vpack.c.b16 %v4511, %v4508
    %v4593 = vpack.c.b16 %v4512, %v4509
    %v4594 = vpack.c.b16 %v4516, %v4513
    %v4595 = vpack.c.b16 %v4517, %v4514
    %v4596 = vpack.c.b16 %v4518, %v4515
    %v4597 = vpack.c.b16 %v4522, %v4519
    %v4598 = vpack.c.b16 %v4523, %v4520
    %v4599 = vpack.c.b16 %v4524, %v4521
    %v4600 = vpack.c.b16 %v4528, %v4525
    %v4601 = vpack.c.b16 %v4529, %v4526
    %v4602 = vpack.c.b16 %v4530, %v4527
    %v4603 = vpack.c.b16 %v4534, %v4531
    %v4604 = vpack.c.b16 %v4535, %v4532
    %v4605 = vpack.c.b16 %v4536, %v4533
    %v4606 = vpack.c.b16 %v4540, %v4537
    %v4607 = vpack.c.b16 %v4541, %v4538
    %v4608 = vpack.c.b16 %v4542, %v4539
    %v4609 = vpack.c.b16 %v4546, %v4543
    %v4610 = vpack.c.b16 %v4547, %v4544
    %v4611 = vpack.c.b16 %v4548, %v4545
    %v4612 = vpack.c.b16 %v4552, %v4549
    %v4613 = vpack.c.b16 %v4553, %v4550
    %v4614 = vpack.c.b16 %v4554, %v4551
    %v4615 = vpack.c.b16 %v4558, %v4555
    %v4616 = vpack.c.b16 %v4559, %v4556
    %v4617 = vpack.c.b16 %v4560, %v4557
    %v4673 = vsel %vm675, %v4615, 0
    %v4676 = vsel %vm675, %v4616, 0
    %v4679 = vsel %vm675, %v4617, 0
    %4681 = vmatpush.bf16.msra.mxu0 %v4582
    %4682 = vmatpush.bf16.msra.mxu0 %v4579
    %4683 = vmatpush.bf16.msra.mxu0 %v4576
    %4684 = vmatpush.bf16.msra.mxu0 %v4573
    %4685 = vmatpush.bf16.msra.mxu0 %v4570
    %4686 = vmatpush.bf16.msra.mxu0 %v4567
    %4687 = vmatpush.bf16.msra.mxu0 %v4564
    %4688 = vmatpush.bf16.msra.mxu0 %v4561
    %4689 = vmatmul.bf16.gmra.mxu0 %v325
    %v4690 = vpop.f32.mrf.mxu0
    %v4691 = vadd.f32 0.0, %v4690
    %v4692 = vpop.f32.mrf.mxu0
    %v4693 = vadd.f32 0.0, %v4692
    %4694 = vmatmul.bf16.gmra.mxu0 %v328
    %v4695 = vpop.f32.mrf.mxu0
    %v4696 = vadd.f32 0.0, %v4695
    %v4697 = vpop.f32.mrf.mxu0
    %v4698 = vadd.f32 0.0, %v4697
    %4699 = vmatmul.bf16.gmra.mxu0 %v331
    %v4700 = vpop.f32.mrf.mxu0
    %v4701 = vadd.f32 0.0, %v4700
    %v4702 = vpop.f32.mrf.mxu0
    %v4703 = vadd.f32 0.0, %v4702
    %4704 = vmatmul.bf16.gmra.mxu0 %v334
    %v4705 = vpop.f32.mrf.mxu0
    %v4706 = vadd.f32 0.0, %v4705
    %v4707 = vpop.f32.mrf.mxu0
    %v4708 = vadd.f32 0.0, %v4707
    %4709 = vmatmul.bf16.gmra.mxu0 %v337
    %v4710 = vpop.f32.mrf.mxu0
    %v4711 = vadd.f32 0.0, %v4710
    %v4712 = vpop.f32.mrf.mxu0
    %v4713 = vadd.f32 0.0, %v4712
    %4714 = vmatmul.bf16.gmra.mxu0 %v340
    %v4715 = vpop.f32.mrf.mxu0
    %v4716 = vadd.f32 0.0, %v4715
    %v4717 = vpop.f32.mrf.mxu0
    %v4718 = vadd.f32 0.0, %v4717
    %4719 = vdwg.mxu0
    %4720 = vmatpush.bf16.msra.mxu0 %v4606
    %4721 = vmatpush.bf16.msra.mxu0 %v4603
    %4722 = vmatpush.bf16.msra.mxu0 %v4600
    %4723 = vmatpush.bf16.msra.mxu0 %v4597
    %4724 = vmatpush.bf16.msra.mxu0 %v4594
    %4725 = vmatpush.bf16.msra.mxu0 %v4591
    %4726 = vmatpush.bf16.msra.mxu0 %v4588
    %4727 = vmatpush.bf16.msra.mxu0 %v4585
    %4728 = vmatmul.bf16.gmra.mxu0 %v326
    %v4729 = vpop.f32.mrf.mxu0
    %v4730 = vadd.f32 %v4691, %v4729
    %v4731 = vpop.f32.mrf.mxu0
    %v4732 = vadd.f32 %v4693, %v4731
    %4733 = vmatmul.bf16.gmra.mxu0 %v329
    %v4734 = vpop.f32.mrf.mxu0
    %v4735 = vadd.f32 %v4696, %v4734
    %v4736 = vpop.f32.mrf.mxu0
    %v4737 = vadd.f32 %v4698, %v4736
    %4738 = vmatmul.bf16.gmra.mxu0 %v332
    %v4739 = vpop.f32.mrf.mxu0
    %v4740 = vadd.f32 %v4701, %v4739
    %v4741 = vpop.f32.mrf.mxu0
    %v4742 = vadd.f32 %v4703, %v4741
    %4743 = vmatmul.bf16.gmra.mxu0 %v335
    %v4744 = vpop.f32.mrf.mxu0
    %v4745 = vadd.f32 %v4706, %v4744
    %v4746 = vpop.f32.mrf.mxu0
    %v4747 = vadd.f32 %v4708, %v4746
    %4748 = vmatmul.bf16.gmra.mxu0 %v338
    %v4749 = vpop.f32.mrf.mxu0
    %v4750 = vadd.f32 %v4711, %v4749
    %v4751 = vpop.f32.mrf.mxu0
    %v4752 = vadd.f32 %v4713, %v4751
    %4753 = vmatmul.bf16.gmra.mxu0 %v341
    %v4754 = vpop.f32.mrf.mxu0
    %v4755 = vadd.f32 %v4716, %v4754
    %v4756 = vpop.f32.mrf.mxu0
    %v4757 = vadd.f32 %v4718, %v4756
    %4758 = vdwg.mxu0
    %4759 = vmatpush.bf16.msra.mxu0 0
    %4760 = vmatpush.bf16.msra.mxu0 0
    %4761 = vmatpush.bf16.msra.mxu0 0
    %4762 = vmatpush.bf16.msra.mxu0 0
    %4763 = vmatpush.bf16.msra.mxu0 0
    %4764 = vmatpush.bf16.msra.mxu0 %v4673
    %4765 = vmatpush.bf16.msra.mxu0 %v4612
    %4766 = vmatpush.bf16.msra.mxu0 %v4609
    %4767 = vmatmul.bf16.gmra.mxu0 %v658
    %v4768 = vpop.f32.mrf.mxu0
    %v4769 = vadd.f32 %v4730, %v4768
    %v4770 = vpop.f32.mrf.mxu0
    %v4771 = vadd.f32 %v4732, %v4770
    %4772 = vmatmul.bf16.gmra.mxu0 %v661
    %v4773 = vpop.f32.mrf.mxu0
    %v4774 = vadd.f32 %v4735, %v4773
    %v4775 = vpop.f32.mrf.mxu0
    %v4776 = vadd.f32 %v4737, %v4775
    %4777 = vmatmul.bf16.gmra.mxu0 %v664
    %v4778 = vpop.f32.mrf.mxu0
    %v4779 = vadd.f32 %v4740, %v4778
    %v4780 = vpop.f32.mrf.mxu0
    %v4781 = vadd.f32 %v4742, %v4780
    %4782 = vmatmul.bf16.gmra.mxu0 %v667
    %v4783 = vpop.f32.mrf.mxu0
    %v4784 = vadd.f32 %v4745, %v4783
    %v4785 = vpop.f32.mrf.mxu0
    %v4786 = vadd.f32 %v4747, %v4785
    %4787 = vmatmul.bf16.gmra.mxu0 %v670
    %v4788 = vpop.f32.mrf.mxu0
    %v4789 = vadd.f32 %v4750, %v4788
    %v4790 = vpop.f32.mrf.mxu0
    %v4791 = vadd.f32 %v4752, %v4790
    %4792 = vmatmul.bf16.gmra.mxu0 %v673
    %v4793 = vpop.f32.mrf.mxu0
    %v4794 = vadd.f32 %v4755, %v4793
    %v4795 = vpop.f32.mrf.mxu0
    %v4796 = vadd.f32 %v4757, %v4795
    %4797 = vdwg.mxu0
    %4798 = vmatpush.bf16.msra.mxu0 %v4583
    %4799 = vmatpush.bf16.msra.mxu0 %v4580
    %4800 = vmatpush.bf16.msra.mxu0 %v4577
    %4801 = vmatpush.bf16.msra.mxu0 %v4574
    %4802 = vmatpush.bf16.msra.mxu0 %v4571
    %4803 = vmatpush.bf16.msra.mxu0 %v4568
    %4804 = vmatpush.bf16.msra.mxu0 %v4565
    %4805 = vmatpush.bf16.msra.mxu0 %v4562
    %4806 = vmatmul.bf16.gmra.mxu0 %v325
    %v4807 = vpop.f32.mrf.mxu0
    %v4808 = vadd.f32 0.0, %v4807
    %v4809 = vpop.f32.mrf.mxu0
    %v4810 = vadd.f32 0.0, %v4809
    %4811 = vmatmul.bf16.gmra.mxu0 %v328
    %v4812 = vpop.f32.mrf.mxu0
    %v4813 = vadd.f32 0.0, %v4812
    %v4814 = vpop.f32.mrf.mxu0
    %v4815 = vadd.f32 0.0, %v4814
    %4816 = vmatmul.bf16.gmra.mxu0 %v331
    %v4817 = vpop.f32.mrf.mxu0
    %v4818 = vadd.f32 0.0, %v4817
    %v4819 = vpop.f32.mrf.mxu0
    %v4820 = vadd.f32 0.0, %v4819
    %4821 = vmatmul.bf16.gmra.mxu0 %v334
    %v4822 = vpop.f32.mrf.mxu0
    %v4823 = vadd.f32 0.0, %v4822
    %v4824 = vpop.f32.mrf.mxu0
    %v4825 = vadd.f32 0.0, %v4824
    %4826 = vmatmul.bf16.gmra.mxu0 %v337
    %v4827 = vpop.f32.mrf.mxu0
    %v4828 = vadd.f32 0.0, %v4827
    %v4829 = vpop.f32.mrf.mxu0
    %v4830 = vadd.f32 0.0, %v4829
    %4831 = vmatmul.bf16.gmra.mxu0 %v340
    %v4832 = vpop.f32.mrf.mxu0
    %v4833 = vadd.f32 0.0, %v4832
    %v4834 = vpop.f32.mrf.mxu0
    %v4835 = vadd.f32 0.0, %v4834
    %4836 = vdwg.mxu0
    %4837 = vmatpush.bf16.msra.mxu0 %v4607
    %4838 = vmatpush.bf16.msra.mxu0 %v4604
    %4839 = vmatpush.bf16.msra.mxu0 %v4601
    %4840 = vmatpush.bf16.msra.mxu0 %v4598
    %4841 = vmatpush.bf16.msra.mxu0 %v4595
    %4842 = vmatpush.bf16.msra.mxu0 %v4592
    %4843 = vmatpush.bf16.msra.mxu0 %v4589
    %4844 = vmatpush.bf16.msra.mxu0 %v4586
    %4845 = vmatmul.bf16.gmra.mxu0 %v326
    %v4846 = vpop.f32.mrf.mxu0
    %v4847 = vadd.f32 %v4808, %v4846
    %v4848 = vpop.f32.mrf.mxu0
    %v4849 = vadd.f32 %v4810, %v4848
    %4850 = vmatmul.bf16.gmra.mxu0 %v329
    %v4851 = vpop.f32.mrf.mxu0
    %v4852 = vadd.f32 %v4813, %v4851
    %v4853 = vpop.f32.mrf.mxu0
    %v4854 = vadd.f32 %v4815, %v4853
    %4855 = vmatmul.bf16.gmra.mxu0 %v332
    %v4856 = vpop.f32.mrf.mxu0
    %v4857 = vadd.f32 %v4818, %v4856
    %v4858 = vpop.f32.mrf.mxu0
    %v4859 = vadd.f32 %v4820, %v4858
    %4860 = vmatmul.bf16.gmra.mxu0 %v335
    %v4861 = vpop.f32.mrf.mxu0
    %v4862 = vadd.f32 %v4823, %v4861
    %v4863 = vpop.f32.mrf.mxu0
    %v4864 = vadd.f32 %v4825, %v4863
    %4865 = vmatmul.bf16.gmra.mxu0 %v338
    %v4866 = vpop.f32.mrf.mxu0
    %v4867 = vadd.f32 %v4828, %v4866
    %v4868 = vpop.f32.mrf.mxu0
    %v4869 = vadd.f32 %v4830, %v4868
    %4870 = vmatmul.bf16.gmra.mxu0 %v341
    %v4871 = vpop.f32.mrf.mxu0
    %v4872 = vadd.f32 %v4833, %v4871
    %v4873 = vpop.f32.mrf.mxu0
    %v4874 = vadd.f32 %v4835, %v4873
    %4875 = vdwg.mxu0
    %4876 = vmatpush.bf16.msra.mxu0 0
    %4877 = vmatpush.bf16.msra.mxu0 0
    %4878 = vmatpush.bf16.msra.mxu0 0
    %4879 = vmatpush.bf16.msra.mxu0 0
    %4880 = vmatpush.bf16.msra.mxu0 0
    %4881 = vmatpush.bf16.msra.mxu0 %v4676
    %4882 = vmatpush.bf16.msra.mxu0 %v4613
    %4883 = vmatpush.bf16.msra.mxu0 %v4610
    %4884 = vmatmul.bf16.gmra.mxu0 %v658
    %v4885 = vpop.f32.mrf.mxu0
    %v4886 = vadd.f32 %v4847, %v4885
    %v4887 = vpop.f32.mrf.mxu0
    %v4888 = vadd.f32 %v4849, %v4887
    %4889 = vmatmul.bf16.gmra.mxu0 %v661
    %v4890 = vpop.f32.mrf.mxu0
    %v4891 = vadd.f32 %v4852, %v4890
    %v4892 = vpop.f32.mrf.mxu0
    %v4893 = vadd.f32 %v4854, %v4892
    %4894 = vmatmul.bf16.gmra.mxu0 %v664
    %v4895 = vpop.f32.mrf.mxu0
    %v4896 = vadd.f32 %v4857, %v4895
    %v4897 = vpop.f32.mrf.mxu0
    %v4898 = vadd.f32 %v4859, %v4897
    %4899 = vmatmul.bf16.gmra.mxu0 %v667
    %v4900 = vpop.f32.mrf.mxu0
    %v4901 = vadd.f32 %v4862, %v4900
    %v4902 = vpop.f32.mrf.mxu0
    %v4903 = vadd.f32 %v4864, %v4902
    %4904 = vmatmul.bf16.gmra.mxu0 %v670
    %v4905 = vpop.f32.mrf.mxu0
    %v4906 = vadd.f32 %v4867, %v4905
    %v4907 = vpop.f32.mrf.mxu0
    %v4908 = vadd.f32 %v4869, %v4907
    %4909 = vmatmul.bf16.gmra.mxu0 %v673
    %v4910 = vpop.f32.mrf.mxu0
    %v4911 = vadd.f32 %v4872, %v4910
    %v4912 = vpop.f32.mrf.mxu0
    %v4913 = vadd.f32 %v4874, %v4912
    %4914 = vdwg.mxu0
    %4915 = vmatpush.bf16.msra.mxu0 %v4584
    %4916 = vmatpush.bf16.msra.mxu0 %v4581
    %4917 = vmatpush.bf16.msra.mxu0 %v4578
    %4918 = vmatpush.bf16.msra.mxu0 %v4575
    %4919 = vmatpush.bf16.msra.mxu0 %v4572
    %4920 = vmatpush.bf16.msra.mxu0 %v4569
    %4921 = vmatpush.bf16.msra.mxu0 %v4566
    %4922 = vmatpush.bf16.msra.mxu0 %v4563
    %4923 = vmatmul.bf16.gmra.mxu0 %v325
    %v4924 = vpop.f32.mrf.mxu0
    %v4925 = vadd.f32 0.0, %v4924
    %v4926 = vpop.f32.mrf.mxu0
    %v4927 = vadd.f32 0.0, %v4926
    %4928 = vmatmul.bf16.gmra.mxu0 %v328
    %v4929 = vpop.f32.mrf.mxu0
    %v4930 = vadd.f32 0.0, %v4929
    %v4931 = vpop.f32.mrf.mxu0
    %v4932 = vadd.f32 0.0, %v4931
    %4933 = vmatmul.bf16.gmra.mxu0 %v331
    %v4934 = vpop.f32.mrf.mxu0
    %v4935 = vadd.f32 0.0, %v4934
    %v4936 = vpop.f32.mrf.mxu0
    %v4937 = vadd.f32 0.0, %v4936
    %4938 = vmatmul.bf16.gmra.mxu0 %v334
    %v4939 = vpop.f32.mrf.mxu0
    %v4940 = vadd.f32 0.0, %v4939
    %v4941 = vpop.f32.mrf.mxu0
    %v4942 = vadd.f32 0.0, %v4941
    %4943 = vmatmul.bf16.gmra.mxu0 %v337
    %v4944 = vpop.f32.mrf.mxu0
    %v4945 = vadd.f32 0.0, %v4944
    %v4946 = vpop.f32.mrf.mxu0
    %v4947 = vadd.f32 0.0, %v4946
    %4948 = vmatmul.bf16.gmra.mxu0 %v340
    %v4949 = vpop.f32.mrf.mxu0
    %v4950 = vadd.f32 0.0, %v4949
    %v4951 = vpop.f32.mrf.mxu0
    %v4952 = vadd.f32 0.0, %v4951
    %4953 = vdwg.mxu0
    %4954 = vmatpush.bf16.msra.mxu0 %v4608
    %4955 = vmatpush.bf16.msra.mxu0 %v4605
    %4956 = vmatpush.bf16.msra.mxu0 %v4602
    %4957 = vmatpush.bf16.msra.mxu0 %v4599
    %4958 = vmatpush.bf16.msra.mxu0 %v4596
    %4959 = vmatpush.bf16.msra.mxu0 %v4593
    %4960 = vmatpush.bf16.msra.mxu0 %v4590
    %4961 = vmatpush.bf16.msra.mxu0 %v4587
    %4962 = vmatmul.bf16.gmra.mxu0 %v326
    %v4963 = vpop.f32.mrf.mxu0
    %v4964 = vadd.f32 %v4925, %v4963
    %v4965 = vpop.f32.mrf.mxu0
    %v4966 = vadd.f32 %v4927, %v4965
    %4967 = vmatmul.bf16.gmra.mxu0 %v329
    %v4968 = vpop.f32.mrf.mxu0
    %v4969 = vadd.f32 %v4930, %v4968
    %v4970 = vpop.f32.mrf.mxu0
    %v4971 = vadd.f32 %v4932, %v4970
    %4972 = vmatmul.bf16.gmra.mxu0 %v332
    %v4973 = vpop.f32.mrf.mxu0
    %v4974 = vadd.f32 %v4935, %v4973
    %v4975 = vpop.f32.mrf.mxu0
    %v4976 = vadd.f32 %v4937, %v4975
    %4977 = vmatmul.bf16.gmra.mxu0 %v335
    %v4978 = vpop.f32.mrf.mxu0
    %v4979 = vadd.f32 %v4940, %v4978
    %v4980 = vpop.f32.mrf.mxu0
    %v4981 = vadd.f32 %v4942, %v4980
    %4982 = vmatmul.bf16.gmra.mxu0 %v338
    %v4983 = vpop.f32.mrf.mxu0
    %v4984 = vadd.f32 %v4945, %v4983
    %v4985 = vpop.f32.mrf.mxu0
    %v4986 = vadd.f32 %v4947, %v4985
    %4987 = vmatmul.bf16.gmra.mxu0 %v341
    %v4988 = vpop.f32.mrf.mxu0
    %v4989 = vadd.f32 %v4950, %v4988
    %v4990 = vpop.f32.mrf.mxu0
    %v4991 = vadd.f32 %v4952, %v4990
    %4992 = vdwg.mxu0
    %4993 = vmatpush.bf16.msra.mxu0 0
    %4994 = vmatpush.bf16.msra.mxu0 0
    %4995 = vmatpush.bf16.msra.mxu0 0
    %4996 = vmatpush.bf16.msra.mxu0 0
    %4997 = vmatpush.bf16.msra.mxu0 0
    %4998 = vmatpush.bf16.msra.mxu0 %v4679
    %4999 = vmatpush.bf16.msra.mxu0 %v4614
    %5000 = vmatpush.bf16.msra.mxu0 %v4611
    %5001 = vmatmul.bf16.gmra.mxu0 %v658
    %v5002 = vpop.f32.mrf.mxu0
    %v5003 = vadd.f32 %v4964, %v5002
    %v5004 = vpop.f32.mrf.mxu0
    %v5005 = vadd.f32 %v4966, %v5004
    %5006 = vmatmul.bf16.gmra.mxu0 %v661
    %v5007 = vpop.f32.mrf.mxu0
    %v5008 = vadd.f32 %v4969, %v5007
    %v5009 = vpop.f32.mrf.mxu0
    %v5010 = vadd.f32 %v4971, %v5009
    %5011 = vmatmul.bf16.gmra.mxu0 %v664
    %v5012 = vpop.f32.mrf.mxu0
    %v5013 = vadd.f32 %v4974, %v5012
    %v5014 = vpop.f32.mrf.mxu0
    %v5015 = vadd.f32 %v4976, %v5014
    %5016 = vmatmul.bf16.gmra.mxu0 %v667
    %v5017 = vpop.f32.mrf.mxu0
    %v5018 = vadd.f32 %v4979, %v5017
    %v5019 = vpop.f32.mrf.mxu0
    %v5020 = vadd.f32 %v4981, %v5019
    %5021 = vmatmul.bf16.gmra.mxu0 %v670
    %v5022 = vpop.f32.mrf.mxu0
    %v5023 = vadd.f32 %v4984, %v5022
    %v5024 = vpop.f32.mrf.mxu0
    %v5025 = vadd.f32 %v4986, %v5024
    %5026 = vmatmul.bf16.gmra.mxu0 %v673
    %v5027 = vpop.f32.mrf.mxu0
    %v5028 = vadd.f32 %v4989, %v5027
    %v5029 = vpop.f32.mrf.mxu0
    %v5030 = vadd.f32 %v4991, %v5029
    %5031 = vdwg.mxu0
    %v5032 = vrot.slane %v4769, 2
    %v5033 = vrot.slane %v4886, 2
    %v5034 = vrot.slane %v5003, 2
    %v5035 = vrot.slane %v4771, 2
    %v5036 = vrot.slane %v4888, 2
    %v5037 = vrot.slane %v5005, 2
    %v5038 = vrot.slane %v4774, 2
    %v5039 = vrot.slane %v4891, 2
    %v5040 = vrot.slane %v5008, 2
    %v5041 = vrot.slane %v4776, 2
    %v5042 = vrot.slane %v4893, 2
    %v5043 = vrot.slane %v5010, 2
    %v5044 = vrot.slane %v4779, 2
    %v5045 = vrot.slane %v4896, 2
    %v5046 = vrot.slane %v5013, 2
    %v5047 = vrot.slane %v4781, 2
    %v5048 = vrot.slane %v4898, 2
    %v5049 = vrot.slane %v5015, 2
    %v5050 = vrot.slane %v4784, 2
    %v5051 = vrot.slane %v4901, 2
    %v5052 = vrot.slane %v5018, 2
    %v5053 = vrot.slane %v4786, 2
    %v5054 = vrot.slane %v4903, 2
    %v5055 = vrot.slane %v5020, 2
    %v5056 = vrot.slane %v4789, 2
    %v5057 = vrot.slane %v4906, 2
    %v5058 = vrot.slane %v5023, 2
    %v5059 = vrot.slane %v4791, 2
    %v5060 = vrot.slane %v4908, 2
    %v5061 = vrot.slane %v5025, 2
    %v5062 = vrot.slane %v4794, 2
    %v5063 = vrot.slane %v4911, 2
    %v5064 = vrot.slane %v5028, 2
    %v5065 = vrot.slane %v4796, 2
    %v5066 = vrot.slane %v4913, 2
    %v5067 = vrot.slane %v5030, 2
    %vm5068 = vcmp.lt.s32.totalorder %v1073, 6
    %v5069 = vsel %vm5068, %v5062, %v5065
    %v5070 = vsel %vm5068, %v5063, %v5066
    %v5071 = vsel %vm5068, %v5064, %v5067
    %v5072 = vsel %vm5068, %v5059, %v5062
    %v5073 = vsel %vm5068, %v5060, %v5063
    %v5074 = vsel %vm5068, %v5061, %v5064
    %v5075 = vsel %vm5068, %v5053, %v5056
    %v5076 = vsel %vm5068, %v5054, %v5057
    %v5077 = vsel %vm5068, %v5055, %v5058
    %v5078 = vsel %vm5068, %v5050, %v5053
    %v5079 = vsel %vm5068, %v5051, %v5054
    %v5080 = vsel %vm5068, %v5052, %v5055
    %v5081 = vsel %vm5068, %v5044, %v5047
    %v5082 = vsel %vm5068, %v5045, %v5048
    %v5083 = vsel %vm5068, %v5046, %v5049
    %v5084 = vsel %vm5068, %v5041, %v5044
    %v5085 = vsel %vm5068, %v5042, %v5045
    %v5086 = vsel %vm5068, %v5043, %v5046
    %v5087 = vsel %vm5068, %v5035, %v5038
    %v5088 = vsel %vm5068, %v5036, %v5039
    %v5089 = vsel %vm5068, %v5037, %v5040
    %v5090 = vsel %vm5068, %v5032, %v5035
    %v5091 = vsel %vm5068, %v5033, %v5036
    %v5092 = vsel %vm5068, %v5034, %v5037
    %v5093 = vadd.f32 %v4270, %v5090
    %v5094 = vadd.f32 %v4271, %v5091
    %v5095 = vadd.f32 %v4272, %v5092
    %v5096 = vadd.f32 %v4273, %v5087
    %v5097 = vadd.f32 %v4274, %v5088
    %v5098 = vadd.f32 %v4275, %v5089
    %v5099 = vadd.f32 %v4276, %v5084
    %v5100 = vadd.f32 %v4277, %v5085
    %v5101 = vadd.f32 %v4278, %v5086
    %v5102 = vadd.f32 %v4279, %v5081
    %v5103 = vadd.f32 %v4280, %v5082
    %v5104 = vadd.f32 %v4281, %v5083
    %v5105 = vadd.f32 %v4282, %v5078
    %v5106 = vadd.f32 %v4283, %v5079
    %v5107 = vadd.f32 %v4284, %v5080
    %v5108 = vadd.f32 %v4285, %v5075
    %v5109 = vadd.f32 %v4286, %v5076
    %v5110 = vadd.f32 %v4287, %v5077
    %v5111 = vadd.f32 %v4288, %v5072
    %v5112 = vadd.f32 %v4289, %v5073
    %v5113 = vadd.f32 %v4290, %v5074
    %v5114 = vadd.f32 %v4291, %v5069
    %v5115 = vadd.f32 %v4292, %v5070
    %v5116 = vadd.f32 %v4293, %v5071
    %s5117 = scalar_lea.vmem [#allocation6], 2736
    %v5118 = vld [vmem:[%s5117] sm:$0xff]
    %v5119 = vld [vmem:[%s5117 + $0x8] sm:$0xf]
    %v5120 = vld [vmem:[%s5117 + $0xc] sm:$0xff]
    %v5121 = vld [vmem:[%s5117 + $0x14] sm:$0xf]
    %v5122 = vld [vmem:[%s5117 + $0x18] sm:$0xff]
    %v5123 = vld [vmem:[%s5117 + $0x20] sm:$0xf]
    %v5124 = vld [vmem:[%s5117 + $0x24] sm:$0xff]
    %v5125 = vld [vmem:[%s5117 + $0x2c] sm:$0xf]
    %v5126 = vld [vmem:[%s5117 + $0x30] sm:$0xff]
    %v5127 = vld [vmem:[%s5117 + $0x38] sm:$0xf]
    %v5128 = vld [vmem:[%s5117 + $0x3c] sm:$0xff]
    %v5129 = vld [vmem:[%s5117 + $0x44] sm:$0xf]
    %v5130 = vld [vmem:[%s5117 + $0x48] sm:$0xff]
    %v5131 = vld [vmem:[%s5117 + $0x50] sm:$0xf]
    %v5132 = vld [vmem:[%s5117 + $0x54] sm:$0xff]
    %v5133 = vld [vmem:[%s5117 + $0x5c] sm:$0xf]
    %v5134 = vld [vmem:[%s5117 + $0x60] sm:$0xff]
    %v5135 = vld [vmem:[%s5117 + $0x68] sm:$0xf]
    %v5136 = vld [vmem:[%s5117 + $0x6c] sm:$0xff]
    %v5137 = vld [vmem:[%s5117 + $0x74] sm:$0xf]
    %v5138 = vld [vmem:[%s5117 + $0x78] sm:$0xff]
    %v5139 = vld [vmem:[%s5117 + $0x80] sm:$0xf]
    %v5140 = vld [vmem:[%s5117 + $0x84] sm:$0xff]
    %v5141 = vld [vmem:[%s5117 + $0x8c] sm:$0xf]
    %v5142 = vld [vmem:[%s5117 + $0x90] sm:$0xff]
    %v5143 = vld [vmem:[%s5117 + $0x98] sm:$0xf]
    %v5144 = vld [vmem:[%s5117 + $0x9c] sm:$0xff]
    %v5145 = vld [vmem:[%s5117 + $0xa4] sm:$0xf]
    %v5146 = vld [vmem:[%s5117 + $0xa8] sm:$0xff]
    %v5147 = vld [vmem:[%s5117 + $0xb0] sm:$0xf]
    %v5148 = vld [vmem:[%s5117 + $0xb4] sm:$0xff]
    %v5149 = vld [vmem:[%s5117 + $0xbc] sm:$0xf]
    %v5150 = vld [vmem:[%s5117 + $0xc0] sm:$0xff]
    %v5151 = vld [vmem:[%s5117 + $0xc8] sm:$0xf]
    %v5152 = vld [vmem:[%s5117 + $0xcc] sm:$0xff]
    %v5153 = vld [vmem:[%s5117 + $0xd4] sm:$0xf]
    %v5154 = vld [vmem:[%s5117 + $0xd8] sm:$0xff]
    %v5155 = vld [vmem:[%s5117 + $0xe0] sm:$0xf]
    %v5156 = vld [vmem:[%s5117 + $0xe4] sm:$0xff]
    %v5157 = vld [vmem:[%s5117 + $0xec] sm:$0xf]
    %v5158 = vld [vmem:[%s5117 + $0xf0] sm:$0xff]
    %v5159 = vld [vmem:[%s5117 + $0xf8] sm:$0xf]
    %v5160 = vld [vmem:[%s5117 + $0xfc] sm:$0xff]
    %v5161 = vld [vmem:[%s5117 + $0x104] sm:$0xf]
    %v5162 = vld [vmem:[%s5117 + $0x108] sm:$0xff]
    %v5163 = vld [vmem:[%s5117 + $0x110] sm:$0xf]
    %v5164 = vld [vmem:[%s5117 + $0x114] sm:$0xff]
    %v5165 = vld [vmem:[%s5117 + $0x11c] sm:$0xf]
    %v5166 = vld [vmem:[%s5117 + $0x120] sm:$0xff]
    %v5167 = vld [vmem:[%s5117 + $0x128] sm:$0xf]
    %v5168 = vld [vmem:[%s5117 + $0x12c] sm:$0xff]
    %v5169 = vld [vmem:[%s5117 + $0x134] sm:$0xf]
    %v5170 = vld [vmem:[%s5117 + $0x138] sm:$0xff]
    %v5171 = vld [vmem:[%s5117 + $0x140] sm:$0xf]
    %v5172 = vld [vmem:[%s5117 + $0x144] sm:$0xff]
    %v5173 = vld [vmem:[%s5117 + $0x14c] sm:$0xf]
    %v5174 = vld [vmem:[%s5117 + $0x150] sm:$0xff]
    %v5175 = vld [vmem:[%s5117 + $0x158] sm:$0xf]
    %v5176 = vld [vmem:[%s5117 + $0x15c] sm:$0xff]
    %v5177 = vld [vmem:[%s5117 + $0x164] sm:$0xf]
    %v5178 = vld [vmem:[%s5117 + $0x168] sm:$0xff]
    %v5179 = vld [vmem:[%s5117 + $0x170] sm:$0xf]
    %v5180 = vld [vmem:[%s5117 + $0x174] sm:$0xff]
    %v5181 = vld [vmem:[%s5117 + $0x17c] sm:$0xf]
    %v5182 = vld [vmem:[%s5117 + $0x180] sm:$0xff]
    %v5183 = vld [vmem:[%s5117 + $0x188] sm:$0xf]
    %v5184 = vld [vmem:[%s5117 + $0x18c] sm:$0xff]
    %v5185 = vld [vmem:[%s5117 + $0x194] sm:$0xf]
    %v5186 = vld [vmem:[%s5117 + $0x198] sm:$0xff]
    %v5187 = vld [vmem:[%s5117 + $0x1a0] sm:$0xf]
    %v5188 = vld [vmem:[%s5117 + $0x1a4] sm:$0xff]
    %v5189 = vld [vmem:[%s5117 + $0x1ac] sm:$0xf]
    %v5190 = vld [vmem:[%s5117 + $0x1b0] sm:$0xff]
    %v5191 = vld [vmem:[%s5117 + $0x1b8] sm:$0xf]
    %v5192 = vld [vmem:[%s5117 + $0x1bc] sm:$0x33]
    %v5193 = vld [vmem:[%s5117 + $0x1c4] sm:$0x3]
    %v5270 = vunpack.c.l.b16 %v5118
    %v5271 = vunpack.c.h.b16 %v5118
    %v5272 = vunpack.c.l.b16 %v5119
    %v5273 = vunpack.c.l.b16 %v5120
    %v5274 = vunpack.c.h.b16 %v5120
    %v5275 = vunpack.c.l.b16 %v5121
    %v5276 = vunpack.c.l.b16 %v5122
    %v5277 = vunpack.c.h.b16 %v5122
    %v5278 = vunpack.c.l.b16 %v5123
    %v5279 = vunpack.c.l.b16 %v5124
    %v5280 = vunpack.c.h.b16 %v5124
    %v5281 = vunpack.c.l.b16 %v5125
    %v5282 = vunpack.c.l.b16 %v5126
    %v5283 = vunpack.c.h.b16 %v5126
    %v5284 = vunpack.c.l.b16 %v5127
    %v5285 = vunpack.c.l.b16 %v5128
    %v5286 = vunpack.c.h.b16 %v5128
    %v5287 = vunpack.c.l.b16 %v5129
    %v5288 = vunpack.c.l.b16 %v5130
    %v5289 = vunpack.c.h.b16 %v5130
    %v5290 = vunpack.c.l.b16 %v5131
    %v5291 = vunpack.c.l.b16 %v5132
    %v5292 = vunpack.c.h.b16 %v5132
    %v5293 = vunpack.c.l.b16 %v5133
    %v5294 = vunpack.c.l.b16 %v5134
    %v5295 = vunpack.c.h.b16 %v5134
    %v5296 = vunpack.c.l.b16 %v5135
    %v5297 = vunpack.c.l.b16 %v5136
    %v5298 = vunpack.c.h.b16 %v5136
    %v5299 = vunpack.c.l.b16 %v5137
    %v5300 = vunpack.c.l.b16 %v5138
    %v5301 = vunpack.c.h.b16 %v5138
    %v5302 = vunpack.c.l.b16 %v5139
    %v5303 = vunpack.c.l.b16 %v5140
    %v5304 = vunpack.c.h.b16 %v5140
    %v5305 = vunpack.c.l.b16 %v5141
    %v5306 = vunpack.c.l.b16 %v5142
    %v5307 = vunpack.c.h.b16 %v5142
    %v5308 = vunpack.c.l.b16 %v5143
    %v5309 = vunpack.c.l.b16 %v5144
    %v5310 = vunpack.c.h.b16 %v5144
    %v5311 = vunpack.c.l.b16 %v5145
    %v5312 = vunpack.c.l.b16 %v5146
    %v5313 = vunpack.c.h.b16 %v5146
    %v5314 = vunpack.c.l.b16 %v5147
    %v5315 = vunpack.c.l.b16 %v5148
    %v5316 = vunpack.c.h.b16 %v5148
    %v5317 = vunpack.c.l.b16 %v5149
    %v5318 = vunpack.c.l.b16 %v5150
    %v5319 = vunpack.c.h.b16 %v5150
    %v5320 = vunpack.c.l.b16 %v5151
    %v5321 = vunpack.c.l.b16 %v5152
    %v5322 = vunpack.c.h.b16 %v5152
    %v5323 = vunpack.c.l.b16 %v5153
    %v5324 = vunpack.c.l.b16 %v5154
    %v5325 = vunpack.c.h.b16 %v5154
    %v5326 = vunpack.c.l.b16 %v5155
    %v5327 = vunpack.c.l.b16 %v5156
    %v5328 = vunpack.c.h.b16 %v5156
    %v5329 = vunpack.c.l.b16 %v5157
    %v5330 = vunpack.c.l.b16 %v5158
    %v5331 = vunpack.c.h.b16 %v5158
    %v5332 = vunpack.c.l.b16 %v5159
    %v5333 = vunpack.c.l.b16 %v5160
    %v5334 = vunpack.c.h.b16 %v5160
    %v5335 = vunpack.c.l.b16 %v5161
    %v5336 = vunpack.c.l.b16 %v5162
    %v5337 = vunpack.c.h.b16 %v5162
    %v5338 = vunpack.c.l.b16 %v5163
    %v5339 = vunpack.c.l.b16 %v5164
    %v5340 = vunpack.c.h.b16 %v5164
    %v5341 = vunpack.c.l.b16 %v5165
    %v5342 = vunpack.c.l.b16 %v5166
    %v5343 = vunpack.c.h.b16 %v5166
    %v5344 = vunpack.c.l.b16 %v5167
    %v5345 = vunpack.c.l.b16 %v5168
    %v5346 = vunpack.c.h.b16 %v5168
    %v5347 = vunpack.c.l.b16 %v5169
    %v5348 = vunpack.c.l.b16 %v5170
    %v5349 = vunpack.c.h.b16 %v5170
    %v5350 = vunpack.c.l.b16 %v5171
    %v5351 = vunpack.c.l.b16 %v5172
    %v5352 = vunpack.c.h.b16 %v5172
    %v5353 = vunpack.c.l.b16 %v5173
    %v5354 = vunpack.c.l.b16 %v5174
    %v5355 = vunpack.c.h.b16 %v5174
    %v5356 = vunpack.c.l.b16 %v5175
    %v5357 = vunpack.c.l.b16 %v5176
    %v5358 = vunpack.c.h.b16 %v5176
    %v5359 = vunpack.c.l.b16 %v5177
    %v5360 = vunpack.c.l.b16 %v5178
    %v5361 = vunpack.c.h.b16 %v5178
    %v5362 = vunpack.c.l.b16 %v5179
    %v5363 = vunpack.c.l.b16 %v5180
    %v5364 = vunpack.c.h.b16 %v5180
    %v5365 = vunpack.c.l.b16 %v5181
    %v5366 = vunpack.c.l.b16 %v5182
    %v5367 = vunpack.c.h.b16 %v5182
    %v5368 = vunpack.c.l.b16 %v5183
    %v5369 = vunpack.c.l.b16 %v5184
    %v5370 = vunpack.c.h.b16 %v5184
    %v5371 = vunpack.c.l.b16 %v5185
    %v5372 = vunpack.c.l.b16 %v5186
    %v5373 = vunpack.c.h.b16 %v5186
    %v5374 = vunpack.c.l.b16 %v5187
    %v5375 = vunpack.c.l.b16 %v5188
    %v5376 = vunpack.c.h.b16 %v5188
    %v5377 = vunpack.c.l.b16 %v5189
    %v5378 = vunpack.c.l.b16 %v5190
    %v5379 = vunpack.c.h.b16 %v5190
    %v5380 = vunpack.c.l.b16 %v5191
    %v5381 = vunpack.c.l.b16 %v5192
    %v5382 = vunpack.c.h.b16 %v5192
    %v5383 = vunpack.c.l.b16 %v5193
    %v5384 = vpack.c.b16 %v5273, %v5270
    %v5385 = vpack.c.b16 %v5274, %v5271
    %v5386 = vpack.c.b16 %v5275, %v5272
    %v5387 = vpack.c.b16 %v5279, %v5276
    %v5388 = vpack.c.b16 %v5280, %v5277
    %v5389 = vpack.c.b16 %v5281, %v5278
    %v5390 = vpack.c.b16 %v5285, %v5282
    %v5391 = vpack.c.b16 %v5286, %v5283
    %v5392 = vpack.c.b16 %v5287, %v5284
    %v5393 = vpack.c.b16 %v5291, %v5288
    %v5394 = vpack.c.b16 %v5292, %v5289
    %v5395 = vpack.c.b16 %v5293, %v5290
    %v5396 = vpack.c.b16 %v5297, %v5294
    %v5397 = vpack.c.b16 %v5298, %v5295
    %v5398 = vpack.c.b16 %v5299, %v5296
    %v5399 = vpack.c.b16 %v5303, %v5300
    %v5400 = vpack.c.b16 %v5304, %v5301
    %v5401 = vpack.c.b16 %v5305, %v5302
    %v5402 = vpack.c.b16 %v5309, %v5306
    %v5403 = vpack.c.b16 %v5310, %v5307
    %v5404 = vpack.c.b16 %v5311, %v5308
    %v5405 = vpack.c.b16 %v5315, %v5312
    %v5406 = vpack.c.b16 %v5316, %v5313
    %v5407 = vpack.c.b16 %v5317, %v5314
    %v5408 = vpack.c.b16 %v5321, %v5318
    %v5409 = vpack.c.b16 %v5322, %v5319
    %v5410 = vpack.c.b16 %v5323, %v5320
    %v5411 = vpack.c.b16 %v5327, %v5324
    %v5412 = vpack.c.b16 %v5328, %v5325
    %v5413 = vpack.c.b16 %v5329, %v5326
    %v5414 = vpack.c.b16 %v5333, %v5330
    %v5415 = vpack.c.b16 %v5334, %v5331
    %v5416 = vpack.c.b16 %v5335, %v5332
    %v5417 = vpack.c.b16 %v5339, %v5336
    %v5418 = vpack.c.b16 %v5340, %v5337
    %v5419 = vpack.c.b16 %v5341, %v5338
    %v5420 = vpack.c.b16 %v5345, %v5342
    %v5421 = vpack.c.b16 %v5346, %v5343
    %v5422 = vpack.c.b16 %v5347, %v5344
    %v5423 = vpack.c.b16 %v5351, %v5348
    %v5424 = vpack.c.b16 %v5352, %v5349
    %v5425 = vpack.c.b16 %v5353, %v5350
    %v5426 = vpack.c.b16 %v5357, %v5354
    %v5427 = vpack.c.b16 %v5358, %v5355
    %v5428 = vpack.c.b16 %v5359, %v5356
    %v5429 = vpack.c.b16 %v5363, %v5360
    %v5430 = vpack.c.b16 %v5364, %v5361
    %v5431 = vpack.c.b16 %v5365, %v5362
    %v5432 = vpack.c.b16 %v5369, %v5366
    %v5433 = vpack.c.b16 %v5370, %v5367
    %v5434 = vpack.c.b16 %v5371, %v5368
    %v5435 = vpack.c.b16 %v5375, %v5372
    %v5436 = vpack.c.b16 %v5376, %v5373
    %v5437 = vpack.c.b16 %v5377, %v5374
    %v5438 = vpack.c.b16 %v5381, %v5378
    %v5439 = vpack.c.b16 %v5382, %v5379
    %v5440 = vpack.c.b16 %v5383, %v5380
    %v5496 = vsel %vm675, %v5438, 0
    %v5499 = vsel %vm675, %v5439, 0
    %v5502 = vsel %vm675, %v5440, 0
    %5504 = vmatpush.bf16.msra.mxu0 %v5405
    %5505 = vmatpush.bf16.msra.mxu0 %v5402
    %5506 = vmatpush.bf16.msra.mxu0 %v5399
    %5507 = vmatpush.bf16.msra.mxu0 %v5396
    %5508 = vmatpush.bf16.msra.mxu0 %v5393
    %5509 = vmatpush.bf16.msra.mxu0 %v5390
    %5510 = vmatpush.bf16.msra.mxu0 %v5387
    %5511 = vmatpush.bf16.msra.mxu0 %v5384
    %5512 = vmatmul.bf16.gmra.mxu0 %v325
    %v5513 = vpop.f32.mrf.mxu0
    %v5514 = vadd.f32 0.0, %v5513
    %v5515 = vpop.f32.mrf.mxu0
    %v5516 = vadd.f32 0.0, %v5515
    %5517 = vmatmul.bf16.gmra.mxu0 %v328
    %v5518 = vpop.f32.mrf.mxu0
    %v5519 = vadd.f32 0.0, %v5518
    %v5520 = vpop.f32.mrf.mxu0
    %v5521 = vadd.f32 0.0, %v5520
    %5522 = vmatmul.bf16.gmra.mxu0 %v331
    %v5523 = vpop.f32.mrf.mxu0
    %v5524 = vadd.f32 0.0, %v5523
    %v5525 = vpop.f32.mrf.mxu0
    %v5526 = vadd.f32 0.0, %v5525
    %5527 = vmatmul.bf16.gmra.mxu0 %v334
    %v5528 = vpop.f32.mrf.mxu0
    %v5529 = vadd.f32 0.0, %v5528
    %v5530 = vpop.f32.mrf.mxu0
    %v5531 = vadd.f32 0.0, %v5530
    %5532 = vmatmul.bf16.gmra.mxu0 %v337
    %v5533 = vpop.f32.mrf.mxu0
    %v5534 = vadd.f32 0.0, %v5533
    %v5535 = vpop.f32.mrf.mxu0
    %v5536 = vadd.f32 0.0, %v5535
    %5537 = vmatmul.bf16.gmra.mxu0 %v340
    %v5538 = vpop.f32.mrf.mxu0
    %v5539 = vadd.f32 0.0, %v5538
    %v5540 = vpop.f32.mrf.mxu0
    %v5541 = vadd.f32 0.0, %v5540
    %5542 = vdwg.mxu0
    %5543 = vmatpush.bf16.msra.mxu0 %v5429
    %5544 = vmatpush.bf16.msra.mxu0 %v5426
    %5545 = vmatpush.bf16.msra.mxu0 %v5423
    %5546 = vmatpush.bf16.msra.mxu0 %v5420
    %5547 = vmatpush.bf16.msra.mxu0 %v5417
    %5548 = vmatpush.bf16.msra.mxu0 %v5414
    %5549 = vmatpush.bf16.msra.mxu0 %v5411
    %5550 = vmatpush.bf16.msra.mxu0 %v5408
    %5551 = vmatmul.bf16.gmra.mxu0 %v326
    %v5552 = vpop.f32.mrf.mxu0
    %v5553 = vadd.f32 %v5514, %v5552
    %v5554 = vpop.f32.mrf.mxu0
    %v5555 = vadd.f32 %v5516, %v5554
    %5556 = vmatmul.bf16.gmra.mxu0 %v329
    %v5557 = vpop.f32.mrf.mxu0
    %v5558 = vadd.f32 %v5519, %v5557
    %v5559 = vpop.f32.mrf.mxu0
    %v5560 = vadd.f32 %v5521, %v5559
    %5561 = vmatmul.bf16.gmra.mxu0 %v332
    %v5562 = vpop.f32.mrf.mxu0
    %v5563 = vadd.f32 %v5524, %v5562
    %v5564 = vpop.f32.mrf.mxu0
    %v5565 = vadd.f32 %v5526, %v5564
    %5566 = vmatmul.bf16.gmra.mxu0 %v335
    %v5567 = vpop.f32.mrf.mxu0
    %v5568 = vadd.f32 %v5529, %v5567
    %v5569 = vpop.f32.mrf.mxu0
    %v5570 = vadd.f32 %v5531, %v5569
    %5571 = vmatmul.bf16.gmra.mxu0 %v338
    %v5572 = vpop.f32.mrf.mxu0
    %v5573 = vadd.f32 %v5534, %v5572
    %v5574 = vpop.f32.mrf.mxu0
    %v5575 = vadd.f32 %v5536, %v5574
    %5576 = vmatmul.bf16.gmra.mxu0 %v341
    %v5577 = vpop.f32.mrf.mxu0
    %v5578 = vadd.f32 %v5539, %v5577
    %v5579 = vpop.f32.mrf.mxu0
    %v5580 = vadd.f32 %v5541, %v5579
    %5581 = vdwg.mxu0
    %5582 = vmatpush.bf16.msra.mxu0 0
    %5583 = vmatpush.bf16.msra.mxu0 0
    %5584 = vmatpush.bf16.msra.mxu0 0
    %5585 = vmatpush.bf16.msra.mxu0 0
    %5586 = vmatpush.bf16.msra.mxu0 0
    %5587 = vmatpush.bf16.msra.mxu0 %v5496
    %5588 = vmatpush.bf16.msra.mxu0 %v5435
    %5589 = vmatpush.bf16.msra.mxu0 %v5432
    %5590 = vmatmul.bf16.gmra.mxu0 %v658
    %v5591 = vpop.f32.mrf.mxu0
    %v5592 = vadd.f32 %v5553, %v5591
    %v5593 = vpop.f32.mrf.mxu0
    %v5594 = vadd.f32 %v5555, %v5593
    %5595 = vmatmul.bf16.gmra.mxu0 %v661
    %v5596 = vpop.f32.mrf.mxu0
    %v5597 = vadd.f32 %v5558, %v5596
    %v5598 = vpop.f32.mrf.mxu0
    %v5599 = vadd.f32 %v5560, %v5598
    %5600 = vmatmul.bf16.gmra.mxu0 %v664
    %v5601 = vpop.f32.mrf.mxu0
    %v5602 = vadd.f32 %v5563, %v5601
    %v5603 = vpop.f32.mrf.mxu0
    %v5604 = vadd.f32 %v5565, %v5603
    %5605 = vmatmul.bf16.gmra.mxu0 %v667
    %v5606 = vpop.f32.mrf.mxu0
    %v5607 = vadd.f32 %v5568, %v5606
    %v5608 = vpop.f32.mrf.mxu0
    %v5609 = vadd.f32 %v5570, %v5608
    %5610 = vmatmul.bf16.gmra.mxu0 %v670
    %v5611 = vpop.f32.mrf.mxu0
    %v5612 = vadd.f32 %v5573, %v5611
    %v5613 = vpop.f32.mrf.mxu0
    %v5614 = vadd.f32 %v5575, %v5613
    %5615 = vmatmul.bf16.gmra.mxu0 %v673
    %v5616 = vpop.f32.mrf.mxu0
    %v5617 = vadd.f32 %v5578, %v5616
    %v5618 = vpop.f32.mrf.mxu0
    %v5619 = vadd.f32 %v5580, %v5618
    %5620 = vdwg.mxu0
    %5621 = vmatpush.bf16.msra.mxu0 %v5406
    %5622 = vmatpush.bf16.msra.mxu0 %v5403
    %5623 = vmatpush.bf16.msra.mxu0 %v5400
    %5624 = vmatpush.bf16.msra.mxu0 %v5397
    %5625 = vmatpush.bf16.msra.mxu0 %v5394
    %5626 = vmatpush.bf16.msra.mxu0 %v5391
    %5627 = vmatpush.bf16.msra.mxu0 %v5388
    %5628 = vmatpush.bf16.msra.mxu0 %v5385
    %5629 = vmatmul.bf16.gmra.mxu0 %v325
    %v5630 = vpop.f32.mrf.mxu0
    %v5631 = vadd.f32 0.0, %v5630
    %v5632 = vpop.f32.mrf.mxu0
    %v5633 = vadd.f32 0.0, %v5632
    %5634 = vmatmul.bf16.gmra.mxu0 %v328
    %v5635 = vpop.f32.mrf.mxu0
    %v5636 = vadd.f32 0.0, %v5635
    %v5637 = vpop.f32.mrf.mxu0
    %v5638 = vadd.f32 0.0, %v5637
    %5639 = vmatmul.bf16.gmra.mxu0 %v331
    %v5640 = vpop.f32.mrf.mxu0
    %v5641 = vadd.f32 0.0, %v5640
    %v5642 = vpop.f32.mrf.mxu0
    %v5643 = vadd.f32 0.0, %v5642
    %5644 = vmatmul.bf16.gmra.mxu0 %v334
    %v5645 = vpop.f32.mrf.mxu0
    %v5646 = vadd.f32 0.0, %v5645
    %v5647 = vpop.f32.mrf.mxu0
    %v5648 = vadd.f32 0.0, %v5647
    %5649 = vmatmul.bf16.gmra.mxu0 %v337
    %v5650 = vpop.f32.mrf.mxu0
    %v5651 = vadd.f32 0.0, %v5650
    %v5652 = vpop.f32.mrf.mxu0
    %v5653 = vadd.f32 0.0, %v5652
    %5654 = vmatmul.bf16.gmra.mxu0 %v340
    %v5655 = vpop.f32.mrf.mxu0
    %v5656 = vadd.f32 0.0, %v5655
    %v5657 = vpop.f32.mrf.mxu0
    %v5658 = vadd.f32 0.0, %v5657
    %5659 = vdwg.mxu0
    %5660 = vmatpush.bf16.msra.mxu0 %v5430
    %5661 = vmatpush.bf16.msra.mxu0 %v5427
    %5662 = vmatpush.bf16.msra.mxu0 %v5424
    %5663 = vmatpush.bf16.msra.mxu0 %v5421
    %5664 = vmatpush.bf16.msra.mxu0 %v5418
    %5665 = vmatpush.bf16.msra.mxu0 %v5415
    %5666 = vmatpush.bf16.msra.mxu0 %v5412
    %5667 = vmatpush.bf16.msra.mxu0 %v5409
    %5668 = vmatmul.bf16.gmra.mxu0 %v326
    %v5669 = vpop.f32.mrf.mxu0
    %v5670 = vadd.f32 %v5631, %v5669
    %v5671 = vpop.f32.mrf.mxu0
    %v5672 = vadd.f32 %v5633, %v5671
    %5673 = vmatmul.bf16.gmra.mxu0 %v329
    %v5674 = vpop.f32.mrf.mxu0
    %v5675 = vadd.f32 %v5636, %v5674
    %v5676 = vpop.f32.mrf.mxu0
    %v5677 = vadd.f32 %v5638, %v5676
    %5678 = vmatmul.bf16.gmra.mxu0 %v332
    %v5679 = vpop.f32.mrf.mxu0
    %v5680 = vadd.f32 %v5641, %v5679
    %v5681 = vpop.f32.mrf.mxu0
    %v5682 = vadd.f32 %v5643, %v5681
    %5683 = vmatmul.bf16.gmra.mxu0 %v335
    %v5684 = vpop.f32.mrf.mxu0
    %v5685 = vadd.f32 %v5646, %v5684
    %v5686 = vpop.f32.mrf.mxu0
    %v5687 = vadd.f32 %v5648, %v5686
    %5688 = vmatmul.bf16.gmra.mxu0 %v338
    %v5689 = vpop.f32.mrf.mxu0
    %v5690 = vadd.f32 %v5651, %v5689
    %v5691 = vpop.f32.mrf.mxu0
    %v5692 = vadd.f32 %v5653, %v5691
    %5693 = vmatmul.bf16.gmra.mxu0 %v341
    %v5694 = vpop.f32.mrf.mxu0
    %v5695 = vadd.f32 %v5656, %v5694
    %v5696 = vpop.f32.mrf.mxu0
    %v5697 = vadd.f32 %v5658, %v5696
    %5698 = vdwg.mxu0
    %5699 = vmatpush.bf16.msra.mxu0 0
    %5700 = vmatpush.bf16.msra.mxu0 0
    %5701 = vmatpush.bf16.msra.mxu0 0
    %5702 = vmatpush.bf16.msra.mxu0 0
    %5703 = vmatpush.bf16.msra.mxu0 0
    %5704 = vmatpush.bf16.msra.mxu0 %v5499
    %5705 = vmatpush.bf16.msra.mxu0 %v5436
    %5706 = vmatpush.bf16.msra.mxu0 %v5433
    %5707 = vmatmul.bf16.gmra.mxu0 %v658
    %v5708 = vpop.f32.mrf.mxu0
    %v5709 = vadd.f32 %v5670, %v5708
    %v5710 = vpop.f32.mrf.mxu0
    %v5711 = vadd.f32 %v5672, %v5710
    %5712 = vmatmul.bf16.gmra.mxu0 %v661
    %v5713 = vpop.f32.mrf.mxu0
    %v5714 = vadd.f32 %v5675, %v5713
    %v5715 = vpop.f32.mrf.mxu0
    %v5716 = vadd.f32 %v5677, %v5715
    %5717 = vmatmul.bf16.gmra.mxu0 %v664
    %v5718 = vpop.f32.mrf.mxu0
    %v5719 = vadd.f32 %v5680, %v5718
    %v5720 = vpop.f32.mrf.mxu0
    %v5721 = vadd.f32 %v5682, %v5720
    %5722 = vmatmul.bf16.gmra.mxu0 %v667
    %v5723 = vpop.f32.mrf.mxu0
    %v5724 = vadd.f32 %v5685, %v5723
    %v5725 = vpop.f32.mrf.mxu0
    %v5726 = vadd.f32 %v5687, %v5725
    %5727 = vmatmul.bf16.gmra.mxu0 %v670
    %v5728 = vpop.f32.mrf.mxu0
    %v5729 = vadd.f32 %v5690, %v5728
    %v5730 = vpop.f32.mrf.mxu0
    %v5731 = vadd.f32 %v5692, %v5730
    %5732 = vmatmul.bf16.gmra.mxu0 %v673
    %v5733 = vpop.f32.mrf.mxu0
    %v5734 = vadd.f32 %v5695, %v5733
    %v5735 = vpop.f32.mrf.mxu0
    %v5736 = vadd.f32 %v5697, %v5735
    %5737 = vdwg.mxu0
    %5738 = vmatpush.bf16.msra.mxu0 %v5407
    %5739 = vmatpush.bf16.msra.mxu0 %v5404
    %5740 = vmatpush.bf16.msra.mxu0 %v5401
    %5741 = vmatpush.bf16.msra.mxu0 %v5398
    %5742 = vmatpush.bf16.msra.mxu0 %v5395
    %5743 = vmatpush.bf16.msra.mxu0 %v5392
    %5744 = vmatpush.bf16.msra.mxu0 %v5389
    %5745 = vmatpush.bf16.msra.mxu0 %v5386
    %5746 = vmatmul.bf16.gmra.mxu0 %v325
    %v5747 = vpop.f32.mrf.mxu0
    %v5748 = vadd.f32 0.0, %v5747
    %v5749 = vpop.f32.mrf.mxu0
    %v5750 = vadd.f32 0.0, %v5749
    %5751 = vmatmul.bf16.gmra.mxu0 %v328
    %v5752 = vpop.f32.mrf.mxu0
    %v5753 = vadd.f32 0.0, %v5752
    %v5754 = vpop.f32.mrf.mxu0
    %v5755 = vadd.f32 0.0, %v5754
    %5756 = vmatmul.bf16.gmra.mxu0 %v331
    %v5757 = vpop.f32.mrf.mxu0
    %v5758 = vadd.f32 0.0, %v5757
    %v5759 = vpop.f32.mrf.mxu0
    %v5760 = vadd.f32 0.0, %v5759
    %5761 = vmatmul.bf16.gmra.mxu0 %v334
    %v5762 = vpop.f32.mrf.mxu0
    %v5763 = vadd.f32 0.0, %v5762
    %v5764 = vpop.f32.mrf.mxu0
    %v5765 = vadd.f32 0.0, %v5764
    %5766 = vmatmul.bf16.gmra.mxu0 %v337
    %v5767 = vpop.f32.mrf.mxu0
    %v5768 = vadd.f32 0.0, %v5767
    %v5769 = vpop.f32.mrf.mxu0
    %v5770 = vadd.f32 0.0, %v5769
    %5771 = vmatmul.bf16.gmra.mxu0 %v340
    %v5772 = vpop.f32.mrf.mxu0
    %v5773 = vadd.f32 0.0, %v5772
    %v5774 = vpop.f32.mrf.mxu0
    %v5775 = vadd.f32 0.0, %v5774
    %5776 = vdwg.mxu0
    %5777 = vmatpush.bf16.msra.mxu0 %v5431
    %5778 = vmatpush.bf16.msra.mxu0 %v5428
    %5779 = vmatpush.bf16.msra.mxu0 %v5425
    %5780 = vmatpush.bf16.msra.mxu0 %v5422
    %5781 = vmatpush.bf16.msra.mxu0 %v5419
    %5782 = vmatpush.bf16.msra.mxu0 %v5416
    %5783 = vmatpush.bf16.msra.mxu0 %v5413
    %5784 = vmatpush.bf16.msra.mxu0 %v5410
    %5785 = vmatmul.bf16.gmra.mxu0 %v326
    %v5786 = vpop.f32.mrf.mxu0
    %v5787 = vadd.f32 %v5748, %v5786
    %v5788 = vpop.f32.mrf.mxu0
    %v5789 = vadd.f32 %v5750, %v5788
    %5790 = vmatmul.bf16.gmra.mxu0 %v329
    %v5791 = vpop.f32.mrf.mxu0
    %v5792 = vadd.f32 %v5753, %v5791
    %v5793 = vpop.f32.mrf.mxu0
    %v5794 = vadd.f32 %v5755, %v5793
    %5795 = vmatmul.bf16.gmra.mxu0 %v332
    %v5796 = vpop.f32.mrf.mxu0
    %v5797 = vadd.f32 %v5758, %v5796
    %v5798 = vpop.f32.mrf.mxu0
    %v5799 = vadd.f32 %v5760, %v5798
    %5800 = vmatmul.bf16.gmra.mxu0 %v335
    %v5801 = vpop.f32.mrf.mxu0
    %v5802 = vadd.f32 %v5763, %v5801
    %v5803 = vpop.f32.mrf.mxu0
    %v5804 = vadd.f32 %v5765, %v5803
    %5805 = vmatmul.bf16.gmra.mxu0 %v338
    %v5806 = vpop.f32.mrf.mxu0
    %v5807 = vadd.f32 %v5768, %v5806
    %v5808 = vpop.f32.mrf.mxu0
    %v5809 = vadd.f32 %v5770, %v5808
    %5810 = vmatmul.bf16.gmra.mxu0 %v341
    %v5811 = vpop.f32.mrf.mxu0
    %v5812 = vadd.f32 %v5773, %v5811
    %v5813 = vpop.f32.mrf.mxu0
    %v5814 = vadd.f32 %v5775, %v5813
    %5815 = vdwg.mxu0
    %5816 = vmatpush.bf16.msra.mxu0 0
    %5817 = vmatpush.bf16.msra.mxu0 0
    %5818 = vmatpush.bf16.msra.mxu0 0
    %5819 = vmatpush.bf16.msra.mxu0 0
    %5820 = vmatpush.bf16.msra.mxu0 0
    %5821 = vmatpush.bf16.msra.mxu0 %v5502
    %5822 = vmatpush.bf16.msra.mxu0 %v5437
    %5823 = vmatpush.bf16.msra.mxu0 %v5434
    %5824 = vmatmul.bf16.gmra.mxu0 %v658
    %v5825 = vpop.f32.mrf.mxu0
    %v5826 = vadd.f32 %v5787, %v5825
    %v5827 = vpop.f32.mrf.mxu0
    %v5828 = vadd.f32 %v5789, %v5827
    %5829 = vmatmul.bf16.gmra.mxu0 %v661
    %v5830 = vpop.f32.mrf.mxu0
    %v5831 = vadd.f32 %v5792, %v5830
    %v5832 = vpop.f32.mrf.mxu0
    %v5833 = vadd.f32 %v5794, %v5832
    %5834 = vmatmul.bf16.gmra.mxu0 %v664
    %v5835 = vpop.f32.mrf.mxu0
    %v5836 = vadd.f32 %v5797, %v5835
    %v5837 = vpop.f32.mrf.mxu0
    %v5838 = vadd.f32 %v5799, %v5837
    %5839 = vmatmul.bf16.gmra.mxu0 %v667
    %v5840 = vpop.f32.mrf.mxu0
    %v5841 = vadd.f32 %v5802, %v5840
    %v5842 = vpop.f32.mrf.mxu0
    %v5843 = vadd.f32 %v5804, %v5842
    %5844 = vmatmul.bf16.gmra.mxu0 %v670
    %v5845 = vpop.f32.mrf.mxu0
    %v5846 = vadd.f32 %v5807, %v5845
    %v5847 = vpop.f32.mrf.mxu0
    %v5848 = vadd.f32 %v5809, %v5847
    %5849 = vmatmul.bf16.gmra.mxu0 %v673
    %v5850 = vpop.f32.mrf.mxu0
    %v5851 = vadd.f32 %v5812, %v5850
    %v5852 = vpop.f32.mrf.mxu0
    %v5853 = vadd.f32 %v5814, %v5852
    %5854 = vdwg.mxu0
    %v5855 = vrot.slane %v5592, 3
    %v5856 = vrot.slane %v5709, 3
    %v5857 = vrot.slane %v5826, 3
    %v5858 = vrot.slane %v5594, 3
    %v5859 = vrot.slane %v5711, 3
    %v5860 = vrot.slane %v5828, 3
    %v5861 = vrot.slane %v5597, 3
    %v5862 = vrot.slane %v5714, 3
    %v5863 = vrot.slane %v5831, 3
    %v5864 = vrot.slane %v5599, 3
    %v5865 = vrot.slane %v5716, 3
    %v5866 = vrot.slane %v5833, 3
    %v5867 = vrot.slane %v5602, 3
    %v5868 = vrot.slane %v5719, 3
    %v5869 = vrot.slane %v5836, 3
    %v5870 = vrot.slane %v5604, 3
    %v5871 = vrot.slane %v5721, 3
    %v5872 = vrot.slane %v5838, 3
    %v5873 = vrot.slane %v5607, 3
    %v5874 = vrot.slane %v5724, 3
    %v5875 = vrot.slane %v5841, 3
    %v5876 = vrot.slane %v5609, 3
    %v5877 = vrot.slane %v5726, 3
    %v5878 = vrot.slane %v5843, 3
    %v5879 = vrot.slane %v5612, 3
    %v5880 = vrot.slane %v5729, 3
    %v5881 = vrot.slane %v5846, 3
    %v5882 = vrot.slane %v5614, 3
    %v5883 = vrot.slane %v5731, 3
    %v5884 = vrot.slane %v5848, 3
    %v5885 = vrot.slane %v5617, 3
    %v5886 = vrot.slane %v5734, 3
    %v5887 = vrot.slane %v5851, 3
    %v5888 = vrot.slane %v5619, 3
    %v5889 = vrot.slane %v5736, 3
    %v5890 = vrot.slane %v5853, 3
    %vm5891 = vcmp.lt.s32.totalorder %v1073, 5
    %v5892 = vsel %vm5891, %v5885, %v5888
    %v5893 = vsel %vm5891, %v5886, %v5889
    %v5894 = vsel %vm5891, %v5887, %v5890
    %v5895 = vsel %vm5891, %v5882, %v5885
    %v5896 = vsel %vm5891, %v5883, %v5886
    %v5897 = vsel %vm5891, %v5884, %v5887
    %v5898 = vsel %vm5891, %v5876, %v5879
    %v5899 = vsel %vm5891, %v5877, %v5880
    %v5900 = vsel %vm5891, %v5878, %v5881
    %v5901 = vsel %vm5891, %v5873, %v5876
    %v5902 = vsel %vm5891, %v5874, %v5877
    %v5903 = vsel %vm5891, %v5875, %v5878
    %v5904 = vsel %vm5891, %v5867, %v5870
    %v5905 = vsel %vm5891, %v5868, %v5871
    %v5906 = vsel %vm5891, %v5869, %v5872
    %v5907 = vsel %vm5891, %v5864, %v5867
    %v5908 = vsel %vm5891, %v5865, %v5868
    %v5909 = vsel %vm5891, %v5866, %v5869
    %v5910 = vsel %vm5891, %v5858, %v5861
    %v5911 = vsel %vm5891, %v5859, %v5862
    %v5912 = vsel %vm5891, %v5860, %v5863
    %v5913 = vsel %vm5891, %v5855, %v5858
    %v5914 = vsel %vm5891, %v5856, %v5859
    %v5915 = vsel %vm5891, %v5857, %v5860
    %v5916 = vadd.f32 %v5093, %v5913
    %v5917 = vadd.f32 %v5094, %v5914
    %v5918 = vadd.f32 %v5095, %v5915
    %v5919 = vadd.f32 %v5096, %v5910
    %v5920 = vadd.f32 %v5097, %v5911
    %v5921 = vadd.f32 %v5098, %v5912
    %v5922 = vadd.f32 %v5099, %v5907
    %v5923 = vadd.f32 %v5100, %v5908
    %v5924 = vadd.f32 %v5101, %v5909
    %v5925 = vadd.f32 %v5102, %v5904
    %v5926 = vadd.f32 %v5103, %v5905
    %v5927 = vadd.f32 %v5104, %v5906
    %v5928 = vadd.f32 %v5105, %v5901
    %v5929 = vadd.f32 %v5106, %v5902
    %v5930 = vadd.f32 %v5107, %v5903
    %v5931 = vadd.f32 %v5108, %v5898
    %v5932 = vadd.f32 %v5109, %v5899
    %v5933 = vadd.f32 %v5110, %v5900
    %v5934 = vadd.f32 %v5111, %v5895
    %v5935 = vadd.f32 %v5112, %v5896
    %v5936 = vadd.f32 %v5113, %v5897
    %v5937 = vadd.f32 %v5114, %v5892
    %v5938 = vadd.f32 %v5115, %v5893
    %v5939 = vadd.f32 %v5116, %v5894
    %v5940 = vld [vmem:[#allocation8] sm:$0x7]
    %v5942 = vperm.slane %v5940, 0
    %v5943 = vperm.slane %v5940, 1
    %v5944 = vperm.slane %v5940, 2
    %v5948 = vadd.f32 %v5916, %v5942
    %v5949 = vadd.f32 %v5917, %v5943
    %v5950 = vadd.f32 %v5918, %v5944
    %v5951 = vadd.f32 %v5919, %v5942
    %v5952 = vadd.f32 %v5920, %v5943
    %v5953 = vadd.f32 %v5921, %v5944
    %v5954 = vadd.f32 %v5922, %v5942
    %v5955 = vadd.f32 %v5923, %v5943
    %v5956 = vadd.f32 %v5924, %v5944
    %v5957 = vadd.f32 %v5925, %v5942
    %v5958 = vadd.f32 %v5926, %v5943
    %v5959 = vadd.f32 %v5927, %v5944
    %v5960 = vadd.f32 %v5928, %v5942
    %v5961 = vadd.f32 %v5929, %v5943
    %v5962 = vadd.f32 %v5930, %v5944
    %v5963 = vadd.f32 %v5931, %v5942
    %v5964 = vadd.f32 %v5932, %v5943
    %v5965 = vadd.f32 %v5933, %v5944
    %v5966 = vadd.f32 %v5934, %v5942
    %v5967 = vadd.f32 %v5935, %v5943
    %v5968 = vadd.f32 %v5936, %v5944
    %v5969 = vadd.f32 %v5937, %v5942
    %v5970 = vadd.f32 %v5938, %v5943
    %v5971 = vadd.f32 %v5939, %v5944
    %v5972 = vmax.f32 %v5948, 0.0
    %v5973 = vmax.f32 %v5949, 0.0
    %v5974 = vmax.f32 %v5950, 0.0
    %v5975 = vmax.f32 %v5951, 0.0
    %v5976 = vmax.f32 %v5952, 0.0
    %v5977 = vmax.f32 %v5953, 0.0
    %v5978 = vmax.f32 %v5954, 0.0
    %v5979 = vmax.f32 %v5955, 0.0
    %v5980 = vmax.f32 %v5956, 0.0
    %v5981 = vmax.f32 %v5957, 0.0
    %v5982 = vmax.f32 %v5958, 0.0
    %v5983 = vmax.f32 %v5959, 0.0
    %v5984 = vmax.f32 %v5960, 0.0
    %v5985 = vmax.f32 %v5961, 0.0
    %v5986 = vmax.f32 %v5962, 0.0
    %v5987 = vmax.f32 %v5963, 0.0
    %v5988 = vmax.f32 %v5964, 0.0
    %v5989 = vmax.f32 %v5965, 0.0
    %v5990 = vmax.f32 %v5966, 0.0
    %v5991 = vmax.f32 %v5967, 0.0
    %v5992 = vmax.f32 %v5968, 0.0
    %v5993 = vmax.f32 %v5969, 0.0
    %v5994 = vmax.f32 %v5970, 0.0
    %v5995 = vmax.f32 %v5971, 0.0
    %v5996 = vld [vmem:[#allocation9] sm:$0x1]
    %v5997 = vmax.f32 %v5972, %v5975
    %v5998 = vrot.slane %v5997, 4
    %v5999 = vmax.f32 %v5997, %v5998
    %v6000 = vrot.slane %v5999, 2
    %v6001 = vmax.f32 %v5999, %v6000
    %v6002 = vrot.slane %v6001, 1
    %v6003 = vmax.f32 %v6001, %v6002
    %v6004 = vmax.f32 %v5973, %v5976
    %v6005 = vrot.slane %v6004, 4
    %v6006 = vmax.f32 %v6004, %v6005
    %v6007 = vrot.slane %v6006, 2
    %v6008 = vmax.f32 %v6006, %v6007
    %v6009 = vrot.slane %v6008, 1
    %v6010 = vmax.f32 %v6008, %v6009
    %v6011 = vmax.f32 %v5974, %v5977
    %v6012 = vrot.slane %v6011, 4
    %v6013 = vmax.f32 %v6011, %v6012
    %v6014 = vrot.slane %v6013, 2
    %v6015 = vmax.f32 %v6013, %v6014
    %v6016 = vrot.slane %v6015, 1
    %v6017 = vmax.f32 %v6015, %v6016
    %v6018 = vld [vmem:[%s3] sm:$0xff]
    %v6019 = vld [vmem:[%s3 + $0x8] sm:$0xff]
    %v6020 = vld [vmem:[%s3 + $0x10] sm:$0xff]
    %v6021 = vld [vmem:[%s3 + $0x18] sm:$0xff]
    %v6022 = vld [vmem:[%s3 + $0x20] sm:$0xff]
    %v6023 = vld [vmem:[%s3 + $0x28] sm:$0xff]
    %v6024 = vld [vmem:[%s3 + $0x30] sm:$0xff]
    %v6025 = vld [vmem:[%s3 + $0x38] sm:$0xff]
    %v6026 = vld [vmem:[%s3 + $0x40] sm:$0xff]
    %v6027 = vld [vmem:[%s3 + $0x48] sm:$0xff]
    %v6028 = vld [vmem:[%s3 + $0x50] sm:$0xff]
    %v6029 = vld [vmem:[%s3 + $0x58] sm:$0xff]
    %v6030 = vld [vmem:[%s3 + $0x60] sm:$0xff]
    %v6031 = vld [vmem:[%s3 + $0x68] sm:$0xff]
    %v6032 = vld [vmem:[%s3 + $0x70] sm:$0xff]
    %v6033 = vld [vmem:[%s3 + $0x78] sm:$0xff]
    %v6034 = vld [vmem:[%s3 + $0x80] sm:$0xff]
    %v6035 = vld [vmem:[%s3 + $0x88] sm:$0xff]
    %v6036 = vld [vmem:[%s3 + $0x90] sm:$0xff]
    %v6037 = vld [vmem:[%s3 + $0x98] sm:$0xff]
    %v6038 = vld [vmem:[%s3 + $0xa0] sm:$0xff]
    %v6039 = vld [vmem:[%s3 + $0xa8] sm:$0xff]
    %v6040 = vld [vmem:[%s3 + $0xb0] sm:$0xff]
    %v6041 = vld [vmem:[%s3 + $0xb8] sm:$0xff]
    %v6042 = vld [vmem:[%s3 + $0xc0] sm:$0xff]
    %v6043 = vld [vmem:[%s3 + $0xc8] sm:$0xff]
    %v6044 = vld [vmem:[%s3 + $0xd0] sm:$0xff]
    %v6045 = vld [vmem:[%s3 + $0xd8] sm:$0xff]
    %v6046 = vld [vmem:[%s3 + $0xe0] sm:$0xff]
    %v6047 = vld [vmem:[%s3 + $0xe8] sm:$0xff]
    %v6048 = vld [vmem:[%s3 + $0xf0] sm:$0xff]
    %v6049 = vld [vmem:[%s3 + $0xf8] sm:$0xff]
    %v6050 = vld [vmem:[%s3 + $0x100] sm:$0xff]
    %v6051 = vld [vmem:[%s3 + $0x108] sm:$0xff]
    %v6052 = vld [vmem:[%s3 + $0x110] sm:$0xff]
    %v6053 = vld [vmem:[%s3 + $0x118] sm:$0xff]
    %v6054 = vld [vmem:[%s3 + $0x120] sm:$0xff]
    %v6055 = vld [vmem:[%s3 + $0x128] sm:$0xff]
    %v6056 = vld [vmem:[%s3 + $0x130] sm:$0xff]
    %v6057 = vld [vmem:[%s3 + $0x138] sm:$0xff]
    %v6058 = vld [vmem:[%s3 + $0x140] sm:$0xff]
    %v6059 = vld [vmem:[%s3 + $0x148] sm:$0xff]
    %v6060 = vld [vmem:[%s3 + $0x150] sm:$0xff]
    %v6061 = vld [vmem:[%s3 + $0x158] sm:$0xff]
    %v6062 = vld [vmem:[%s3 + $0x160] sm:$0xff]
    %v6063 = vld [vmem:[%s3 + $0x168] sm:$0xff]
    %v6064 = vld [vmem:[%s3 + $0x170] sm:$0xff]
    %v6065 = vld [vmem:[%s3 + $0x178] sm:$0xff]
    %6066 = vmatpush.msra.mxu0 %v6033
    %6067 = vmatpush.msra.mxu0 %v6032
    %6068 = vmatpush.msra.mxu0 %v6031
    %6069 = vmatpush.msra.mxu0 %v6030
    %6070 = vmatpush.msra.mxu0 %v6029
    %6071 = vmatpush.msra.mxu0 %v6028
    %6072 = vmatpush.msra.mxu0 %v6027
    %6073 = vmatpush.msra.mxu0 %v6026
    %6074 = vmatpush.msra.mxu0 %v6025
    %6075 = vmatpush.msra.mxu0 %v6024
    %6076 = vmatpush.msra.mxu0 %v6023
    %6077 = vmatpush.msra.mxu0 %v6022
    %6078 = vmatpush.msra.mxu0 %v6021
    %6079 = vmatpush.msra.mxu0 %v6020
    %6080 = vmatpush.msra.mxu0 %v6019
    %6081 = vmatpush.msra.mxu0 %v6018
    %6082 = vmatmul.f32.gmra.mxu0 %v6003
    %v6083 = vpop.f32.mrf.mxu0
    %v6084 = vadd.f32 0.0, %v6083
    %6085 = vdwg.mxu0
    %6086 = vmatpush.msra.mxu0 %v6049
    %6087 = vmatpush.msra.mxu0 %v6048
    %6088 = vmatpush.msra.mxu0 %v6047
    %6089 = vmatpush.msra.mxu0 %v6046
    %6090 = vmatpush.msra.mxu0 %v6045
    %6091 = vmatpush.msra.mxu0 %v6044
    %6092 = vmatpush.msra.mxu0 %v6043
    %6093 = vmatpush.msra.mxu0 %v6042
    %6094 = vmatpush.msra.mxu0 %v6041
    %6095 = vmatpush.msra.mxu0 %v6040
    %6096 = vmatpush.msra.mxu0 %v6039
    %6097 = vmatpush.msra.mxu0 %v6038
    %6098 = vmatpush.msra.mxu0 %v6037
    %6099 = vmatpush.msra.mxu0 %v6036
    %6100 = vmatpush.msra.mxu0 %v6035
    %6101 = vmatpush.msra.mxu0 %v6034
    %6102 = vmatmul.f32.gmra.mxu0 %v6010
    %v6103 = vpop.f32.mrf.mxu0
    %v6104 = vadd.f32 %v6084, %v6103
    %6105 = vdwg.mxu0
    %6106 = vmatpush.msra.mxu0 %v6065
    %6107 = vmatpush.msra.mxu0 %v6064
    %6108 = vmatpush.msra.mxu0 %v6063
    %6109 = vmatpush.msra.mxu0 %v6062
    %6110 = vmatpush.msra.mxu0 %v6061
    %6111 = vmatpush.msra.mxu0 %v6060
    %6112 = vmatpush.msra.mxu0 %v6059
    %6113 = vmatpush.msra.mxu0 %v6058
    %6114 = vmatpush.msra.mxu0 %v6057
    %6115 = vmatpush.msra.mxu0 %v6056
    %6116 = vmatpush.msra.mxu0 %v6055
    %6117 = vmatpush.msra.mxu0 %v6054
    %6118 = vmatpush.msra.mxu0 %v6053
    %6119 = vmatpush.msra.mxu0 %v6052
    %6120 = vmatpush.msra.mxu0 %v6051
    %6121 = vmatpush.msra.mxu0 %v6050
    %6122 = vmatmul.f32.gmra.mxu0 %v6017
    %v6123 = vpop.f32.mrf.mxu0
    %v6124 = vadd.f32 %v6104, %v6123
    %6125 = vdwg.mxu0
    %v6126 = vadd.f32 %v5996, %v6124
    %v6127 = vmax.f32 %v5978, %v5981
    %v6128 = vrot.slane %v6127, 4
    %v6129 = vmax.f32 %v6127, %v6128
    %v6130 = vrot.slane %v6129, 2
    %v6131 = vmax.f32 %v6129, %v6130
    %v6132 = vrot.slane %v6131, 1
    %v6133 = vmax.f32 %v6131, %v6132
    %v6134 = vmax.f32 %v5979, %v5982
    %v6135 = vrot.slane %v6134, 4
    %v6136 = vmax.f32 %v6134, %v6135
    %v6137 = vrot.slane %v6136, 2
    %v6138 = vmax.f32 %v6136, %v6137
    %v6139 = vrot.slane %v6138, 1
    %v6140 = vmax.f32 %v6138, %v6139
    %v6141 = vmax.f32 %v5980, %v5983
    %v6142 = vrot.slane %v6141, 4
    %v6143 = vmax.f32 %v6141, %v6142
    %v6144 = vrot.slane %v6143, 2
    %v6145 = vmax.f32 %v6143, %v6144
    %v6146 = vrot.slane %v6145, 1
    %v6147 = vmax.f32 %v6145, %v6146
    %s6148 = scalar_lea.vmem %s3, 384
    %v6149 = vld [vmem:[%s6148] sm:$0xff]
    %v6150 = vld [vmem:[%s6148 + $0x8] sm:$0xff]
    %v6151 = vld [vmem:[%s6148 + $0x10] sm:$0xff]
    %v6152 = vld [vmem:[%s6148 + $0x18] sm:$0xff]
    %v6153 = vld [vmem:[%s6148 + $0x20] sm:$0xff]
    %v6154 = vld [vmem:[%s6148 + $0x28] sm:$0xff]
    %v6155 = vld [vmem:[%s6148 + $0x30] sm:$0xff]
    %v6156 = vld [vmem:[%s6148 + $0x38] sm:$0xff]
    %v6157 = vld [vmem:[%s6148 + $0x40] sm:$0xff]
    %v6158 = vld [vmem:[%s6148 + $0x48] sm:$0xff]
    %v6159 = vld [vmem:[%s6148 + $0x50] sm:$0xff]
    %v6160 = vld [vmem:[%s6148 + $0x58] sm:$0xff]
    %v6161 = vld [vmem:[%s6148 + $0x60] sm:$0xff]
    %v6162 = vld [vmem:[%s6148 + $0x68] sm:$0xff]
    %v6163 = vld [vmem:[%s6148 + $0x70] sm:$0xff]
    %v6164 = vld [vmem:[%s6148 + $0x78] sm:$0xff]
    %v6165 = vld [vmem:[%s6148 + $0x80] sm:$0xff]
    %v6166 = vld [vmem:[%s6148 + $0x88] sm:$0xff]
    %v6167 = vld [vmem:[%s6148 + $0x90] sm:$0xff]
    %v6168 = vld [vmem:[%s6148 + $0x98] sm:$0xff]
    %v6169 = vld [vmem:[%s6148 + $0xa0] sm:$0xff]
    %v6170 = vld [vmem:[%s6148 + $0xa8] sm:$0xff]
    %v6171 = vld [vmem:[%s6148 + $0xb0] sm:$0xff]
    %v6172 = vld [vmem:[%s6148 + $0xb8] sm:$0xff]
    %v6173 = vld [vmem:[%s6148 + $0xc0] sm:$0xff]
    %v6174 = vld [vmem:[%s6148 + $0xc8] sm:$0xff]
    %v6175 = vld [vmem:[%s6148 + $0xd0] sm:$0xff]
    %v6176 = vld [vmem:[%s6148 + $0xd8] sm:$0xff]
    %v6177 = vld [vmem:[%s6148 + $0xe0] sm:$0xff]
    %v6178 = vld [vmem:[%s6148 + $0xe8] sm:$0xff]
    %v6179 = vld [vmem:[%s6148 + $0xf0] sm:$0xff]
    %v6180 = vld [vmem:[%s6148 + $0xf8] sm:$0xff]
    %v6181 = vld [vmem:[%s6148 + $0x100] sm:$0xff]
    %v6182 = vld [vmem:[%s6148 + $0x108] sm:$0xff]
    %v6183 = vld [vmem:[%s6148 + $0x110] sm:$0xff]
    %v6184 = vld [vmem:[%s6148 + $0x118] sm:$0xff]
    %v6185 = vld [vmem:[%s6148 + $0x120] sm:$0xff]
    %v6186 = vld [vmem:[%s6148 + $0x128] sm:$0xff]
    %v6187 = vld [vmem:[%s6148 + $0x130] sm:$0xff]
    %v6188 = vld [vmem:[%s6148 + $0x138] sm:$0xff]
    %v6189 = vld [vmem:[%s6148 + $0x140] sm:$0xff]
    %v6190 = vld [vmem:[%s6148 + $0x148] sm:$0xff]
    %v6191 = vld [vmem:[%s6148 + $0x150] sm:$0xff]
    %v6192 = vld [vmem:[%s6148 + $0x158] sm:$0xff]
    %v6193 = vld [vmem:[%s6148 + $0x160] sm:$0xff]
    %v6194 = vld [vmem:[%s6148 + $0x168] sm:$0xff]
    %v6195 = vld [vmem:[%s6148 + $0x170] sm:$0xff]
    %v6196 = vld [vmem:[%s6148 + $0x178] sm:$0xff]
    %6197 = vmatpush.msra.mxu0 %v6164
    %6198 = vmatpush.msra.mxu0 %v6163
    %6199 = vmatpush.msra.mxu0 %v6162
    %6200 = vmatpush.msra.mxu0 %v6161
    %6201 = vmatpush.msra.mxu0 %v6160
    %6202 = vmatpush.msra.mxu0 %v6159
    %6203 = vmatpush.msra.mxu0 %v6158
    %6204 = vmatpush.msra.mxu0 %v6157
    %6205 = vmatpush.msra.mxu0 %v6156
    %6206 = vmatpush.msra.mxu0 %v6155
    %6207 = vmatpush.msra.mxu0 %v6154
    %6208 = vmatpush.msra.mxu0 %v6153
    %6209 = vmatpush.msra.mxu0 %v6152
    %6210 = vmatpush.msra.mxu0 %v6151
    %6211 = vmatpush.msra.mxu0 %v6150
    %6212 = vmatpush.msra.mxu0 %v6149
    %6213 = vmatmul.f32.gmra.mxu0 %v6133
    %v6214 = vpop.f32.mrf.mxu0
    %v6215 = vadd.f32 0.0, %v6214
    %6216 = vdwg.mxu0
    %6217 = vmatpush.msra.mxu0 %v6180
    %6218 = vmatpush.msra.mxu0 %v6179
    %6219 = vmatpush.msra.mxu0 %v6178
    %6220 = vmatpush.msra.mxu0 %v6177
    %6221 = vmatpush.msra.mxu0 %v6176
    %6222 = vmatpush.msra.mxu0 %v6175
    %6223 = vmatpush.msra.mxu0 %v6174
    %6224 = vmatpush.msra.mxu0 %v6173
    %6225 = vmatpush.msra.mxu0 %v6172
    %6226 = vmatpush.msra.mxu0 %v6171
    %6227 = vmatpush.msra.mxu0 %v6170
    %6228 = vmatpush.msra.mxu0 %v6169
    %6229 = vmatpush.msra.mxu0 %v6168
    %6230 = vmatpush.msra.mxu0 %v6167
    %6231 = vmatpush.msra.mxu0 %v6166
    %6232 = vmatpush.msra.mxu0 %v6165
    %6233 = vmatmul.f32.gmra.mxu0 %v6140
    %v6234 = vpop.f32.mrf.mxu0
    %v6235 = vadd.f32 %v6215, %v6234
    %6236 = vdwg.mxu0
    %6237 = vmatpush.msra.mxu0 %v6196
    %6238 = vmatpush.msra.mxu0 %v6195
    %6239 = vmatpush.msra.mxu0 %v6194
    %6240 = vmatpush.msra.mxu0 %v6193
    %6241 = vmatpush.msra.mxu0 %v6192
    %6242 = vmatpush.msra.mxu0 %v6191
    %6243 = vmatpush.msra.mxu0 %v6190
    %6244 = vmatpush.msra.mxu0 %v6189
    %6245 = vmatpush.msra.mxu0 %v6188
    %6246 = vmatpush.msra.mxu0 %v6187
    %6247 = vmatpush.msra.mxu0 %v6186
    %6248 = vmatpush.msra.mxu0 %v6185
    %6249 = vmatpush.msra.mxu0 %v6184
    %6250 = vmatpush.msra.mxu0 %v6183
    %6251 = vmatpush.msra.mxu0 %v6182
    %6252 = vmatpush.msra.mxu0 %v6181
    %6253 = vmatmul.f32.gmra.mxu0 %v6147
    %v6254 = vpop.f32.mrf.mxu0
    %v6255 = vadd.f32 %v6235, %v6254
    %6256 = vdwg.mxu0
    %v6257 = vadd.f32 %v6126, %v6255
    %v6258 = vmax.f32 %v5984, %v5987
    %v6259 = vrot.slane %v6258, 4
    %v6260 = vmax.f32 %v6258, %v6259
    %v6261 = vrot.slane %v6260, 2
    %v6262 = vmax.f32 %v6260, %v6261
    %v6263 = vrot.slane %v6262, 1
    %v6264 = vmax.f32 %v6262, %v6263
    %v6265 = vmax.f32 %v5985, %v5988
    %v6266 = vrot.slane %v6265, 4
    %v6267 = vmax.f32 %v6265, %v6266
    %v6268 = vrot.slane %v6267, 2
    %v6269 = vmax.f32 %v6267, %v6268
    %v6270 = vrot.slane %v6269, 1
    %v6271 = vmax.f32 %v6269, %v6270
    %v6272 = vmax.f32 %v5986, %v5989
    %v6273 = vrot.slane %v6272, 4
    %v6274 = vmax.f32 %v6272, %v6273
    %v6275 = vrot.slane %v6274, 2
    %v6276 = vmax.f32 %v6274, %v6275
    %v6277 = vrot.slane %v6276, 1
    %v6278 = vmax.f32 %v6276, %v6277
    %s6279 = scalar_lea.vmem %s3, 768
    %v6280 = vld [vmem:[%s6279] sm:$0xff]
    %v6281 = vld [vmem:[%s6279 + $0x8] sm:$0xff]
    %v6282 = vld [vmem:[%s6279 + $0x10] sm:$0xff]
    %v6283 = vld [vmem:[%s6279 + $0x18] sm:$0xff]
    %v6284 = vld [vmem:[%s6279 + $0x20] sm:$0xff]
    %v6285 = vld [vmem:[%s6279 + $0x28] sm:$0xff]
    %v6286 = vld [vmem:[%s6279 + $0x30] sm:$0xff]
    %v6287 = vld [vmem:[%s6279 + $0x38] sm:$0xff]
    %v6288 = vld [vmem:[%s6279 + $0x40] sm:$0xff]
    %v6289 = vld [vmem:[%s6279 + $0x48] sm:$0xff]
    %v6290 = vld [vmem:[%s6279 + $0x50] sm:$0xff]
    %v6291 = vld [vmem:[%s6279 + $0x58] sm:$0xff]
    %v6292 = vld [vmem:[%s6279 + $0x60] sm:$0xff]
    %v6293 = vld [vmem:[%s6279 + $0x68] sm:$0xff]
    %v6294 = vld [vmem:[%s6279 + $0x70] sm:$0xff]
    %v6295 = vld [vmem:[%s6279 + $0x78] sm:$0xff]
    %v6296 = vld [vmem:[%s6279 + $0x80] sm:$0xff]
    %v6297 = vld [vmem:[%s6279 + $0x88] sm:$0xff]
    %v6298 = vld [vmem:[%s6279 + $0x90] sm:$0xff]
    %v6299 = vld [vmem:[%s6279 + $0x98] sm:$0xff]
    %v6300 = vld [vmem:[%s6279 + $0xa0] sm:$0xff]
    %v6301 = vld [vmem:[%s6279 + $0xa8] sm:$0xff]
    %v6302 = vld [vmem:[%s6279 + $0xb0] sm:$0xff]
    %v6303 = vld [vmem:[%s6279 + $0xb8] sm:$0xff]
    %v6304 = vld [vmem:[%s6279 + $0xc0] sm:$0xff]
    %v6305 = vld [vmem:[%s6279 + $0xc8] sm:$0xff]
    %v6306 = vld [vmem:[%s6279 + $0xd0] sm:$0xff]
    %v6307 = vld [vmem:[%s6279 + $0xd8] sm:$0xff]
    %v6308 = vld [vmem:[%s6279 + $0xe0] sm:$0xff]
    %v6309 = vld [vmem:[%s6279 + $0xe8] sm:$0xff]
    %v6310 = vld [vmem:[%s6279 + $0xf0] sm:$0xff]
    %v6311 = vld [vmem:[%s6279 + $0xf8] sm:$0xff]
    %v6312 = vld [vmem:[%s6279 + $0x100] sm:$0xff]
    %v6313 = vld [vmem:[%s6279 + $0x108] sm:$0xff]
    %v6314 = vld [vmem:[%s6279 + $0x110] sm:$0xff]
    %v6315 = vld [vmem:[%s6279 + $0x118] sm:$0xff]
    %v6316 = vld [vmem:[%s6279 + $0x120] sm:$0xff]
    %v6317 = vld [vmem:[%s6279 + $0x128] sm:$0xff]
    %v6318 = vld [vmem:[%s6279 + $0x130] sm:$0xff]
    %v6319 = vld [vmem:[%s6279 + $0x138] sm:$0xff]
    %v6320 = vld [vmem:[%s6279 + $0x140] sm:$0xff]
    %v6321 = vld [vmem:[%s6279 + $0x148] sm:$0xff]
    %v6322 = vld [vmem:[%s6279 + $0x150] sm:$0xff]
    %v6323 = vld [vmem:[%s6279 + $0x158] sm:$0xff]
    %v6324 = vld [vmem:[%s6279 + $0x160] sm:$0xff]
    %v6325 = vld [vmem:[%s6279 + $0x168] sm:$0xff]
    %v6326 = vld [vmem:[%s6279 + $0x170] sm:$0xff]
    %v6327 = vld [vmem:[%s6279 + $0x178] sm:$0xff]
    %6328 = vmatpush.msra.mxu0 %v6295
    %6329 = vmatpush.msra.mxu0 %v6294
    %6330 = vmatpush.msra.mxu0 %v6293
    %6331 = vmatpush.msra.mxu0 %v6292
    %6332 = vmatpush.msra.mxu0 %v6291
    %6333 = vmatpush.msra.mxu0 %v6290
    %6334 = vmatpush.msra.mxu0 %v6289
    %6335 = vmatpush.msra.mxu0 %v6288
    %6336 = vmatpush.msra.mxu0 %v6287
    %6337 = vmatpush.msra.mxu0 %v6286
    %6338 = vmatpush.msra.mxu0 %v6285
    %6339 = vmatpush.msra.mxu0 %v6284
    %6340 = vmatpush.msra.mxu0 %v6283
    %6341 = vmatpush.msra.mxu0 %v6282
    %6342 = vmatpush.msra.mxu0 %v6281
    %6343 = vmatpush.msra.mxu0 %v6280
    %6344 = vmatmul.f32.gmra.mxu0 %v6264
    %v6345 = vpop.f32.mrf.mxu0
    %v6346 = vadd.f32 0.0, %v6345
    %6347 = vdwg.mxu0
    %6348 = vmatpush.msra.mxu0 %v6311
    %6349 = vmatpush.msra.mxu0 %v6310
    %6350 = vmatpush.msra.mxu0 %v6309
    %6351 = vmatpush.msra.mxu0 %v6308
    %6352 = vmatpush.msra.mxu0 %v6307
    %6353 = vmatpush.msra.mxu0 %v6306
    %6354 = vmatpush.msra.mxu0 %v6305
    %6355 = vmatpush.msra.mxu0 %v6304
    %6356 = vmatpush.msra.mxu0 %v6303
    %6357 = vmatpush.msra.mxu0 %v6302
    %6358 = vmatpush.msra.mxu0 %v6301
    %6359 = vmatpush.msra.mxu0 %v6300
    %6360 = vmatpush.msra.mxu0 %v6299
    %6361 = vmatpush.msra.mxu0 %v6298
    %6362 = vmatpush.msra.mxu0 %v6297
    %6363 = vmatpush.msra.mxu0 %v6296
    %6364 = vmatmul.f32.gmra.mxu0 %v6271
    %v6365 = vpop.f32.mrf.mxu0
    %v6366 = vadd.f32 %v6346, %v6365
    %6367 = vdwg.mxu0
    %6368 = vmatpush.msra.mxu0 %v6327
    %6369 = vmatpush.msra.mxu0 %v6326
    %6370 = vmatpush.msra.mxu0 %v6325
    %6371 = vmatpush.msra.mxu0 %v6324
    %6372 = vmatpush.msra.mxu0 %v6323
    %6373 = vmatpush.msra.mxu0 %v6322
    %6374 = vmatpush.msra.mxu0 %v6321
    %6375 = vmatpush.msra.mxu0 %v6320
    %6376 = vmatpush.msra.mxu0 %v6319
    %6377 = vmatpush.msra.mxu0 %v6318
    %6378 = vmatpush.msra.mxu0 %v6317
    %6379 = vmatpush.msra.mxu0 %v6316
    %6380 = vmatpush.msra.mxu0 %v6315
    %6381 = vmatpush.msra.mxu0 %v6314
    %6382 = vmatpush.msra.mxu0 %v6313
    %6383 = vmatpush.msra.mxu0 %v6312
    %6384 = vmatmul.f32.gmra.mxu0 %v6278
    %v6385 = vpop.f32.mrf.mxu0
    %v6386 = vadd.f32 %v6366, %v6385
    %6387 = vdwg.mxu0
    %v6388 = vadd.f32 %v6257, %v6386
    %v6389 = vmax.f32 %v5990, %v5993
    %v6390 = vrot.slane %v6389, 4
    %v6391 = vmax.f32 %v6389, %v6390
    %v6392 = vrot.slane %v6391, 2
    %v6393 = vmax.f32 %v6391, %v6392
    %v6394 = vrot.slane %v6393, 1
    %v6395 = vmax.f32 %v6393, %v6394
    %v6396 = vmax.f32 %v5991, %v5994
    %v6397 = vrot.slane %v6396, 4
    %v6398 = vmax.f32 %v6396, %v6397
    %v6399 = vrot.slane %v6398, 2
    %v6400 = vmax.f32 %v6398, %v6399
    %v6401 = vrot.slane %v6400, 1
    %v6402 = vmax.f32 %v6400, %v6401
    %v6403 = vmax.f32 %v5992, %v5995
    %v6404 = vrot.slane %v6403, 4
    %v6405 = vmax.f32 %v6403, %v6404
    %v6406 = vrot.slane %v6405, 2
    %v6407 = vmax.f32 %v6405, %v6406
    %v6408 = vrot.slane %v6407, 1
    %v6409 = vmax.f32 %v6407, %v6408
    %s6410 = scalar_lea.vmem %s3, 1152
    %v6411 = vld [vmem:[%s6410] sm:$0xff]
    %v6412 = vld [vmem:[%s6410 + $0x8] sm:$0xff]
    %v6413 = vld [vmem:[%s6410 + $0x10] sm:$0xff]
    %v6414 = vld [vmem:[%s6410 + $0x18] sm:$0xff]
    %v6415 = vld [vmem:[%s6410 + $0x20] sm:$0xff]
    %v6416 = vld [vmem:[%s6410 + $0x28] sm:$0xff]
    %v6417 = vld [vmem:[%s6410 + $0x30] sm:$0xff]
    %v6418 = vld [vmem:[%s6410 + $0x38] sm:$0xff]
    %v6419 = vld [vmem:[%s6410 + $0x40] sm:$0xff]
    %v6420 = vld [vmem:[%s6410 + $0x48] sm:$0xff]
    %v6421 = vld [vmem:[%s6410 + $0x50] sm:$0xff]
    %v6422 = vld [vmem:[%s6410 + $0x58] sm:$0xff]
    %v6423 = vld [vmem:[%s6410 + $0x60] sm:$0xff]
    %v6424 = vld [vmem:[%s6410 + $0x68] sm:$0xff]
    %v6425 = vld [vmem:[%s6410 + $0x70] sm:$0xff]
    %v6426 = vld [vmem:[%s6410 + $0x78] sm:$0xff]
    %v6427 = vld [vmem:[%s6410 + $0x80] sm:$0xff]
    %v6428 = vld [vmem:[%s6410 + $0x88] sm:$0xff]
    %v6429 = vld [vmem:[%s6410 + $0x90] sm:$0xff]
    %v6430 = vld [vmem:[%s6410 + $0x98] sm:$0xff]
    %v6431 = vld [vmem:[%s6410 + $0xa0] sm:$0xff]
    %v6432 = vld [vmem:[%s6410 + $0xa8] sm:$0xff]
    %v6433 = vld [vmem:[%s6410 + $0xb0] sm:$0xff]
    %v6434 = vld [vmem:[%s6410 + $0xb8] sm:$0xff]
    %v6435 = vld [vmem:[%s6410 + $0xc0] sm:$0xff]
    %v6436 = vld [vmem:[%s6410 + $0xc8] sm:$0xff]
    %v6437 = vld [vmem:[%s6410 + $0xd0] sm:$0xff]
    %v6438 = vld [vmem:[%s6410 + $0xd8] sm:$0xff]
    %v6439 = vld [vmem:[%s6410 + $0xe0] sm:$0xff]
    %v6440 = vld [vmem:[%s6410 + $0xe8] sm:$0xff]
    %v6441 = vld [vmem:[%s6410 + $0xf0] sm:$0xff]
    %v6442 = vld [vmem:[%s6410 + $0xf8] sm:$0xff]
    %v6443 = vld [vmem:[%s6410 + $0x100] sm:$0xff]
    %v6444 = vld [vmem:[%s6410 + $0x108] sm:$0xff]
    %v6445 = vld [vmem:[%s6410 + $0x110] sm:$0xff]
    %v6446 = vld [vmem:[%s6410 + $0x118] sm:$0xff]
    %v6447 = vld [vmem:[%s6410 + $0x120] sm:$0xff]
    %v6448 = vld [vmem:[%s6410 + $0x128] sm:$0xff]
    %v6449 = vld [vmem:[%s6410 + $0x130] sm:$0xff]
    %v6450 = vld [vmem:[%s6410 + $0x138] sm:$0xff]
    %v6451 = vld [vmem:[%s6410 + $0x140] sm:$0xff]
    %v6452 = vld [vmem:[%s6410 + $0x148] sm:$0xff]
    %v6453 = vld [vmem:[%s6410 + $0x150] sm:$0xff]
    %v6454 = vld [vmem:[%s6410 + $0x158] sm:$0xff]
    %v6455 = vld [vmem:[%s6410 + $0x160] sm:$0xff]
    %v6456 = vld [vmem:[%s6410 + $0x168] sm:$0xff]
    %v6457 = vld [vmem:[%s6410 + $0x170] sm:$0xff]
    %v6458 = vld [vmem:[%s6410 + $0x178] sm:$0xff]
    %6459 = vmatpush.msra.mxu0 %v6426
    %6460 = vmatpush.msra.mxu0 %v6425
    %6461 = vmatpush.msra.mxu0 %v6424
    %6462 = vmatpush.msra.mxu0 %v6423
    %6463 = vmatpush.msra.mxu0 %v6422
    %6464 = vmatpush.msra.mxu0 %v6421
    %6465 = vmatpush.msra.mxu0 %v6420
    %6466 = vmatpush.msra.mxu0 %v6419
    %6467 = vmatpush.msra.mxu0 %v6418
    %6468 = vmatpush.msra.mxu0 %v6417
    %6469 = vmatpush.msra.mxu0 %v6416
    %6470 = vmatpush.msra.mxu0 %v6415
    %6471 = vmatpush.msra.mxu0 %v6414
    %6472 = vmatpush.msra.mxu0 %v6413
    %6473 = vmatpush.msra.mxu0 %v6412
    %6474 = vmatpush.msra.mxu0 %v6411
    %6475 = vmatmul.f32.gmra.mxu0 %v6395
    %v6476 = vpop.f32.mrf.mxu0
    %v6477 = vadd.f32 0.0, %v6476
    %6478 = vdwg.mxu0
    %6479 = vmatpush.msra.mxu0 %v6442
    %6480 = vmatpush.msra.mxu0 %v6441
    %6481 = vmatpush.msra.mxu0 %v6440
    %6482 = vmatpush.msra.mxu0 %v6439
    %6483 = vmatpush.msra.mxu0 %v6438
    %6484 = vmatpush.msra.mxu0 %v6437
    %6485 = vmatpush.msra.mxu0 %v6436
    %6486 = vmatpush.msra.mxu0 %v6435
    %6487 = vmatpush.msra.mxu0 %v6434
    %6488 = vmatpush.msra.mxu0 %v6433
    %6489 = vmatpush.msra.mxu0 %v6432
    %6490 = vmatpush.msra.mxu0 %v6431
    %6491 = vmatpush.msra.mxu0 %v6430
    %6492 = vmatpush.msra.mxu0 %v6429
    %6493 = vmatpush.msra.mxu0 %v6428
    %6494 = vmatpush.msra.mxu0 %v6427
    %6495 = vmatmul.f32.gmra.mxu0 %v6402
    %v6496 = vpop.f32.mrf.mxu0
    %v6497 = vadd.f32 %v6477, %v6496
    %6498 = vdwg.mxu0
    %6499 = vmatpush.msra.mxu0 %v6458
    %6500 = vmatpush.msra.mxu0 %v6457
    %6501 = vmatpush.msra.mxu0 %v6456
    %6502 = vmatpush.msra.mxu0 %v6455
    %6503 = vmatpush.msra.mxu0 %v6454
    %6504 = vmatpush.msra.mxu0 %v6453
    %6505 = vmatpush.msra.mxu0 %v6452
    %6506 = vmatpush.msra.mxu0 %v6451
    %6507 = vmatpush.msra.mxu0 %v6450
    %6508 = vmatpush.msra.mxu0 %v6449
    %6509 = vmatpush.msra.mxu0 %v6448
    %6510 = vmatpush.msra.mxu0 %v6447
    %6511 = vmatpush.msra.mxu0 %v6446
    %6512 = vmatpush.msra.mxu0 %v6445
    %6513 = vmatpush.msra.mxu0 %v6444
    %6514 = vmatpush.msra.mxu0 %v6443
    %6515 = vmatmul.f32.gmra.mxu0 %v6409
    %v6516 = vpop.f32.mrf.mxu0
    %v6517 = vadd.f32 %v6497, %v6516
    %6518 = vdwg.mxu0
    %v6519 = vadd.f32 %v6388, %v6517
    %vm6520 = vcmask 32768
    %6521 = vst.msk [vmem:[#allocation11] sm:$0x1] %vm6520, %v6519
    // Predicated region
    $region38: #{textcnnmodel_forward.1} parent=1 // pred_check
      _
    $region39: #{textcnnmodel_forward.1} parent=1 // pred_check_branch
      %6523 = sbr.rel (0) target = $region41
    $region40: #{textcnnmodel_forward.1} parent=1 // pred_region
      %6525 = vsyncadd [#allocation5], 0
      %s6527 = sshll.u32 [#allocation11], 4
      %s6528 = int_to_ptr.vmem [resolvable:$true] %s6527
      %s6529 = sshll.u32 %s5, 4
      %s6530 = int_to_ptr.hbm [resolvable:$true] %s6529
      %6532 = dma.vmem_to_hbm [thread:$0]  %s6528, 16, %s6530, [#allocation5]
    $region41: #{textcnnmodel_forward.1} parent=1 // pred_fallthru
      _
    // Predicated region
    $region42: #{textcnnmodel_forward.1} parent=1 // pred_check
      _
    $region43: #{textcnnmodel_forward.1} parent=1 // pred_check_branch
      %6534 = sbr.rel (0) target = $region45
    $region44: #{textcnnmodel_forward.1} parent=1 // pred_region
      %6536 = dma.done [#allocation5], 16
    $region45: #{textcnnmodel_forward.1} parent=1 // pred_fallthru
      _
    %6537 = vsyncpa [#allocation4], 1
    %6538 = vsyncpa [#allocation7], 1
    %6539 = vsyncpa [#allocation10], 1
    %6540 = vsyncpa [#allocation5], 1

</llo_original>
